<compile_context>
chip_gen: v5e
topology: v5e:2x2
jax: 0.10.0
libtpu: 0.0.40
codegen_flags: <defaults>
</compile_context>

<pallas_src>
import math
from functools import partial

import jax
import jax.numpy as jnp
from jax.experimental import pallas as pl
from jax.experimental.pallas import tpu as pltpu


# ----------------------------- fused decoder kernel (one batch row per grid step) -----------------------------

def _decoder_kernel(
    trg_ref,      # (Lt, D)       f32  embedded + scaled + positional (this batch row)
    enc_ref,      # (Ls, D)       f32  encoder output (this batch row)
    tmask_ref,    # (Lt, Lt)      f32  target (causal) mask
    smask_ref,    # (1, Ls)       f32  source (pad) mask (broadcast over query rows)
    ln_g_ref,     # (L, 3, 1, D)  f32
    ln_b_ref,     # (L, 3, 1, D)  f32
    wq_ref,       # (L, 2, D, D)  bf16   [self, cross]
    bq_ref,       # (L, 2, 1, D)  f32
    wkv_ref,      # (L, 2, D, 2D) bf16   [wk | wv]
    bkv_ref,      # (L, 2, 1, 2D) f32
    wo_ref,       # (L, 2, D, D)  bf16
    bo_ref,       # (L, 2, 1, D)  f32
    gwy_ref,      # (L, 3, D, 3D) bf16   [wr | wz | wg]
    gux_ref,      # (L, 3, D, 2D) bf16   [ur | uz]
    gug_ref,      # (L, 3, D, D)  bf16
    gbg_ref,      # (L, 3, 1, D)  f32
    ffw1_ref,     # (L, D, PF)    bf16
    ffb1_ref,     # (L, 1, PF)    f32
    ffw2_ref,     # (L, PF, D)    bf16
    ffb2_ref,     # (L, 1, D)     f32
    fcw_ref,      # (D, V)        bf16
    fcb_ref,      # (1, V)        f32
    out_ref,      # (Lt, V)       f32  output logits (this batch row)
    attn_ref,     # (H, Lt, Ls)   f32  last layer cross-attention probabilities
    *, n_layers, n_heads, eps,
):
    Lt, D = trg_ref.shape
    Ls = enc_ref.shape[0]
    Dh = D // n_heads
    inv_scale = 1.0 / math.sqrt(Dh)

    def mm(x, w):
        # bf16 operands on the MXU, f32 accumulation.
        return jnp.dot(x.astype(w.dtype), w, preferred_element_type=jnp.float32)

    def layernorm(x, g, b):
        mu = jnp.mean(x, axis=-1, keepdims=True)
        var = jnp.mean(jnp.square(x - mu), axis=-1, keepdims=True)
        return (x - mu) * jax.lax.rsqrt(var + eps) * g + b

    def gru_gate(y, x, wy, ux, ug, bg):
        # TODO(synk): Gate source not provided in the spec; GTrXL-style GRU gate
        # assumed (gating bias b_g subtracted inside the z-gate so the gate starts
        # near identity), consistent with the previously accepted version.
        yw = mm(y, wy)                       # (Lt, 3D): [y@wr | y@wz | y@wg]
        xu = mm(x, ux)                       # (Lt, 2D): [x@ur | x@uz]
        r = jax.nn.sigmoid(yw[:, :D] + xu[:, :D])
        z = jax.nn.sigmoid(yw[:, D:2 * D] + xu[:, D:2 * D] - bg)
        h = jnp.tanh(yw[:, 2 * D:] + mm(r * x, ug))
        return (1.0 - z) * x + z * h

    # Additive mask biases, computed once (hoisted out of layer/head loops).
    tbias = jnp.where(tmask_ref[...] != 0.0, 0.0, -1e10)      # (Lt, Lt)
    sbias = jnp.where(smask_ref[...] != 0.0, 0.0, -1e10)      # (1, Ls) — broadcasts

    enc = enc_ref[...]                                         # (Ls, D)

    def mha(q_in, kv_in, bias, wq, bq, wkv, bkv, wo, bo, want_probs):
        # q_in: (Lq, D); kv_in: (Lk, D); bias: (Lq or 1, Lk) additive.
        Q = (mm(q_in, wq) + bq) * inv_scale                    # pre-scaled once
        KV = mm(kv_in, wkv) + bkv                              # fused K/V projection
        K = KV[:, :D]
        V = KV[:, D:]
        ctx_heads = []
        probs = []
        for h in range(n_heads):
            s = h * Dh
            e = jnp.einsum("qd,kd->qk", Q[:, s:s + Dh], K[:, s:s + Dh],
                           preferred_element_type=jnp.float32) + bias
            e = e - jnp.max(e, axis=-1, keepdims=True)
            p = jnp.exp(e)
            p = p / jnp.sum(p, axis=-1, keepdims=True)         # exact softmax
            if want_probs:
                probs.append(p)
            ctx_heads.append(jnp.dot(p, V[:, s:s + Dh],
                                     preferred_element_type=jnp.float32))
        ctx = jnp.concatenate(ctx_heads, axis=-1)              # (Lq, D) in registers
        out = mm(ctx, wo) + bo
        return out, (jnp.stack(probs, axis=0) if want_probs else None)

    x = trg_ref[...]                                           # (Lt, D) f32
    for l in range(n_layers):
        last = (l == n_layers - 1)

        # --- self attention block ---
        t1 = layernorm(x, ln_g_ref[l, 0], ln_b_ref[l, 0])
        sa, _ = mha(t1, t1, tbias,
                    wq_ref[l, 0], bq_ref[l, 0], wkv_ref[l, 0], bkv_ref[l, 0],
                    wo_ref[l, 0], bo_ref[l, 0], False)
        g1 = gru_gate(sa, t1, gwy_ref[l, 0], gux_ref[l, 0],
                      gug_ref[l, 0], gbg_ref[l, 0])

        # --- cross (encoder) attention block ---
        t2 = layernorm(g1, ln_g_ref[l, 1], ln_b_ref[l, 1])
        ea, p = mha(t2, enc, sbias,
                    wq_ref[l, 1], bq_ref[l, 1], wkv_ref[l, 1], bkv_ref[l, 1],
                    wo_ref[l, 1], bo_ref[l, 1], last)
        if last:
            attn_ref[...] = p                                  # single batched store
        g2 = gru_gate(ea, t2, gwy_ref[l, 1], gux_ref[l, 1],
                      gug_ref[l, 1], gbg_ref[l, 1])

        # --- position-wise feed-forward block ---
        t3 = layernorm(g2, ln_g_ref[l, 2], ln_b_ref[l, 2])
        h1 = jnp.maximum(mm(t3, ffw1_ref[l]) + ffb1_ref[l], 0.0)
        ff = mm(h1, ffw2_ref[l]) + ffb2_ref[l]
        g3 = gru_gate(ff, t3, gwy_ref[l, 2], gux_ref[l, 2],
                      gug_ref[l, 2], gbg_ref[l, 2])
        x = g3

    out_ref[...] = mm(x, fcw_ref[...]) + fcb_ref[...]          # (Lt, V)


# ----------------------------- wrapper -----------------------------

def decoder_forward(params, trg_tokens, enc_src, trg_mask, src_mask,
                    hid_dim, n_heads):
    B, Lt = trg_tokens.shape
    Ls = enc_src.shape[1]
    D = hid_dim
    H = n_heads
    L, _, PF = params["ffw1"].shape
    V = params["fcw"].shape[-1]
    scale = float(hid_dim) ** 0.5

    # Embedding gathers / positional add stay in XLA glue (no gather kernel needed).
    tok = params["tok_embedding"][trg_tokens]                  # (B, Lt, D)
    pos = params["pos_embedding"][:Lt]                         # (Lt, D)
    trg3 = (tok * scale + pos[None, :, :]).astype(jnp.float32)  # (B, Lt, D)

    # Masks passed un-broadcast; broadcast happens inside the kernel.
    tmask = trg_mask[:, 0].astype(jnp.float32)                 # (B, Lt, Lt)
    smask = src_mask[:, 0].astype(jnp.float32)                 # (B, 1, Ls)
    enc3 = enc_src.astype(jnp.float32)                         # (B, Ls, D)

    weight_order = ["ln_g", "ln_b", "wq", "bq", "wkv", "bkv", "wo", "bo",
                    "gwy", "gux", "gug", "gbg",
                    "ffw1", "ffb1", "ffw2", "ffb2", "fcw", "fcb"]
    weights = [params[k] for k in weight_order]

    def full_spec(a):
        nd = a.ndim

        def idx(b):
            return (0,) * nd
        return pl.BlockSpec(a.shape, idx)

    grid_spec = pltpu.PrefetchScalarGridSpec(
        num_scalar_prefetch=0,
        grid=(B,),
        in_specs=[
            pl.BlockSpec((None, Lt, D), lambda b: (b, 0, 0)),       # trg
            pl.BlockSpec((None, Ls, D), lambda b: (b, 0, 0)),       # enc
            pl.BlockSpec((None, Lt, Lt), lambda b: (b, 0, 0)),      # tmask
            pl.BlockSpec((None, 1, Ls), lambda b: (b, 0, 0)),       # smask
        ] + [full_spec(a) for a in weights],                        # weights resident
        out_specs=(
            pl.BlockSpec((None, Lt, V), lambda b: (b, 0, 0)),       # logits
            pl.BlockSpec((None, H, Lt, Ls), lambda b: (b, 0, 0, 0)),  # attention
        ),
    )

    # Rough advisory cost estimate for the XLA scheduler.
    per_layer_flops = (
        2 * Lt * D * D + 2 * Lt * D * (2 * D) + 4 * Lt * Lt * D + 2 * Lt * D * D   # self-attn
        + 2 * Lt * D * D + 2 * Ls * D * (2 * D) + 4 * Lt * Ls * D + 2 * Lt * D * D  # cross-attn
        + 3 * (2 * Lt * D * (3 * D) + 2 * Lt * D * (2 * D) + 2 * Lt * D * D)        # GRU gates
        + 4 * Lt * D * PF                                                           # FFN
    )
    flops = B * (L * per_layer_flops + 2 * Lt * D * V)
    transcendentals = B * L * (H * Lt * (Lt + Ls) + 9 * Lt * D)
    kernel_inputs = [trg3, enc3, tmask, smask] + weights
    bytes_accessed = sum(int(a.size) * a.dtype.itemsize for a in kernel_inputs)
    bytes_accessed += B * Lt * V * 4 + B * H * Lt * Ls * 4

    kernel = partial(_decoder_kernel, n_layers=L, n_heads=H, eps=1e-5)

    out, attn = pl.pallas_call(
        kernel,
        out_shape=(
            jax.ShapeDtypeStruct((B, Lt, V), jnp.float32),
            jax.ShapeDtypeStruct((B, H, Lt, Ls), jnp.float32),
        ),
        grid_spec=grid_spec,
        compiler_params=pltpu.CompilerParams(
            dimension_semantics=("parallel",),          # batch rows → both TCs on v7x
            vmem_limit_bytes=32 * 1024 * 1024,
        ),
        cost_estimate=pl.CostEstimate(
            flops=int(flops),
            transcendentals=int(transcendentals),
            bytes_accessed=int(bytes_accessed),
        ),
    )(trg3, enc3, tmask, smask, *weights)

    return out, attn


# ----------------------------- parameter init -----------------------------

def init_params(key, output_dim, hid_dim, n_layers, pf_dim, max_length,
                wdtype=jnp.bfloat16):
    keys = iter(jax.random.split(key, 64))
    D, L = hid_dim, n_layers

    def w(shape, s=0.02, dtype=wdtype):
        return (jax.random.normal(next(keys), shape, jnp.float32) * s).astype(dtype)

    return {
        # embeddings stay f32 (gathered in XLA)
        "tok_embedding": jax.random.normal(next(keys), (output_dim, D), jnp.float32),
        "pos_embedding": jax.random.normal(next(keys), (max_length, D), jnp.float32),
        # layer norms: index 0/1/2 = first/second/third LN of each layer
        "ln_g": jnp.ones((L, 3, 1, D), jnp.float32),
        "ln_b": jnp.zeros((L, 3, 1, D), jnp.float32),
        # attention: index 0 = self-attention, 1 = encoder (cross) attention
        "wq": w((L, 2, D, D)),
        "bq": jnp.zeros((L, 2, 1, D), jnp.float32),
        "wkv": w((L, 2, D, 2 * D)),                 # [wk | wv]
        "bkv": jnp.zeros((L, 2, 1, 2 * D), jnp.float32),
        "wo": w((L, 2, D, D)),
        "bo": jnp.zeros((L, 2, 1, D), jnp.float32),
        # GRU gates: index 0/1/2 = first/second/third gate of each layer
        "gwy": w((L, 3, D, 3 * D)),                 # [wr | wz | wg]
        "gux": w((L, 3, D, 2 * D)),                 # [ur | uz]
        "gug": w((L, 3, D, D)),
        "gbg": jnp.full((L, 3, 1, D), 2.0, jnp.float32),   # GTrXL g_bias (subtracted in z)
        # feed-forward
        "ffw1": w((L, D, pf_dim)),
        "ffb1": jnp.zeros((L, 1, pf_dim), jnp.float32),
        "ffw2": w((L, pf_dim, D)),
        "ffb2": jnp.zeros((L, 1, D), jnp.float32),          # f32 (L, 1, D)
        # fc_out
        "fcw": w((D, output_dim)),
        "fcb": jnp.zeros((1, output_dim), jnp.float32),
    }


# ----------------------------- main -----------------------------

if __name__ == "__main__":
    OUTPUT_DIM, HID_DIM, N_LAYERS, N_HEADS, PF_DIM = 20, 32, 2, 4, 64
    MAX_LEN = 100
    B, LT, LS = 2, 8, 10

    key = jax.random.PRNGKey(0)
    kp, kt, ke = jax.random.split(key, 3)
    params = init_params(kp, OUTPUT_DIM, HID_DIM, N_LAYERS, PF_DIM, MAX_LEN)

    trg_tokens = jax.random.randint(kt, (B, LT), 0, OUTPUT_DIM)          # [batch, trg_len]
    enc_src = jax.random.normal(ke, (B, LS, HID_DIM), jnp.float32)       # [batch, src_len, hid]
    causal = jnp.tril(jnp.ones((LT, LT), jnp.float32))
    trg_mask = jnp.broadcast_to(causal, (B, 1, LT, LT))                  # [B, 1, LT, LT]
    src_mask = jnp.ones((B, 1, 1, LS), jnp.float32).at[1, 0, 0, -2:].set(0.0)  # pad last 2 of batch 1

    fwd = jax.jit(partial(decoder_forward, hid_dim=HID_DIM, n_heads=N_HEADS))
    out, attn = fwd(params, trg_tokens, enc_src, trg_mask, src_mask)
    jax.block_until_ready((out, attn))

    assert out.shape == (B, LT, OUTPUT_DIM), out.shape
    assert attn.shape == (B, N_HEADS, LT, LS), attn.shape
    assert bool(jnp.all(jnp.isfinite(out))) and bool(jnp.all(jnp.isfinite(attn)))
    # attention rows must sum to 1 (exact softmax, no approx reciprocal)
    assert bool(jnp.allclose(jnp.sum(attn, axis=-1), 1.0, atol=1e-5))
    print("KERNEL_OK")
</pallas_src>

<mosaic_0001>
module attributes {stable_mosaic.version = 11 : i64} {
  func.func @_decoder_kernel(%arg0: i32, %arg1: memref<1x8x32xf32, #tpu.memory_space<vmem>>, %arg2: memref<1x10x32xf32, #tpu.memory_space<vmem>>, %arg3: memref<1x8x8xf32, #tpu.memory_space<vmem>>, %arg4: memref<1x1x10xf32, #tpu.memory_space<vmem>>, %arg5: memref<2x3x1x32xf32, #tpu.memory_space<vmem>>, %arg6: memref<2x3x1x32xf32, #tpu.memory_space<vmem>>, %arg7: memref<2x2x32x32xbf16, #tpu.memory_space<vmem>>, %arg8: memref<2x2x1x32xf32, #tpu.memory_space<vmem>>, %arg9: memref<2x2x32x64xbf16, #tpu.memory_space<vmem>>, %arg10: memref<2x2x1x64xf32, #tpu.memory_space<vmem>>, %arg11: memref<2x2x32x32xbf16, #tpu.memory_space<vmem>>, %arg12: memref<2x2x1x32xf32, #tpu.memory_space<vmem>>, %arg13: memref<2x3x32x96xbf16, #tpu.memory_space<vmem>>, %arg14: memref<2x3x32x64xbf16, #tpu.memory_space<vmem>>, %arg15: memref<2x3x32x32xbf16, #tpu.memory_space<vmem>>, %arg16: memref<2x3x1x32xf32, #tpu.memory_space<vmem>>, %arg17: memref<2x32x64xbf16, #tpu.memory_space<vmem>>, %arg18: memref<2x1x64xf32, #tpu.memory_space<vmem>>, %arg19: memref<2x64x32xbf16, #tpu.memory_space<vmem>>, %arg20: memref<2x1x32xf32, #tpu.memory_space<vmem>>, %arg21: memref<32x20xbf16, #tpu.memory_space<vmem>>, %arg22: memref<1x20xf32, #tpu.memory_space<vmem>>, %arg23: memref<1x8x20xf32, #tpu.memory_space<vmem>>, %arg24: memref<1x4x8x10xf32, #tpu.memory_space<vmem>>) attributes {dimension_semantics = [#tpu.dimension_semantics<parallel>], iteration_bounds = array<i64: 2>, scalar_prefetch = 0 : i64, scratch_operands = 0 : i64, tpu.core_type = #tpu.core_type<tc>, window_params = [{transform_indices = @transform_0, window_bounds = array<i64: 1, 8, 32>}, {transform_indices = @transform_1, window_bounds = array<i64: 1, 10, 32>}, {transform_indices = @transform_2, window_bounds = array<i64: 1, 8, 8>}, {transform_indices = @transform_3, window_bounds = array<i64: 1, 1, 10>}, {pipeline_mode = #tpu.pipeline_mode<synchronous>, transform_indices = @transform_4, window_bounds = array<i64: 2, 3, 1, 32>}, {pipeline_mode = #tpu.pipeline_mode<synchronous>, transform_indices = @transform_5, window_bounds = array<i64: 2, 3, 1, 32>}, {pipeline_mode = #tpu.pipeline_mode<synchronous>, transform_indices = @transform_6, window_bounds = array<i64: 2, 2, 32, 32>}, {pipeline_mode = #tpu.pipeline_mode<synchronous>, transform_indices = @transform_7, window_bounds = array<i64: 2, 2, 1, 32>}, {pipeline_mode = #tpu.pipeline_mode<synchronous>, transform_indices = @transform_8, window_bounds = array<i64: 2, 2, 32, 64>}, {pipeline_mode = #tpu.pipeline_mode<synchronous>, transform_indices = @transform_9, window_bounds = array<i64: 2, 2, 1, 64>}, {pipeline_mode = #tpu.pipeline_mode<synchronous>, transform_indices = @transform_10, window_bounds = array<i64: 2, 2, 32, 32>}, {pipeline_mode = #tpu.pipeline_mode<synchronous>, transform_indices = @transform_11, window_bounds = array<i64: 2, 2, 1, 32>}, {pipeline_mode = #tpu.pipeline_mode<synchronous>, transform_indices = @transform_12, window_bounds = array<i64: 2, 3, 32, 96>}, {pipeline_mode = #tpu.pipeline_mode<synchronous>, transform_indices = @transform_13, window_bounds = array<i64: 2, 3, 32, 64>}, {pipeline_mode = #tpu.pipeline_mode<synchronous>, transform_indices = @transform_14, window_bounds = array<i64: 2, 3, 32, 32>}, {pipeline_mode = #tpu.pipeline_mode<synchronous>, transform_indices = @transform_15, window_bounds = array<i64: 2, 3, 1, 32>}, {pipeline_mode = #tpu.pipeline_mode<synchronous>, transform_indices = @transform_16, window_bounds = array<i64: 2, 32, 64>}, {pipeline_mode = #tpu.pipeline_mode<synchronous>, transform_indices = @transform_17, window_bounds = array<i64: 2, 1, 64>}, {pipeline_mode = #tpu.pipeline_mode<synchronous>, transform_indices = @transform_18, window_bounds = array<i64: 2, 64, 32>}, {pipeline_mode = #tpu.pipeline_mode<synchronous>, transform_indices = @transform_19, window_bounds = array<i64: 2, 1, 32>}, {pipeline_mode = #tpu.pipeline_mode<synchronous>, transform_indices = @transform_20, window_bounds = array<i64: 32, 20>}, {pipeline_mode = #tpu.pipeline_mode<synchronous>, transform_indices = @transform_21, window_bounds = array<i64: 1, 20>}, {transform_indices = @transform_22, window_bounds = array<i64: 1, 8, 20>}, {transform_indices = @transform_23, window_bounds = array<i64: 1, 4, 8, 10>}]} {
    %c0 = arith.constant 0 : index
    %c0_0 = arith.constant 0 : index
    %c0_1 = arith.constant 0 : index
    %0 = vector.load %arg3[%c0, %c0_0, %c0_1] : memref<1x8x8xf32, #tpu.memory_space<vmem>>, vector<1x8x8xf32>
    %1 = vector.shape_cast %0 : vector<1x8x8xf32> to vector<8x8xf32>
    %cst = arith.constant 0.000000e+00 : f32
    %2 = vector.broadcast %cst : f32 to vector<8x8xf32>
    %3 = arith.cmpf one, %1, %2 : vector<8x8xf32>
    %cst_2 = arith.constant 0.000000e+00 : f32
    %cst_3 = arith.constant -1.000000e+10 : f32
    %4 = vector.broadcast %cst_2 : f32 to vector<8x8xf32>
    %5 = vector.broadcast %cst_3 : f32 to vector<8x8xf32>
    %6 = arith.select %3, %4, %5 : vector<8x8xi1>, vector<8x8xf32>
    %c0_4 = arith.constant 0 : index
    %c0_5 = arith.constant 0 : index
    %c0_6 = arith.constant 0 : index
    %7 = vector.load %arg4[%c0_4, %c0_5, %c0_6] : memref<1x1x10xf32, #tpu.memory_space<vmem>>, vector<1x1x10xf32>
    %8 = vector.shape_cast %7 : vector<1x1x10xf32> to vector<1x10xf32>
    %cst_7 = arith.constant 0.000000e+00 : f32
    %9 = vector.broadcast %cst_7 : f32 to vector<1x10xf32>
    %10 = arith.cmpf one, %8, %9 : vector<1x10xf32>
    %cst_8 = arith.constant 0.000000e+00 : f32
    %cst_9 = arith.constant -1.000000e+10 : f32
    %11 = vector.broadcast %cst_8 : f32 to vector<1x10xf32>
    %12 = vector.broadcast %cst_9 : f32 to vector<1x10xf32>
    %13 = arith.select %10, %11, %12 : vector<1x10xi1>, vector<1x10xf32>
    %c0_10 = arith.constant 0 : index
    %c0_11 = arith.constant 0 : index
    %c0_12 = arith.constant 0 : index
    %14 = vector.load %arg2[%c0_10, %c0_11, %c0_12] : memref<1x10x32xf32, #tpu.memory_space<vmem>>, vector<1x10x32xf32>
    %15 = vector.shape_cast %14 : vector<1x10x32xf32> to vector<10x32xf32>
    %c0_13 = arith.constant 0 : index
    %c0_14 = arith.constant 0 : index
    %c0_15 = arith.constant 0 : index
    %16 = vector.load %arg1[%c0_13, %c0_14, %c0_15] : memref<1x8x32xf32, #tpu.memory_space<vmem>>, vector<1x8x32xf32>
    %17 = vector.shape_cast %16 : vector<1x8x32xf32> to vector<8x32xf32>
    %c0_16 = arith.constant 0 : index
    %c0_17 = arith.constant 0 : index
    %c0_18 = arith.constant 0 : index
    %c0_19 = arith.constant 0 : index
    %18 = vector.load %arg5[%c0_16, %c0_17, %c0_18, %c0_19] : memref<2x3x1x32xf32, #tpu.memory_space<vmem>>, vector<1x1x1x32xf32>
    %19 = vector.shape_cast %18 : vector<1x1x1x32xf32> to vector<1x32xf32>
    %c0_20 = arith.constant 0 : index
    %c0_21 = arith.constant 0 : index
    %c0_22 = arith.constant 0 : index
    %c0_23 = arith.constant 0 : index
    %20 = vector.load %arg6[%c0_20, %c0_21, %c0_22, %c0_23] : memref<2x3x1x32xf32, #tpu.memory_space<vmem>>, vector<1x1x1x32xf32>
    %21 = vector.shape_cast %20 : vector<1x1x1x32xf32> to vector<1x32xf32>
    %cst_24 = arith.constant dense<0.000000e+00> : vector<8xf32>
    %22 = vector.multi_reduction <add>, %17, %cst_24 [1] : vector<8x32xf32> to vector<8xf32>
    %23 = vector.shape_cast %22 : vector<8xf32> to vector<8x1xf32>
    %cst_25 = arith.constant 3.200000e+01 : f32
    %24 = vector.broadcast %cst_25 : f32 to vector<8x1xf32>
    %25 = arith.divf %23, %24 : vector<8x1xf32>
    %26 = vector.broadcast %25 : vector<8x1xf32> to vector<8x32xf32>
    %27 = arith.subf %17, %26 : vector<8x32xf32>
    %28 = arith.mulf %27, %27 : vector<8x32xf32>
    %cst_26 = arith.constant dense<0.000000e+00> : vector<8xf32>
    %29 = vector.multi_reduction <add>, %28, %cst_26 [1] : vector<8x32xf32> to vector<8xf32>
    %30 = vector.shape_cast %29 : vector<8xf32> to vector<8x1xf32>
    %cst_27 = arith.constant 3.200000e+01 : f32
    %31 = vector.broadcast %cst_27 : f32 to vector<8x1xf32>
    %32 = arith.divf %30, %31 : vector<8x1xf32>
    %33 = vector.broadcast %25 : vector<8x1xf32> to vector<8x32xf32>
    %34 = arith.subf %17, %33 : vector<8x32xf32>
    %cst_28 = arith.constant 9.99999974E-6 : f32
    %35 = vector.broadcast %cst_28 : f32 to vector<8x1xf32>
    %36 = arith.addf %32, %35 : vector<8x1xf32>
    %37 = math.rsqrt %36 : vector<8x1xf32>
    %38 = vector.broadcast %37 : vector<8x1xf32> to vector<8x32xf32>
    %39 = arith.mulf %34, %38 : vector<8x32xf32>
    %40 = vector.broadcast %19 : vector<1x32xf32> to vector<8x32xf32>
    %41 = arith.mulf %39, %40 : vector<8x32xf32>
    %42 = vector.broadcast %21 : vector<1x32xf32> to vector<8x32xf32>
    %43 = arith.addf %41, %42 : vector<8x32xf32>
    %c0_29 = arith.constant 0 : index
    %c0_30 = arith.constant 0 : index
    %c0_31 = arith.constant 0 : index
    %c0_32 = arith.constant 0 : index
    %44 = vector.load %arg7[%c0_29, %c0_30, %c0_31, %c0_32] : memref<2x2x32x32xbf16, #tpu.memory_space<vmem>>, vector<1x1x32x32xbf16>
    %45 = vector.shape_cast %44 : vector<1x1x32x32xbf16> to vector<32x32xbf16>
    %c0_33 = arith.constant 0 : index
    %c0_34 = arith.constant 0 : index
    %c0_35 = arith.constant 0 : index
    %c0_36 = arith.constant 0 : index
    %46 = vector.load %arg8[%c0_33, %c0_34, %c0_35, %c0_36] : memref<2x2x1x32xf32, #tpu.memory_space<vmem>>, vector<1x1x1x32xf32>
    %47 = vector.shape_cast %46 : vector<1x1x1x32xf32> to vector<1x32xf32>
    %c0_37 = arith.constant 0 : index
    %c0_38 = arith.constant 0 : index
    %c0_39 = arith.constant 0 : index
    %c0_40 = arith.constant 0 : index
    %48 = vector.load %arg9[%c0_37, %c0_38, %c0_39, %c0_40] : memref<2x2x32x64xbf16, #tpu.memory_space<vmem>>, vector<1x1x32x64xbf16>
    %49 = vector.shape_cast %48 : vector<1x1x32x64xbf16> to vector<32x64xbf16>
    %c0_41 = arith.constant 0 : index
    %c0_42 = arith.constant 0 : index
    %c0_43 = arith.constant 0 : index
    %c0_44 = arith.constant 0 : index
    %50 = vector.load %arg10[%c0_41, %c0_42, %c0_43, %c0_44] : memref<2x2x1x64xf32, #tpu.memory_space<vmem>>, vector<1x1x1x64xf32>
    %51 = vector.shape_cast %50 : vector<1x1x1x64xf32> to vector<1x64xf32>
    %c0_45 = arith.constant 0 : index
    %c0_46 = arith.constant 0 : index
    %c0_47 = arith.constant 0 : index
    %c0_48 = arith.constant 0 : index
    %52 = vector.load %arg11[%c0_45, %c0_46, %c0_47, %c0_48] : memref<2x2x32x32xbf16, #tpu.memory_space<vmem>>, vector<1x1x32x32xbf16>
    %53 = vector.shape_cast %52 : vector<1x1x32x32xbf16> to vector<32x32xbf16>
    %c0_49 = arith.constant 0 : index
    %c0_50 = arith.constant 0 : index
    %c0_51 = arith.constant 0 : index
    %c0_52 = arith.constant 0 : index
    %54 = vector.load %arg12[%c0_49, %c0_50, %c0_51, %c0_52] : memref<2x2x1x32xf32, #tpu.memory_space<vmem>>, vector<1x1x1x32xf32>
    %55 = vector.shape_cast %54 : vector<1x1x1x32xf32> to vector<1x32xf32>
    %56 = arith.truncf %43 : vector<8x32xf32> to vector<8x32xbf16>
    %cst_53 = arith.constant dense<0.000000e+00> : vector<8x32xf32>
    %57 = tpu.matmul %56, %45, %cst_53 {dimension_numbers = #tpu.dot_dimension_numbers<[1], [0], [0], [1], [0, 0, 1, 1], [], []>} : vector<8x32xbf16>, vector<32x32xbf16>, vector<8x32xf32> -> vector<8x32xf32>
    %58 = vector.broadcast %47 : vector<1x32xf32> to vector<8x32xf32>
    %59 = arith.addf %57, %58 : vector<8x32xf32>
    %cst_54 = arith.constant 0.353553385 : f32
    %60 = vector.broadcast %cst_54 : f32 to vector<8x32xf32>
    %61 = arith.mulf %59, %60 : vector<8x32xf32>
    %62 = arith.truncf %43 : vector<8x32xf32> to vector<8x32xbf16>
    %cst_55 = arith.constant dense<0.000000e+00> : vector<8x64xf32>
    %63 = tpu.matmul %62, %49, %cst_55 {dimension_numbers = #tpu.dot_dimension_numbers<[1], [0], [0], [1], [0, 0, 1, 1], [], []>} : vector<8x32xbf16>, vector<32x64xbf16>, vector<8x64xf32> -> vector<8x64xf32>
    %64 = vector.broadcast %51 : vector<1x64xf32> to vector<8x64xf32>
    %65 = arith.addf %63, %64 : vector<8x64xf32>
    %66 = vector.extract_strided_slice %65 {offsets = [0, 0], sizes = [8, 32], strides = [1, 1]} : vector<8x64xf32> to vector<8x32xf32>
    %67 = vector.extract_strided_slice %65 {offsets = [0, 32], sizes = [8, 32], strides = [1, 1]} : vector<8x64xf32> to vector<8x32xf32>
    %68 = vector.extract_strided_slice %61 {offsets = [0, 0], sizes = [8, 8], strides = [1, 1]} : vector<8x32xf32> to vector<8x8xf32>
    %69 = vector.extract_strided_slice %66 {offsets = [0, 0], sizes = [8, 8], strides = [1, 1]} : vector<8x32xf32> to vector<8x8xf32>
    "tpu.trace_start"() <{level = 10 : i32, message = "qd,kd->qk"}> : () -> ()
    %cst_56 = arith.constant dense<0.000000e+00> : vector<8x8xf32>
    %70 = tpu.matmul %68, %69, %cst_56 {dimension_numbers = #tpu.dot_dimension_numbers<[1], [1], [0], [0], [0, 0, 1, 0], [], []>} : vector<8x8xf32>, vector<8x8xf32>, vector<8x8xf32> -> vector<8x8xf32>
    "tpu.trace_stop"() : () -> ()
    %71 = arith.addf %70, %6 : vector<8x8xf32>
    %cst_57 = arith.constant dense<0xFF800000> : vector<8xf32>
    %72 = vector.multi_reduction <maximumf>, %71, %cst_57 [1] : vector<8x8xf32> to vector<8xf32>
    %73 = vector.shape_cast %72 : vector<8xf32> to vector<8x1xf32>
    %74 = vector.broadcast %73 : vector<8x1xf32> to vector<8x8xf32>
    %75 = arith.subf %71, %74 : vector<8x8xf32>
    %76 = math.exp %75 : vector<8x8xf32>
    %cst_58 = arith.constant dense<0.000000e+00> : vector<8xf32>
    %77 = vector.multi_reduction <add>, %76, %cst_58 [1] : vector<8x8xf32> to vector<8xf32>
    %78 = vector.shape_cast %77 : vector<8xf32> to vector<8x1xf32>
    %79 = vector.broadcast %78 : vector<8x1xf32> to vector<8x8xf32>
    %80 = arith.divf %76, %79 : vector<8x8xf32>
    %81 = vector.extract_strided_slice %67 {offsets = [0, 0], sizes = [8, 8], strides = [1, 1]} : vector<8x32xf32> to vector<8x8xf32>
    %cst_59 = arith.constant dense<0.000000e+00> : vector<8x8xf32>
    %82 = tpu.matmul %80, %81, %cst_59 {dimension_numbers = #tpu.dot_dimension_numbers<[1], [0], [0], [1], [0, 0, 1, 1], [], []>} : vector<8x8xf32>, vector<8x8xf32>, vector<8x8xf32> -> vector<8x8xf32>
    %83 = vector.extract_strided_slice %61 {offsets = [0, 8], sizes = [8, 8], strides = [1, 1]} : vector<8x32xf32> to vector<8x8xf32>
    %84 = vector.extract_strided_slice %66 {offsets = [0, 8], sizes = [8, 8], strides = [1, 1]} : vector<8x32xf32> to vector<8x8xf32>
    "tpu.trace_start"() <{level = 10 : i32, message = "qd,kd->qk"}> : () -> ()
    %cst_60 = arith.constant dense<0.000000e+00> : vector<8x8xf32>
    %85 = tpu.matmul %83, %84, %cst_60 {dimension_numbers = #tpu.dot_dimension_numbers<[1], [1], [0], [0], [0, 0, 1, 0], [], []>} : vector<8x8xf32>, vector<8x8xf32>, vector<8x8xf32> -> vector<8x8xf32>
    "tpu.trace_stop"() : () -> ()
    %86 = arith.addf %85, %6 : vector<8x8xf32>
    %cst_61 = arith.constant dense<0xFF800000> : vector<8xf32>
    %87 = vector.multi_reduction <maximumf>, %86, %cst_61 [1] : vector<8x8xf32> to vector<8xf32>
    %88 = vector.shape_cast %87 : vector<8xf32> to vector<8x1xf32>
    %89 = vector.broadcast %88 : vector<8x1xf32> to vector<8x8xf32>
    %90 = arith.subf %86, %89 : vector<8x8xf32>
    %91 = math.exp %90 : vector<8x8xf32>
    %cst_62 = arith.constant dense<0.000000e+00> : vector<8xf32>
    %92 = vector.multi_reduction <add>, %91, %cst_62 [1] : vector<8x8xf32> to vector<8xf32>
    %93 = vector.shape_cast %92 : vector<8xf32> to vector<8x1xf32>
    %94 = vector.broadcast %93 : vector<8x1xf32> to vector<8x8xf32>
    %95 = arith.divf %91, %94 : vector<8x8xf32>
    %96 = vector.extract_strided_slice %67 {offsets = [0, 8], sizes = [8, 8], strides = [1, 1]} : vector<8x32xf32> to vector<8x8xf32>
    %cst_63 = arith.constant dense<0.000000e+00> : vector<8x8xf32>
    %97 = tpu.matmul %95, %96, %cst_63 {dimension_numbers = #tpu.dot_dimension_numbers<[1], [0], [0], [1], [0, 0, 1, 1], [], []>} : vector<8x8xf32>, vector<8x8xf32>, vector<8x8xf32> -> vector<8x8xf32>
    %98 = vector.extract_strided_slice %61 {offsets = [0, 16], sizes = [8, 8], strides = [1, 1]} : vector<8x32xf32> to vector<8x8xf32>
    %99 = vector.extract_strided_slice %66 {offsets = [0, 16], sizes = [8, 8], strides = [1, 1]} : vector<8x32xf32> to vector<8x8xf32>
    "tpu.trace_start"() <{level = 10 : i32, message = "qd,kd->qk"}> : () -> ()
    %cst_64 = arith.constant dense<0.000000e+00> : vector<8x8xf32>
    %100 = tpu.matmul %98, %99, %cst_64 {dimension_numbers = #tpu.dot_dimension_numbers<[1], [1], [0], [0], [0, 0, 1, 0], [], []>} : vector<8x8xf32>, vector<8x8xf32>, vector<8x8xf32> -> vector<8x8xf32>
    "tpu.trace_stop"() : () -> ()
    %101 = arith.addf %100, %6 : vector<8x8xf32>
    %cst_65 = arith.constant dense<0xFF800000> : vector<8xf32>
    %102 = vector.multi_reduction <maximumf>, %101, %cst_65 [1] : vector<8x8xf32> to vector<8xf32>
    %103 = vector.shape_cast %102 : vector<8xf32> to vector<8x1xf32>
    %104 = vector.broadcast %103 : vector<8x1xf32> to vector<8x8xf32>
    %105 = arith.subf %101, %104 : vector<8x8xf32>
    %106 = math.exp %105 : vector<8x8xf32>
    %cst_66 = arith.constant dense<0.000000e+00> : vector<8xf32>
    %107 = vector.multi_reduction <add>, %106, %cst_66 [1] : vector<8x8xf32> to vector<8xf32>
    %108 = vector.shape_cast %107 : vector<8xf32> to vector<8x1xf32>
    %109 = vector.broadcast %108 : vector<8x1xf32> to vector<8x8xf32>
    %110 = arith.divf %106, %109 : vector<8x8xf32>
    %111 = vector.extract_strided_slice %67 {offsets = [0, 16], sizes = [8, 8], strides = [1, 1]} : vector<8x32xf32> to vector<8x8xf32>
    %cst_67 = arith.constant dense<0.000000e+00> : vector<8x8xf32>
    %112 = tpu.matmul %110, %111, %cst_67 {dimension_numbers = #tpu.dot_dimension_numbers<[1], [0], [0], [1], [0, 0, 1, 1], [], []>} : vector<8x8xf32>, vector<8x8xf32>, vector<8x8xf32> -> vector<8x8xf32>
    %113 = vector.extract_strided_slice %61 {offsets = [0, 24], sizes = [8, 8], strides = [1, 1]} : vector<8x32xf32> to vector<8x8xf32>
    %114 = vector.extract_strided_slice %66 {offsets = [0, 24], sizes = [8, 8], strides = [1, 1]} : vector<8x32xf32> to vector<8x8xf32>
    "tpu.trace_start"() <{level = 10 : i32, message = "qd,kd->qk"}> : () -> ()
    %cst_68 = arith.constant dense<0.000000e+00> : vector<8x8xf32>
    %115 = tpu.matmul %113, %114, %cst_68 {dimension_numbers = #tpu.dot_dimension_numbers<[1], [1], [0], [0], [0, 0, 1, 0], [], []>} : vector<8x8xf32>, vector<8x8xf32>, vector<8x8xf32> -> vector<8x8xf32>
    "tpu.trace_stop"() : () -> ()
    %116 = arith.addf %115, %6 : vector<8x8xf32>
    %cst_69 = arith.constant dense<0xFF800000> : vector<8xf32>
    %117 = vector.multi_reduction <maximumf>, %116, %cst_69 [1] : vector<8x8xf32> to vector<8xf32>
    %118 = vector.shape_cast %117 : vector<8xf32> to vector<8x1xf32>
    %119 = vector.broadcast %118 : vector<8x1xf32> to vector<8x8xf32>
    %120 = arith.subf %116, %119 : vector<8x8xf32>
    %121 = math.exp %120 : vector<8x8xf32>
    %cst_70 = arith.constant dense<0.000000e+00> : vector<8xf32>
    %122 = vector.multi_reduction <add>, %121, %cst_70 [1] : vector<8x8xf32> to vector<8xf32>
    %123 = vector.shape_cast %122 : vector<8xf32> to vector<8x1xf32>
    %124 = vector.broadcast %123 : vector<8x1xf32> to vector<8x8xf32>
    %125 = arith.divf %121, %124 : vector<8x8xf32>
    %126 = vector.extract_strided_slice %67 {offsets = [0, 24], sizes = [8, 8], strides = [1, 1]} : vector<8x32xf32> to vector<8x8xf32>
    %cst_71 = arith.constant dense<0.000000e+00> : vector<8x8xf32>
    %127 = tpu.matmul %125, %126, %cst_71 {dimension_numbers = #tpu.dot_dimension_numbers<[1], [0], [0], [1], [0, 0, 1, 1], [], []>} : vector<8x8xf32>, vector<8x8xf32>, vector<8x8xf32> -> vector<8x8xf32>
    %128 = tpu.concatenate %82, %97, %112, %127 in 1 : vector<8x8xf32>, vector<8x8xf32>, vector<8x8xf32>, vector<8x8xf32> -> vector<8x32xf32>
    %129 = arith.truncf %128 : vector<8x32xf32> to vector<8x32xbf16>
    %cst_72 = arith.constant dense<0.000000e+00> : vector<8x32xf32>
    %130 = tpu.matmul %129, %53, %cst_72 {dimension_numbers = #tpu.dot_dimension_numbers<[1], [0], [0], [1], [0, 0, 1, 1], [], []>} : vector<8x32xbf16>, vector<32x32xbf16>, vector<8x32xf32> -> vector<8x32xf32>
    %131 = vector.broadcast %55 : vector<1x32xf32> to vector<8x32xf32>
    %132 = arith.addf %130, %131 : vector<8x32xf32>
    %c0_73 = arith.constant 0 : index
    %c0_74 = arith.constant 0 : index
    %c0_75 = arith.constant 0 : index
    %c0_76 = arith.constant 0 : index
    %133 = vector.load %arg13[%c0_73, %c0_74, %c0_75, %c0_76] : memref<2x3x32x96xbf16, #tpu.memory_space<vmem>>, vector<1x1x32x96xbf16>
    %134 = vector.shape_cast %133 : vector<1x1x32x96xbf16> to vector<32x96xbf16>
    %c0_77 = arith.constant 0 : index
    %c0_78 = arith.constant 0 : index
    %c0_79 = arith.constant 0 : index
    %c0_80 = arith.constant 0 : index
    %135 = vector.load %arg14[%c0_77, %c0_78, %c0_79, %c0_80] : memref<2x3x32x64xbf16, #tpu.memory_space<vmem>>, vector<1x1x32x64xbf16>
    %136 = vector.shape_cast %135 : vector<1x1x32x64xbf16> to vector<32x64xbf16>
    %c0_81 = arith.constant 0 : index
    %c0_82 = arith.constant 0 : index
    %c0_83 = arith.constant 0 : index
    %c0_84 = arith.constant 0 : index
    %137 = vector.load %arg15[%c0_81, %c0_82, %c0_83, %c0_84] : memref<2x3x32x32xbf16, #tpu.memory_space<vmem>>, vector<1x1x32x32xbf16>
    %138 = vector.shape_cast %137 : vector<1x1x32x32xbf16> to vector<32x32xbf16>
    %c0_85 = arith.constant 0 : index
    %c0_86 = arith.constant 0 : index
    %c0_87 = arith.constant 0 : index
    %c0_88 = arith.constant 0 : index
    %139 = vector.load %arg16[%c0_85, %c0_86, %c0_87, %c0_88] : memref<2x3x1x32xf32, #tpu.memory_space<vmem>>, vector<1x1x1x32xf32>
    %140 = vector.shape_cast %139 : vector<1x1x1x32xf32> to vector<1x32xf32>
    %141 = arith.truncf %132 : vector<8x32xf32> to vector<8x32xbf16>
    %cst_89 = arith.constant dense<0.000000e+00> : vector<8x96xf32>
    %142 = tpu.matmul %141, %134, %cst_89 {dimension_numbers = #tpu.dot_dimension_numbers<[1], [0], [0], [1], [0, 0, 1, 1], [], []>} : vector<8x32xbf16>, vector<32x96xbf16>, vector<8x96xf32> -> vector<8x96xf32>
    %143 = arith.truncf %43 : vector<8x32xf32> to vector<8x32xbf16>
    %cst_90 = arith.constant dense<0.000000e+00> : vector<8x64xf32>
    %144 = tpu.matmul %143, %136, %cst_90 {dimension_numbers = #tpu.dot_dimension_numbers<[1], [0], [0], [1], [0, 0, 1, 1], [], []>} : vector<8x32xbf16>, vector<32x64xbf16>, vector<8x64xf32> -> vector<8x64xf32>
    %145 = vector.extract_strided_slice %142 {offsets = [0, 0], sizes = [8, 32], strides = [1, 1]} : vector<8x96xf32> to vector<8x32xf32>
    %146 = vector.extract_strided_slice %144 {offsets = [0, 0], sizes = [8, 32], strides = [1, 1]} : vector<8x64xf32> to vector<8x32xf32>
    %147 = arith.addf %145, %146 : vector<8x32xf32>
    %148 = arith.negf %147 : vector<8x32xf32>
    %149 = math.exp %148 : vector<8x32xf32>
    %cst_91 = arith.constant 1.000000e+00 : f32
    %150 = vector.broadcast %cst_91 : f32 to vector<8x32xf32>
    %151 = arith.addf %150, %149 : vector<8x32xf32>
    %152 = arith.divf %150, %151 : vector<8x32xf32>
    %153 = vector.extract_strided_slice %142 {offsets = [0, 32], sizes = [8, 32], strides = [1, 1]} : vector<8x96xf32> to vector<8x32xf32>
    %154 = vector.extract_strided_slice %144 {offsets = [0, 32], sizes = [8, 32], strides = [1, 1]} : vector<8x64xf32> to vector<8x32xf32>
    %155 = arith.addf %153, %154 : vector<8x32xf32>
    %156 = vector.broadcast %140 : vector<1x32xf32> to vector<8x32xf32>
    %157 = arith.subf %155, %156 : vector<8x32xf32>
    %158 = arith.negf %157 : vector<8x32xf32>
    %159 = math.exp %158 : vector<8x32xf32>
    %cst_92 = arith.constant 1.000000e+00 : f32
    %160 = vector.broadcast %cst_92 : f32 to vector<8x32xf32>
    %161 = arith.addf %160, %159 : vector<8x32xf32>
    %162 = arith.divf %160, %161 : vector<8x32xf32>
    %163 = vector.extract_strided_slice %142 {offsets = [0, 64], sizes = [8, 32], strides = [1, 1]} : vector<8x96xf32> to vector<8x32xf32>
    %164 = arith.mulf %152, %43 : vector<8x32xf32>
    %165 = arith.truncf %164 : vector<8x32xf32> to vector<8x32xbf16>
    %cst_93 = arith.constant dense<0.000000e+00> : vector<8x32xf32>
    %166 = tpu.matmul %165, %138, %cst_93 {dimension_numbers = #tpu.dot_dimension_numbers<[1], [0], [0], [1], [0, 0, 1, 1], [], []>} : vector<8x32xbf16>, vector<32x32xbf16>, vector<8x32xf32> -> vector<8x32xf32>
    %167 = arith.addf %163, %166 : vector<8x32xf32>
    %168 = math.tanh %167 : vector<8x32xf32>
    %cst_94 = arith.constant 1.000000e+00 : f32
    %169 = vector.broadcast %cst_94 : f32 to vector<8x32xf32>
    %170 = arith.subf %169, %162 : vector<8x32xf32>
    %171 = arith.mulf %170, %43 : vector<8x32xf32>
    %172 = arith.mulf %162, %168 : vector<8x32xf32>
    %173 = arith.addf %171, %172 : vector<8x32xf32>
    %c0_95 = arith.constant 0 : index
    %c1 = arith.constant 1 : index
    %c0_96 = arith.constant 0 : index
    %c0_97 = arith.constant 0 : index
    %174 = vector.load %arg5[%c0_95, %c1, %c0_96, %c0_97] : memref<2x3x1x32xf32, #tpu.memory_space<vmem>>, vector<1x1x1x32xf32>
    %175 = vector.shape_cast %174 : vector<1x1x1x32xf32> to vector<1x32xf32>
    %c0_98 = arith.constant 0 : index
    %c1_99 = arith.constant 1 : index
    %c0_100 = arith.constant 0 : index
    %c0_101 = arith.constant 0 : index
    %176 = vector.load %arg6[%c0_98, %c1_99, %c0_100, %c0_101] : memref<2x3x1x32xf32, #tpu.memory_space<vmem>>, vector<1x1x1x32xf32>
    %177 = vector.shape_cast %176 : vector<1x1x1x32xf32> to vector<1x32xf32>
    %cst_102 = arith.constant dense<0.000000e+00> : vector<8xf32>
    %178 = vector.multi_reduction <add>, %173, %cst_102 [1] : vector<8x32xf32> to vector<8xf32>
    %179 = vector.shape_cast %178 : vector<8xf32> to vector<8x1xf32>
    %cst_103 = arith.constant 3.200000e+01 : f32
    %180 = vector.broadcast %cst_103 : f32 to vector<8x1xf32>
    %181 = arith.divf %179, %180 : vector<8x1xf32>
    %182 = vector.broadcast %181 : vector<8x1xf32> to vector<8x32xf32>
    %183 = arith.subf %173, %182 : vector<8x32xf32>
    %184 = arith.mulf %183, %183 : vector<8x32xf32>
    %cst_104 = arith.constant dense<0.000000e+00> : vector<8xf32>
    %185 = vector.multi_reduction <add>, %184, %cst_104 [1] : vector<8x32xf32> to vector<8xf32>
    %186 = vector.shape_cast %185 : vector<8xf32> to vector<8x1xf32>
    %cst_105 = arith.constant 3.200000e+01 : f32
    %187 = vector.broadcast %cst_105 : f32 to vector<8x1xf32>
    %188 = arith.divf %186, %187 : vector<8x1xf32>
    %189 = vector.broadcast %181 : vector<8x1xf32> to vector<8x32xf32>
    %190 = arith.subf %173, %189 : vector<8x32xf32>
    %cst_106 = arith.constant 9.99999974E-6 : f32
    %191 = vector.broadcast %cst_106 : f32 to vector<8x1xf32>
    %192 = arith.addf %188, %191 : vector<8x1xf32>
    %193 = math.rsqrt %192 : vector<8x1xf32>
    %194 = vector.broadcast %193 : vector<8x1xf32> to vector<8x32xf32>
    %195 = arith.mulf %190, %194 : vector<8x32xf32>
    %196 = vector.broadcast %175 : vector<1x32xf32> to vector<8x32xf32>
    %197 = arith.mulf %195, %196 : vector<8x32xf32>
    %198 = vector.broadcast %177 : vector<1x32xf32> to vector<8x32xf32>
    %199 = arith.addf %197, %198 : vector<8x32xf32>
    %c0_107 = arith.constant 0 : index
    %c1_108 = arith.constant 1 : index
    %c0_109 = arith.constant 0 : index
    %c0_110 = arith.constant 0 : index
    %200 = vector.load %arg7[%c0_107, %c1_108, %c0_109, %c0_110] : memref<2x2x32x32xbf16, #tpu.memory_space<vmem>>, vector<1x1x32x32xbf16>
    %201 = vector.shape_cast %200 : vector<1x1x32x32xbf16> to vector<32x32xbf16>
    %c0_111 = arith.constant 0 : index
    %c1_112 = arith.constant 1 : index
    %c0_113 = arith.constant 0 : index
    %c0_114 = arith.constant 0 : index
    %202 = vector.load %arg8[%c0_111, %c1_112, %c0_113, %c0_114] : memref<2x2x1x32xf32, #tpu.memory_space<vmem>>, vector<1x1x1x32xf32>
    %203 = vector.shape_cast %202 : vector<1x1x1x32xf32> to vector<1x32xf32>
    %c0_115 = arith.constant 0 : index
    %c1_116 = arith.constant 1 : index
    %c0_117 = arith.constant 0 : index
    %c0_118 = arith.constant 0 : index
    %204 = vector.load %arg9[%c0_115, %c1_116, %c0_117, %c0_118] : memref<2x2x32x64xbf16, #tpu.memory_space<vmem>>, vector<1x1x32x64xbf16>
    %205 = vector.shape_cast %204 : vector<1x1x32x64xbf16> to vector<32x64xbf16>
    %c0_119 = arith.constant 0 : index
    %c1_120 = arith.constant 1 : index
    %c0_121 = arith.constant 0 : index
    %c0_122 = arith.constant 0 : index
    %206 = vector.load %arg10[%c0_119, %c1_120, %c0_121, %c0_122] : memref<2x2x1x64xf32, #tpu.memory_space<vmem>>, vector<1x1x1x64xf32>
    %207 = vector.shape_cast %206 : vector<1x1x1x64xf32> to vector<1x64xf32>
    %c0_123 = arith.constant 0 : index
    %c1_124 = arith.constant 1 : index
    %c0_125 = arith.constant 0 : index
    %c0_126 = arith.constant 0 : index
    %208 = vector.load %arg11[%c0_123, %c1_124, %c0_125, %c0_126] : memref<2x2x32x32xbf16, #tpu.memory_space<vmem>>, vector<1x1x32x32xbf16>
    %209 = vector.shape_cast %208 : vector<1x1x32x32xbf16> to vector<32x32xbf16>
    %c0_127 = arith.constant 0 : index
    %c1_128 = arith.constant 1 : index
    %c0_129 = arith.constant 0 : index
    %c0_130 = arith.constant 0 : index
    %210 = vector.load %arg12[%c0_127, %c1_128, %c0_129, %c0_130] : memref<2x2x1x32xf32, #tpu.memory_space<vmem>>, vector<1x1x1x32xf32>
    %211 = vector.shape_cast %210 : vector<1x1x1x32xf32> to vector<1x32xf32>
    %212 = arith.truncf %199 : vector<8x32xf32> to vector<8x32xbf16>
    %cst_131 = arith.constant dense<0.000000e+00> : vector<8x32xf32>
    %213 = tpu.matmul %212, %201, %cst_131 {dimension_numbers = #tpu.dot_dimension_numbers<[1], [0], [0], [1], [0, 0, 1, 1], [], []>} : vector<8x32xbf16>, vector<32x32xbf16>, vector<8x32xf32> -> vector<8x32xf32>
    %214 = vector.broadcast %203 : vector<1x32xf32> to vector<8x32xf32>
    %215 = arith.addf %213, %214 : vector<8x32xf32>
    %cst_132 = arith.constant 0.353553385 : f32
    %216 = vector.broadcast %cst_132 : f32 to vector<8x32xf32>
    %217 = arith.mulf %215, %216 : vector<8x32xf32>
    %218 = arith.truncf %15 : vector<10x32xf32> to vector<10x32xbf16>
    %cst_133 = arith.constant dense<0.000000e+00> : vector<10x64xf32>
    %219 = tpu.matmul %218, %205, %cst_133 {dimension_numbers = #tpu.dot_dimension_numbers<[1], [0], [0], [1], [0, 0, 1, 1], [], []>} : vector<10x32xbf16>, vector<32x64xbf16>, vector<10x64xf32> -> vector<10x64xf32>
    %220 = vector.broadcast %207 : vector<1x64xf32> to vector<10x64xf32>
    %221 = arith.addf %219, %220 : vector<10x64xf32>
    %222 = vector.extract_strided_slice %221 {offsets = [0, 0], sizes = [10, 32], strides = [1, 1]} : vector<10x64xf32> to vector<10x32xf32>
    %223 = vector.extract_strided_slice %221 {offsets = [0, 32], sizes = [10, 32], strides = [1, 1]} : vector<10x64xf32> to vector<10x32xf32>
    %224 = vector.extract_strided_slice %217 {offsets = [0, 0], sizes = [8, 8], strides = [1, 1]} : vector<8x32xf32> to vector<8x8xf32>
    %225 = vector.extract_strided_slice %222 {offsets = [0, 0], sizes = [10, 8], strides = [1, 1]} : vector<10x32xf32> to vector<10x8xf32>
    "tpu.trace_start"() <{level = 10 : i32, message = "qd,kd->qk"}> : () -> ()
    %cst_134 = arith.constant dense<0.000000e+00> : vector<8x10xf32>
    %226 = tpu.matmul %224, %225, %cst_134 {dimension_numbers = #tpu.dot_dimension_numbers<[1], [1], [0], [0], [0, 0, 1, 0], [], []>} : vector<8x8xf32>, vector<10x8xf32>, vector<8x10xf32> -> vector<8x10xf32>
    "tpu.trace_stop"() : () -> ()
    %227 = vector.broadcast %13 : vector<1x10xf32> to vector<8x10xf32>
    %228 = arith.addf %226, %227 : vector<8x10xf32>
    %cst_135 = arith.constant dense<0xFF800000> : vector<8xf32>
    %229 = vector.multi_reduction <maximumf>, %228, %cst_135 [1] : vector<8x10xf32> to vector<8xf32>
    %230 = vector.shape_cast %229 : vector<8xf32> to vector<8x1xf32>
    %231 = vector.broadcast %230 : vector<8x1xf32> to vector<8x10xf32>
    %232 = arith.subf %228, %231 : vector<8x10xf32>
    %233 = math.exp %232 : vector<8x10xf32>
    %cst_136 = arith.constant dense<0.000000e+00> : vector<8xf32>
    %234 = vector.multi_reduction <add>, %233, %cst_136 [1] : vector<8x10xf32> to vector<8xf32>
    %235 = vector.shape_cast %234 : vector<8xf32> to vector<8x1xf32>
    %236 = vector.broadcast %235 : vector<8x1xf32> to vector<8x10xf32>
    %237 = arith.divf %233, %236 : vector<8x10xf32>
    %238 = vector.extract_strided_slice %223 {offsets = [0, 0], sizes = [10, 8], strides = [1, 1]} : vector<10x32xf32> to vector<10x8xf32>
    %cst_137 = arith.constant dense<0.000000e+00> : vector<8x8xf32>
    %239 = tpu.matmul %237, %238, %cst_137 {dimension_numbers = #tpu.dot_dimension_numbers<[1], [0], [0], [1], [0, 0, 1, 1], [], []>} : vector<8x10xf32>, vector<10x8xf32>, vector<8x8xf32> -> vector<8x8xf32>
    %240 = vector.extract_strided_slice %217 {offsets = [0, 8], sizes = [8, 8], strides = [1, 1]} : vector<8x32xf32> to vector<8x8xf32>
    %241 = vector.extract_strided_slice %222 {offsets = [0, 8], sizes = [10, 8], strides = [1, 1]} : vector<10x32xf32> to vector<10x8xf32>
    "tpu.trace_start"() <{level = 10 : i32, message = "qd,kd->qk"}> : () -> ()
    %cst_138 = arith.constant dense<0.000000e+00> : vector<8x10xf32>
    %242 = tpu.matmul %240, %241, %cst_138 {dimension_numbers = #tpu.dot_dimension_numbers<[1], [1], [0], [0], [0, 0, 1, 0], [], []>} : vector<8x8xf32>, vector<10x8xf32>, vector<8x10xf32> -> vector<8x10xf32>
    "tpu.trace_stop"() : () -> ()
    %243 = vector.broadcast %13 : vector<1x10xf32> to vector<8x10xf32>
    %244 = arith.addf %242, %243 : vector<8x10xf32>
    %cst_139 = arith.constant dense<0xFF800000> : vector<8xf32>
    %245 = vector.multi_reduction <maximumf>, %244, %cst_139 [1] : vector<8x10xf32> to vector<8xf32>
    %246 = vector.shape_cast %245 : vector<8xf32> to vector<8x1xf32>
    %247 = vector.broadcast %246 : vector<8x1xf32> to vector<8x10xf32>
    %248 = arith.subf %244, %247 : vector<8x10xf32>
    %249 = math.exp %248 : vector<8x10xf32>
    %cst_140 = arith.constant dense<0.000000e+00> : vector<8xf32>
    %250 = vector.multi_reduction <add>, %249, %cst_140 [1] : vector<8x10xf32> to vector<8xf32>
    %251 = vector.shape_cast %250 : vector<8xf32> to vector<8x1xf32>
    %252 = vector.broadcast %251 : vector<8x1xf32> to vector<8x10xf32>
    %253 = arith.divf %249, %252 : vector<8x10xf32>
    %254 = vector.extract_strided_slice %223 {offsets = [0, 8], sizes = [10, 8], strides = [1, 1]} : vector<10x32xf32> to vector<10x8xf32>
    %cst_141 = arith.constant dense<0.000000e+00> : vector<8x8xf32>
    %255 = tpu.matmul %253, %254, %cst_141 {dimension_numbers = #tpu.dot_dimension_numbers<[1], [0], [0], [1], [0, 0, 1, 1], [], []>} : vector<8x10xf32>, vector<10x8xf32>, vector<8x8xf32> -> vector<8x8xf32>
    %256 = vector.extract_strided_slice %217 {offsets = [0, 16], sizes = [8, 8], strides = [1, 1]} : vector<8x32xf32> to vector<8x8xf32>
    %257 = vector.extract_strided_slice %222 {offsets = [0, 16], sizes = [10, 8], strides = [1, 1]} : vector<10x32xf32> to vector<10x8xf32>
    "tpu.trace_start"() <{level = 10 : i32, message = "qd,kd->qk"}> : () -> ()
    %cst_142 = arith.constant dense<0.000000e+00> : vector<8x10xf32>
    %258 = tpu.matmul %256, %257, %cst_142 {dimension_numbers = #tpu.dot_dimension_numbers<[1], [1], [0], [0], [0, 0, 1, 0], [], []>} : vector<8x8xf32>, vector<10x8xf32>, vector<8x10xf32> -> vector<8x10xf32>
    "tpu.trace_stop"() : () -> ()
    %259 = vector.broadcast %13 : vector<1x10xf32> to vector<8x10xf32>
    %260 = arith.addf %258, %259 : vector<8x10xf32>
    %cst_143 = arith.constant dense<0xFF800000> : vector<8xf32>
    %261 = vector.multi_reduction <maximumf>, %260, %cst_143 [1] : vector<8x10xf32> to vector<8xf32>
    %262 = vector.shape_cast %261 : vector<8xf32> to vector<8x1xf32>
    %263 = vector.broadcast %262 : vector<8x1xf32> to vector<8x10xf32>
    %264 = arith.subf %260, %263 : vector<8x10xf32>
    %265 = math.exp %264 : vector<8x10xf32>
    %cst_144 = arith.constant dense<0.000000e+00> : vector<8xf32>
    %266 = vector.multi_reduction <add>, %265, %cst_144 [1] : vector<8x10xf32> to vector<8xf32>
    %267 = vector.shape_cast %266 : vector<8xf32> to vector<8x1xf32>
    %268 = vector.broadcast %267 : vector<8x1xf32> to vector<8x10xf32>
    %269 = arith.divf %265, %268 : vector<8x10xf32>
    %270 = vector.extract_strided_slice %223 {offsets = [0, 16], sizes = [10, 8], strides = [1, 1]} : vector<10x32xf32> to vector<10x8xf32>
    %cst_145 = arith.constant dense<0.000000e+00> : vector<8x8xf32>
    %271 = tpu.matmul %269, %270, %cst_145 {dimension_numbers = #tpu.dot_dimension_numbers<[1], [0], [0], [1], [0, 0, 1, 1], [], []>} : vector<8x10xf32>, vector<10x8xf32>, vector<8x8xf32> -> vector<8x8xf32>
    %272 = vector.extract_strided_slice %217 {offsets = [0, 24], sizes = [8, 8], strides = [1, 1]} : vector<8x32xf32> to vector<8x8xf32>
    %273 = vector.extract_strided_slice %222 {offsets = [0, 24], sizes = [10, 8], strides = [1, 1]} : vector<10x32xf32> to vector<10x8xf32>
    "tpu.trace_start"() <{level = 10 : i32, message = "qd,kd->qk"}> : () -> ()
    %cst_146 = arith.constant dense<0.000000e+00> : vector<8x10xf32>
    %274 = tpu.matmul %272, %273, %cst_146 {dimension_numbers = #tpu.dot_dimension_numbers<[1], [1], [0], [0], [0, 0, 1, 0], [], []>} : vector<8x8xf32>, vector<10x8xf32>, vector<8x10xf32> -> vector<8x10xf32>
    "tpu.trace_stop"() : () -> ()
    %275 = vector.broadcast %13 : vector<1x10xf32> to vector<8x10xf32>
    %276 = arith.addf %274, %275 : vector<8x10xf32>
    %cst_147 = arith.constant dense<0xFF800000> : vector<8xf32>
    %277 = vector.multi_reduction <maximumf>, %276, %cst_147 [1] : vector<8x10xf32> to vector<8xf32>
    %278 = vector.shape_cast %277 : vector<8xf32> to vector<8x1xf32>
    %279 = vector.broadcast %278 : vector<8x1xf32> to vector<8x10xf32>
    %280 = arith.subf %276, %279 : vector<8x10xf32>
    %281 = math.exp %280 : vector<8x10xf32>
    %cst_148 = arith.constant dense<0.000000e+00> : vector<8xf32>
    %282 = vector.multi_reduction <add>, %281, %cst_148 [1] : vector<8x10xf32> to vector<8xf32>
    %283 = vector.shape_cast %282 : vector<8xf32> to vector<8x1xf32>
    %284 = vector.broadcast %283 : vector<8x1xf32> to vector<8x10xf32>
    %285 = arith.divf %281, %284 : vector<8x10xf32>
    %286 = vector.extract_strided_slice %223 {offsets = [0, 24], sizes = [10, 8], strides = [1, 1]} : vector<10x32xf32> to vector<10x8xf32>
    %cst_149 = arith.constant dense<0.000000e+00> : vector<8x8xf32>
    %287 = tpu.matmul %285, %286, %cst_149 {dimension_numbers = #tpu.dot_dimension_numbers<[1], [0], [0], [1], [0, 0, 1, 1], [], []>} : vector<8x10xf32>, vector<10x8xf32>, vector<8x8xf32> -> vector<8x8xf32>
    %288 = tpu.concatenate %239, %255, %271, %287 in 1 : vector<8x8xf32>, vector<8x8xf32>, vector<8x8xf32>, vector<8x8xf32> -> vector<8x32xf32>
    %289 = arith.truncf %288 : vector<8x32xf32> to vector<8x32xbf16>
    %cst_150 = arith.constant dense<0.000000e+00> : vector<8x32xf32>
    %290 = tpu.matmul %289, %209, %cst_150 {dimension_numbers = #tpu.dot_dimension_numbers<[1], [0], [0], [1], [0, 0, 1, 1], [], []>} : vector<8x32xbf16>, vector<32x32xbf16>, vector<8x32xf32> -> vector<8x32xf32>
    %291 = vector.broadcast %211 : vector<1x32xf32> to vector<8x32xf32>
    %292 = arith.addf %290, %291 : vector<8x32xf32>
    %c0_151 = arith.constant 0 : index
    %c1_152 = arith.constant 1 : index
    %c0_153 = arith.constant 0 : index
    %c0_154 = arith.constant 0 : index
    %293 = vector.load %arg13[%c0_151, %c1_152, %c0_153, %c0_154] : memref<2x3x32x96xbf16, #tpu.memory_space<vmem>>, vector<1x1x32x96xbf16>
    %294 = vector.shape_cast %293 : vector<1x1x32x96xbf16> to vector<32x96xbf16>
    %c0_155 = arith.constant 0 : index
    %c1_156 = arith.constant 1 : index
    %c0_157 = arith.constant 0 : index
    %c0_158 = arith.constant 0 : index
    %295 = vector.load %arg14[%c0_155, %c1_156, %c0_157, %c0_158] : memref<2x3x32x64xbf16, #tpu.memory_space<vmem>>, vector<1x1x32x64xbf16>
    %296 = vector.shape_cast %295 : vector<1x1x32x64xbf16> to vector<32x64xbf16>
    %c0_159 = arith.constant 0 : index
    %c1_160 = arith.constant 1 : index
    %c0_161 = arith.constant 0 : index
    %c0_162 = arith.constant 0 : index
    %297 = vector.load %arg15[%c0_159, %c1_160, %c0_161, %c0_162] : memref<2x3x32x32xbf16, #tpu.memory_space<vmem>>, vector<1x1x32x32xbf16>
    %298 = vector.shape_cast %297 : vector<1x1x32x32xbf16> to vector<32x32xbf16>
    %c0_163 = arith.constant 0 : index
    %c1_164 = arith.constant 1 : index
    %c0_165 = arith.constant 0 : index
    %c0_166 = arith.constant 0 : index
    %299 = vector.load %arg16[%c0_163, %c1_164, %c0_165, %c0_166] : memref<2x3x1x32xf32, #tpu.memory_space<vmem>>, vector<1x1x1x32xf32>
    %300 = vector.shape_cast %299 : vector<1x1x1x32xf32> to vector<1x32xf32>
    %301 = arith.truncf %292 : vector<8x32xf32> to vector<8x32xbf16>
    %cst_167 = arith.constant dense<0.000000e+00> : vector<8x96xf32>
    %302 = tpu.matmul %301, %294, %cst_167 {dimension_numbers = #tpu.dot_dimension_numbers<[1], [0], [0], [1], [0, 0, 1, 1], [], []>} : vector<8x32xbf16>, vector<32x96xbf16>, vector<8x96xf32> -> vector<8x96xf32>
    %303 = arith.truncf %199 : vector<8x32xf32> to vector<8x32xbf16>
    %cst_168 = arith.constant dense<0.000000e+00> : vector<8x64xf32>
    %304 = tpu.matmul %303, %296, %cst_168 {dimension_numbers = #tpu.dot_dimension_numbers<[1], [0], [0], [1], [0, 0, 1, 1], [], []>} : vector<8x32xbf16>, vector<32x64xbf16>, vector<8x64xf32> -> vector<8x64xf32>
    %305 = vector.extract_strided_slice %302 {offsets = [0, 0], sizes = [8, 32], strides = [1, 1]} : vector<8x96xf32> to vector<8x32xf32>
    %306 = vector.extract_strided_slice %304 {offsets = [0, 0], sizes = [8, 32], strides = [1, 1]} : vector<8x64xf32> to vector<8x32xf32>
    %307 = arith.addf %305, %306 : vector<8x32xf32>
    %308 = arith.negf %307 : vector<8x32xf32>
    %309 = math.exp %308 : vector<8x32xf32>
    %cst_169 = arith.constant 1.000000e+00 : f32
    %310 = vector.broadcast %cst_169 : f32 to vector<8x32xf32>
    %311 = arith.addf %310, %309 : vector<8x32xf32>
    %312 = arith.divf %310, %311 : vector<8x32xf32>
    %313 = vector.extract_strided_slice %302 {offsets = [0, 32], sizes = [8, 32], strides = [1, 1]} : vector<8x96xf32> to vector<8x32xf32>
    %314 = vector.extract_strided_slice %304 {offsets = [0, 32], sizes = [8, 32], strides = [1, 1]} : vector<8x64xf32> to vector<8x32xf32>
    %315 = arith.addf %313, %314 : vector<8x32xf32>
    %316 = vector.broadcast %300 : vector<1x32xf32> to vector<8x32xf32>
    %317 = arith.subf %315, %316 : vector<8x32xf32>
    %318 = arith.negf %317 : vector<8x32xf32>
    %319 = math.exp %318 : vector<8x32xf32>
    %cst_170 = arith.constant 1.000000e+00 : f32
    %320 = vector.broadcast %cst_170 : f32 to vector<8x32xf32>
    %321 = arith.addf %320, %319 : vector<8x32xf32>
    %322 = arith.divf %320, %321 : vector<8x32xf32>
    %323 = vector.extract_strided_slice %302 {offsets = [0, 64], sizes = [8, 32], strides = [1, 1]} : vector<8x96xf32> to vector<8x32xf32>
    %324 = arith.mulf %312, %199 : vector<8x32xf32>
    %325 = arith.truncf %324 : vector<8x32xf32> to vector<8x32xbf16>
    %cst_171 = arith.constant dense<0.000000e+00> : vector<8x32xf32>
    %326 = tpu.matmul %325, %298, %cst_171 {dimension_numbers = #tpu.dot_dimension_numbers<[1], [0], [0], [1], [0, 0, 1, 1], [], []>} : vector<8x32xbf16>, vector<32x32xbf16>, vector<8x32xf32> -> vector<8x32xf32>
    %327 = arith.addf %323, %326 : vector<8x32xf32>
    %328 = math.tanh %327 : vector<8x32xf32>
    %cst_172 = arith.constant 1.000000e+00 : f32
    %329 = vector.broadcast %cst_172 : f32 to vector<8x32xf32>
    %330 = arith.subf %329, %322 : vector<8x32xf32>
    %331 = arith.mulf %330, %199 : vector<8x32xf32>
    %332 = arith.mulf %322, %328 : vector<8x32xf32>
    %333 = arith.addf %331, %332 : vector<8x32xf32>
    %c0_173 = arith.constant 0 : index
    %c2 = arith.constant 2 : index
    %c0_174 = arith.constant 0 : index
    %c0_175 = arith.constant 0 : index
    %334 = vector.load %arg5[%c0_173, %c2, %c0_174, %c0_175] : memref<2x3x1x32xf32, #tpu.memory_space<vmem>>, vector<1x1x1x32xf32>
    %335 = vector.shape_cast %334 : vector<1x1x1x32xf32> to vector<1x32xf32>
    %c0_176 = arith.constant 0 : index
    %c2_177 = arith.constant 2 : index
    %c0_178 = arith.constant 0 : index
    %c0_179 = arith.constant 0 : index
    %336 = vector.load %arg6[%c0_176, %c2_177, %c0_178, %c0_179] : memref<2x3x1x32xf32, #tpu.memory_space<vmem>>, vector<1x1x1x32xf32>
    %337 = vector.shape_cast %336 : vector<1x1x1x32xf32> to vector<1x32xf32>
    %cst_180 = arith.constant dense<0.000000e+00> : vector<8xf32>
    %338 = vector.multi_reduction <add>, %333, %cst_180 [1] : vector<8x32xf32> to vector<8xf32>
    %339 = vector.shape_cast %338 : vector<8xf32> to vector<8x1xf32>
    %cst_181 = arith.constant 3.200000e+01 : f32
    %340 = vector.broadcast %cst_181 : f32 to vector<8x1xf32>
    %341 = arith.divf %339, %340 : vector<8x1xf32>
    %342 = vector.broadcast %341 : vector<8x1xf32> to vector<8x32xf32>
    %343 = arith.subf %333, %342 : vector<8x32xf32>
    %344 = arith.mulf %343, %343 : vector<8x32xf32>
    %cst_182 = arith.constant dense<0.000000e+00> : vector<8xf32>
    %345 = vector.multi_reduction <add>, %344, %cst_182 [1] : vector<8x32xf32> to vector<8xf32>
    %346 = vector.shape_cast %345 : vector<8xf32> to vector<8x1xf32>
    %cst_183 = arith.constant 3.200000e+01 : f32
    %347 = vector.broadcast %cst_183 : f32 to vector<8x1xf32>
    %348 = arith.divf %346, %347 : vector<8x1xf32>
    %349 = vector.broadcast %341 : vector<8x1xf32> to vector<8x32xf32>
    %350 = arith.subf %333, %349 : vector<8x32xf32>
    %cst_184 = arith.constant 9.99999974E-6 : f32
    %351 = vector.broadcast %cst_184 : f32 to vector<8x1xf32>
    %352 = arith.addf %348, %351 : vector<8x1xf32>
    %353 = math.rsqrt %352 : vector<8x1xf32>
    %354 = vector.broadcast %353 : vector<8x1xf32> to vector<8x32xf32>
    %355 = arith.mulf %350, %354 : vector<8x32xf32>
    %356 = vector.broadcast %335 : vector<1x32xf32> to vector<8x32xf32>
    %357 = arith.mulf %355, %356 : vector<8x32xf32>
    %358 = vector.broadcast %337 : vector<1x32xf32> to vector<8x32xf32>
    %359 = arith.addf %357, %358 : vector<8x32xf32>
    %c0_185 = arith.constant 0 : index
    %c0_186 = arith.constant 0 : index
    %c0_187 = arith.constant 0 : index
    %360 = vector.load %arg17[%c0_185, %c0_186, %c0_187] : memref<2x32x64xbf16, #tpu.memory_space<vmem>>, vector<1x32x64xbf16>
    %361 = vector.shape_cast %360 : vector<1x32x64xbf16> to vector<32x64xbf16>
    %362 = arith.truncf %359 : vector<8x32xf32> to vector<8x32xbf16>
    %cst_188 = arith.constant dense<0.000000e+00> : vector<8x64xf32>
    %363 = tpu.matmul %362, %361, %cst_188 {dimension_numbers = #tpu.dot_dimension_numbers<[1], [0], [0], [1], [0, 0, 1, 1], [], []>} : vector<8x32xbf16>, vector<32x64xbf16>, vector<8x64xf32> -> vector<8x64xf32>
    %c0_189 = arith.constant 0 : index
    %c0_190 = arith.constant 0 : index
    %c0_191 = arith.constant 0 : index
    %364 = vector.load %arg18[%c0_189, %c0_190, %c0_191] : memref<2x1x64xf32, #tpu.memory_space<vmem>>, vector<1x1x64xf32>
    %365 = vector.shape_cast %364 : vector<1x1x64xf32> to vector<1x64xf32>
    %366 = vector.broadcast %365 : vector<1x64xf32> to vector<8x64xf32>
    %367 = arith.addf %363, %366 : vector<8x64xf32>
    %cst_192 = arith.constant 0.000000e+00 : f32
    %368 = vector.broadcast %cst_192 : f32 to vector<8x64xf32>
    %369 = arith.maximumf %367, %368 : vector<8x64xf32>
    %c0_193 = arith.constant 0 : index
    %c0_194 = arith.constant 0 : index
    %c0_195 = arith.constant 0 : index
    %370 = vector.load %arg19[%c0_193, %c0_194, %c0_195] : memref<2x64x32xbf16, #tpu.memory_space<vmem>>, vector<1x64x32xbf16>
    %371 = vector.shape_cast %370 : vector<1x64x32xbf16> to vector<64x32xbf16>
    %372 = arith.truncf %369 : vector<8x64xf32> to vector<8x64xbf16>
    %cst_196 = arith.constant dense<0.000000e+00> : vector<8x32xf32>
    %373 = tpu.matmul %372, %371, %cst_196 {dimension_numbers = #tpu.dot_dimension_numbers<[1], [0], [0], [1], [0, 0, 1, 1], [], []>} : vector<8x64xbf16>, vector<64x32xbf16>, vector<8x32xf32> -> vector<8x32xf32>
    %c0_197 = arith.constant 0 : index
    %c0_198 = arith.constant 0 : index
    %c0_199 = arith.constant 0 : index
    %374 = vector.load %arg20[%c0_197, %c0_198, %c0_199] : memref<2x1x32xf32, #tpu.memory_space<vmem>>, vector<1x1x32xf32>
    %375 = vector.shape_cast %374 : vector<1x1x32xf32> to vector<1x32xf32>
    %376 = vector.broadcast %375 : vector<1x32xf32> to vector<8x32xf32>
    %377 = arith.addf %373, %376 : vector<8x32xf32>
    %c0_200 = arith.constant 0 : index
    %c2_201 = arith.constant 2 : index
    %c0_202 = arith.constant 0 : index
    %c0_203 = arith.constant 0 : index
    %378 = vector.load %arg13[%c0_200, %c2_201, %c0_202, %c0_203] : memref<2x3x32x96xbf16, #tpu.memory_space<vmem>>, vector<1x1x32x96xbf16>
    %379 = vector.shape_cast %378 : vector<1x1x32x96xbf16> to vector<32x96xbf16>
    %c0_204 = arith.constant 0 : index
    %c2_205 = arith.constant 2 : index
    %c0_206 = arith.constant 0 : index
    %c0_207 = arith.constant 0 : index
    %380 = vector.load %arg14[%c0_204, %c2_205, %c0_206, %c0_207] : memref<2x3x32x64xbf16, #tpu.memory_space<vmem>>, vector<1x1x32x64xbf16>
    %381 = vector.shape_cast %380 : vector<1x1x32x64xbf16> to vector<32x64xbf16>
    %c0_208 = arith.constant 0 : index
    %c2_209 = arith.constant 2 : index
    %c0_210 = arith.constant 0 : index
    %c0_211 = arith.constant 0 : index
    %382 = vector.load %arg15[%c0_208, %c2_209, %c0_210, %c0_211] : memref<2x3x32x32xbf16, #tpu.memory_space<vmem>>, vector<1x1x32x32xbf16>
    %383 = vector.shape_cast %382 : vector<1x1x32x32xbf16> to vector<32x32xbf16>
    %c0_212 = arith.constant 0 : index
    %c2_213 = arith.constant 2 : index
    %c0_214 = arith.constant 0 : index
    %c0_215 = arith.constant 0 : index
    %384 = vector.load %arg16[%c0_212, %c2_213, %c0_214, %c0_215] : memref<2x3x1x32xf32, #tpu.memory_space<vmem>>, vector<1x1x1x32xf32>
    %385 = vector.shape_cast %384 : vector<1x1x1x32xf32> to vector<1x32xf32>
    %386 = arith.truncf %377 : vector<8x32xf32> to vector<8x32xbf16>
    %cst_216 = arith.constant dense<0.000000e+00> : vector<8x96xf32>
    %387 = tpu.matmul %386, %379, %cst_216 {dimension_numbers = #tpu.dot_dimension_numbers<[1], [0], [0], [1], [0, 0, 1, 1], [], []>} : vector<8x32xbf16>, vector<32x96xbf16>, vector<8x96xf32> -> vector<8x96xf32>
    %388 = arith.truncf %359 : vector<8x32xf32> to vector<8x32xbf16>
    %cst_217 = arith.constant dense<0.000000e+00> : vector<8x64xf32>
    %389 = tpu.matmul %388, %381, %cst_217 {dimension_numbers = #tpu.dot_dimension_numbers<[1], [0], [0], [1], [0, 0, 1, 1], [], []>} : vector<8x32xbf16>, vector<32x64xbf16>, vector<8x64xf32> -> vector<8x64xf32>
    %390 = vector.extract_strided_slice %387 {offsets = [0, 0], sizes = [8, 32], strides = [1, 1]} : vector<8x96xf32> to vector<8x32xf32>
    %391 = vector.extract_strided_slice %389 {offsets = [0, 0], sizes = [8, 32], strides = [1, 1]} : vector<8x64xf32> to vector<8x32xf32>
    %392 = arith.addf %390, %391 : vector<8x32xf32>
    %393 = arith.negf %392 : vector<8x32xf32>
    %394 = math.exp %393 : vector<8x32xf32>
    %cst_218 = arith.constant 1.000000e+00 : f32
    %395 = vector.broadcast %cst_218 : f32 to vector<8x32xf32>
    %396 = arith.addf %395, %394 : vector<8x32xf32>
    %397 = arith.divf %395, %396 : vector<8x32xf32>
    %398 = vector.extract_strided_slice %387 {offsets = [0, 32], sizes = [8, 32], strides = [1, 1]} : vector<8x96xf32> to vector<8x32xf32>
    %399 = vector.extract_strided_slice %389 {offsets = [0, 32], sizes = [8, 32], strides = [1, 1]} : vector<8x64xf32> to vector<8x32xf32>
    %400 = arith.addf %398, %399 : vector<8x32xf32>
    %401 = vector.broadcast %385 : vector<1x32xf32> to vector<8x32xf32>
    %402 = arith.subf %400, %401 : vector<8x32xf32>
    %403 = arith.negf %402 : vector<8x32xf32>
    %404 = math.exp %403 : vector<8x32xf32>
    %cst_219 = arith.constant 1.000000e+00 : f32
    %405 = vector.broadcast %cst_219 : f32 to vector<8x32xf32>
    %406 = arith.addf %405, %404 : vector<8x32xf32>
    %407 = arith.divf %405, %406 : vector<8x32xf32>
    %408 = vector.extract_strided_slice %387 {offsets = [0, 64], sizes = [8, 32], strides = [1, 1]} : vector<8x96xf32> to vector<8x32xf32>
    %409 = arith.mulf %397, %359 : vector<8x32xf32>
    %410 = arith.truncf %409 : vector<8x32xf32> to vector<8x32xbf16>
    %cst_220 = arith.constant dense<0.000000e+00> : vector<8x32xf32>
    %411 = tpu.matmul %410, %383, %cst_220 {dimension_numbers = #tpu.dot_dimension_numbers<[1], [0], [0], [1], [0, 0, 1, 1], [], []>} : vector<8x32xbf16>, vector<32x32xbf16>, vector<8x32xf32> -> vector<8x32xf32>
    %412 = arith.addf %408, %411 : vector<8x32xf32>
    %413 = math.tanh %412 : vector<8x32xf32>
    %cst_221 = arith.constant 1.000000e+00 : f32
    %414 = vector.broadcast %cst_221 : f32 to vector<8x32xf32>
    %415 = arith.subf %414, %407 : vector<8x32xf32>
    %416 = arith.mulf %415, %359 : vector<8x32xf32>
    %417 = arith.mulf %407, %413 : vector<8x32xf32>
    %418 = arith.addf %416, %417 : vector<8x32xf32>
    %c1_222 = arith.constant 1 : index
    %c0_223 = arith.constant 0 : index
    %c0_224 = arith.constant 0 : index
    %c0_225 = arith.constant 0 : index
    %419 = vector.load %arg5[%c1_222, %c0_223, %c0_224, %c0_225] : memref<2x3x1x32xf32, #tpu.memory_space<vmem>>, vector<1x1x1x32xf32>
    %420 = vector.shape_cast %419 : vector<1x1x1x32xf32> to vector<1x32xf32>
    %c1_226 = arith.constant 1 : index
    %c0_227 = arith.constant 0 : index
    %c0_228 = arith.constant 0 : index
    %c0_229 = arith.constant 0 : index
    %421 = vector.load %arg6[%c1_226, %c0_227, %c0_228, %c0_229] : memref<2x3x1x32xf32, #tpu.memory_space<vmem>>, vector<1x1x1x32xf32>
    %422 = vector.shape_cast %421 : vector<1x1x1x32xf32> to vector<1x32xf32>
    %cst_230 = arith.constant dense<0.000000e+00> : vector<8xf32>
    %423 = vector.multi_reduction <add>, %418, %cst_230 [1] : vector<8x32xf32> to vector<8xf32>
    %424 = vector.shape_cast %423 : vector<8xf32> to vector<8x1xf32>
    %cst_231 = arith.constant 3.200000e+01 : f32
    %425 = vector.broadcast %cst_231 : f32 to vector<8x1xf32>
    %426 = arith.divf %424, %425 : vector<8x1xf32>
    %427 = vector.broadcast %426 : vector<8x1xf32> to vector<8x32xf32>
    %428 = arith.subf %418, %427 : vector<8x32xf32>
    %429 = arith.mulf %428, %428 : vector<8x32xf32>
    %cst_232 = arith.constant dense<0.000000e+00> : vector<8xf32>
    %430 = vector.multi_reduction <add>, %429, %cst_232 [1] : vector<8x32xf32> to vector<8xf32>
    %431 = vector.shape_cast %430 : vector<8xf32> to vector<8x1xf32>
    %cst_233 = arith.constant 3.200000e+01 : f32
    %432 = vector.broadcast %cst_233 : f32 to vector<8x1xf32>
    %433 = arith.divf %431, %432 : vector<8x1xf32>
    %434 = vector.broadcast %426 : vector<8x1xf32> to vector<8x32xf32>
    %435 = arith.subf %418, %434 : vector<8x32xf32>
    %cst_234 = arith.constant 9.99999974E-6 : f32
    %436 = vector.broadcast %cst_234 : f32 to vector<8x1xf32>
    %437 = arith.addf %433, %436 : vector<8x1xf32>
    %438 = math.rsqrt %437 : vector<8x1xf32>
    %439 = vector.broadcast %438 : vector<8x1xf32> to vector<8x32xf32>
    %440 = arith.mulf %435, %439 : vector<8x32xf32>
    %441 = vector.broadcast %420 : vector<1x32xf32> to vector<8x32xf32>
    %442 = arith.mulf %440, %441 : vector<8x32xf32>
    %443 = vector.broadcast %422 : vector<1x32xf32> to vector<8x32xf32>
    %444 = arith.addf %442, %443 : vector<8x32xf32>
    %c1_235 = arith.constant 1 : index
    %c0_236 = arith.constant 0 : index
    %c0_237 = arith.constant 0 : index
    %c0_238 = arith.constant 0 : index
    %445 = vector.load %arg7[%c1_235, %c0_236, %c0_237, %c0_238] : memref<2x2x32x32xbf16, #tpu.memory_space<vmem>>, vector<1x1x32x32xbf16>
    %446 = vector.shape_cast %445 : vector<1x1x32x32xbf16> to vector<32x32xbf16>
    %c1_239 = arith.constant 1 : index
    %c0_240 = arith.constant 0 : index
    %c0_241 = arith.constant 0 : index
    %c0_242 = arith.constant 0 : index
    %447 = vector.load %arg8[%c1_239, %c0_240, %c0_241, %c0_242] : memref<2x2x1x32xf32, #tpu.memory_space<vmem>>, vector<1x1x1x32xf32>
    %448 = vector.shape_cast %447 : vector<1x1x1x32xf32> to vector<1x32xf32>
    %c1_243 = arith.constant 1 : index
    %c0_244 = arith.constant 0 : index
    %c0_245 = arith.constant 0 : index
    %c0_246 = arith.constant 0 : index
    %449 = vector.load %arg9[%c1_243, %c0_244, %c0_245, %c0_246] : memref<2x2x32x64xbf16, #tpu.memory_space<vmem>>, vector<1x1x32x64xbf16>
    %450 = vector.shape_cast %449 : vector<1x1x32x64xbf16> to vector<32x64xbf16>
    %c1_247 = arith.constant 1 : index
    %c0_248 = arith.constant 0 : index
    %c0_249 = arith.constant 0 : index
    %c0_250 = arith.constant 0 : index
    %451 = vector.load %arg10[%c1_247, %c0_248, %c0_249, %c0_250] : memref<2x2x1x64xf32, #tpu.memory_space<vmem>>, vector<1x1x1x64xf32>
    %452 = vector.shape_cast %451 : vector<1x1x1x64xf32> to vector<1x64xf32>
    %c1_251 = arith.constant 1 : index
    %c0_252 = arith.constant 0 : index
    %c0_253 = arith.constant 0 : index
    %c0_254 = arith.constant 0 : index
    %453 = vector.load %arg11[%c1_251, %c0_252, %c0_253, %c0_254] : memref<2x2x32x32xbf16, #tpu.memory_space<vmem>>, vector<1x1x32x32xbf16>
    %454 = vector.shape_cast %453 : vector<1x1x32x32xbf16> to vector<32x32xbf16>
    %c1_255 = arith.constant 1 : index
    %c0_256 = arith.constant 0 : index
    %c0_257 = arith.constant 0 : index
    %c0_258 = arith.constant 0 : index
    %455 = vector.load %arg12[%c1_255, %c0_256, %c0_257, %c0_258] : memref<2x2x1x32xf32, #tpu.memory_space<vmem>>, vector<1x1x1x32xf32>
    %456 = vector.shape_cast %455 : vector<1x1x1x32xf32> to vector<1x32xf32>
    %457 = arith.truncf %444 : vector<8x32xf32> to vector<8x32xbf16>
    %cst_259 = arith.constant dense<0.000000e+00> : vector<8x32xf32>
    %458 = tpu.matmul %457, %446, %cst_259 {dimension_numbers = #tpu.dot_dimension_numbers<[1], [0], [0], [1], [0, 0, 1, 1], [], []>} : vector<8x32xbf16>, vector<32x32xbf16>, vector<8x32xf32> -> vector<8x32xf32>
    %459 = vector.broadcast %448 : vector<1x32xf32> to vector<8x32xf32>
    %460 = arith.addf %458, %459 : vector<8x32xf32>
    %cst_260 = arith.constant 0.353553385 : f32
    %461 = vector.broadcast %cst_260 : f32 to vector<8x32xf32>
    %462 = arith.mulf %460, %461 : vector<8x32xf32>
    %463 = arith.truncf %444 : vector<8x32xf32> to vector<8x32xbf16>
    %cst_261 = arith.constant dense<0.000000e+00> : vector<8x64xf32>
    %464 = tpu.matmul %463, %450, %cst_261 {dimension_numbers = #tpu.dot_dimension_numbers<[1], [0], [0], [1], [0, 0, 1, 1], [], []>} : vector<8x32xbf16>, vector<32x64xbf16>, vector<8x64xf32> -> vector<8x64xf32>
    %465 = vector.broadcast %452 : vector<1x64xf32> to vector<8x64xf32>
    %466 = arith.addf %464, %465 : vector<8x64xf32>
    %467 = vector.extract_strided_slice %466 {offsets = [0, 0], sizes = [8, 32], strides = [1, 1]} : vector<8x64xf32> to vector<8x32xf32>
    %468 = vector.extract_strided_slice %466 {offsets = [0, 32], sizes = [8, 32], strides = [1, 1]} : vector<8x64xf32> to vector<8x32xf32>
    %469 = vector.extract_strided_slice %462 {offsets = [0, 0], sizes = [8, 8], strides = [1, 1]} : vector<8x32xf32> to vector<8x8xf32>
    %470 = vector.extract_strided_slice %467 {offsets = [0, 0], sizes = [8, 8], strides = [1, 1]} : vector<8x32xf32> to vector<8x8xf32>
    "tpu.trace_start"() <{level = 10 : i32, message = "qd,kd->qk"}> : () -> ()
    %cst_262 = arith.constant dense<0.000000e+00> : vector<8x8xf32>
    %471 = tpu.matmul %469, %470, %cst_262 {dimension_numbers = #tpu.dot_dimension_numbers<[1], [1], [0], [0], [0, 0, 1, 0], [], []>} : vector<8x8xf32>, vector<8x8xf32>, vector<8x8xf32> -> vector<8x8xf32>
    "tpu.trace_stop"() : () -> ()
    %472 = arith.addf %471, %6 : vector<8x8xf32>
    %cst_263 = arith.constant dense<0xFF800000> : vector<8xf32>
    %473 = vector.multi_reduction <maximumf>, %472, %cst_263 [1] : vector<8x8xf32> to vector<8xf32>
    %474 = vector.shape_cast %473 : vector<8xf32> to vector<8x1xf32>
    %475 = vector.broadcast %474 : vector<8x1xf32> to vector<8x8xf32>
    %476 = arith.subf %472, %475 : vector<8x8xf32>
    %477 = math.exp %476 : vector<8x8xf32>
    %cst_264 = arith.constant dense<0.000000e+00> : vector<8xf32>
    %478 = vector.multi_reduction <add>, %477, %cst_264 [1] : vector<8x8xf32> to vector<8xf32>
    %479 = vector.shape_cast %478 : vector<8xf32> to vector<8x1xf32>
    %480 = vector.broadcast %479 : vector<8x1xf32> to vector<8x8xf32>
    %481 = arith.divf %477, %480 : vector<8x8xf32>
    %482 = vector.extract_strided_slice %468 {offsets = [0, 0], sizes = [8, 8], strides = [1, 1]} : vector<8x32xf32> to vector<8x8xf32>
    %cst_265 = arith.constant dense<0.000000e+00> : vector<8x8xf32>
    %483 = tpu.matmul %481, %482, %cst_265 {dimension_numbers = #tpu.dot_dimension_numbers<[1], [0], [0], [1], [0, 0, 1, 1], [], []>} : vector<8x8xf32>, vector<8x8xf32>, vector<8x8xf32> -> vector<8x8xf32>
    %484 = vector.extract_strided_slice %462 {offsets = [0, 8], sizes = [8, 8], strides = [1, 1]} : vector<8x32xf32> to vector<8x8xf32>
    %485 = vector.extract_strided_slice %467 {offsets = [0, 8], sizes = [8, 8], strides = [1, 1]} : vector<8x32xf32> to vector<8x8xf32>
    "tpu.trace_start"() <{level = 10 : i32, message = "qd,kd->qk"}> : () -> ()
    %cst_266 = arith.constant dense<0.000000e+00> : vector<8x8xf32>
    %486 = tpu.matmul %484, %485, %cst_266 {dimension_numbers = #tpu.dot_dimension_numbers<[1], [1], [0], [0], [0, 0, 1, 0], [], []>} : vector<8x8xf32>, vector<8x8xf32>, vector<8x8xf32> -> vector<8x8xf32>
    "tpu.trace_stop"() : () -> ()
    %487 = arith.addf %486, %6 : vector<8x8xf32>
    %cst_267 = arith.constant dense<0xFF800000> : vector<8xf32>
    %488 = vector.multi_reduction <maximumf>, %487, %cst_267 [1] : vector<8x8xf32> to vector<8xf32>
    %489 = vector.shape_cast %488 : vector<8xf32> to vector<8x1xf32>
    %490 = vector.broadcast %489 : vector<8x1xf32> to vector<8x8xf32>
    %491 = arith.subf %487, %490 : vector<8x8xf32>
    %492 = math.exp %491 : vector<8x8xf32>
    %cst_268 = arith.constant dense<0.000000e+00> : vector<8xf32>
    %493 = vector.multi_reduction <add>, %492, %cst_268 [1] : vector<8x8xf32> to vector<8xf32>
    %494 = vector.shape_cast %493 : vector<8xf32> to vector<8x1xf32>
    %495 = vector.broadcast %494 : vector<8x1xf32> to vector<8x8xf32>
    %496 = arith.divf %492, %495 : vector<8x8xf32>
    %497 = vector.extract_strided_slice %468 {offsets = [0, 8], sizes = [8, 8], strides = [1, 1]} : vector<8x32xf32> to vector<8x8xf32>
    %cst_269 = arith.constant dense<0.000000e+00> : vector<8x8xf32>
    %498 = tpu.matmul %496, %497, %cst_269 {dimension_numbers = #tpu.dot_dimension_numbers<[1], [0], [0], [1], [0, 0, 1, 1], [], []>} : vector<8x8xf32>, vector<8x8xf32>, vector<8x8xf32> -> vector<8x8xf32>
    %499 = vector.extract_strided_slice %462 {offsets = [0, 16], sizes = [8, 8], strides = [1, 1]} : vector<8x32xf32> to vector<8x8xf32>
    %500 = vector.extract_strided_slice %467 {offsets = [0, 16], sizes = [8, 8], strides = [1, 1]} : vector<8x32xf32> to vector<8x8xf32>
    "tpu.trace_start"() <{level = 10 : i32, message = "qd,kd->qk"}> : () -> ()
    %cst_270 = arith.constant dense<0.000000e+00> : vector<8x8xf32>
    %501 = tpu.matmul %499, %500, %cst_270 {dimension_numbers = #tpu.dot_dimension_numbers<[1], [1], [0], [0], [0, 0, 1, 0], [], []>} : vector<8x8xf32>, vector<8x8xf32>, vector<8x8xf32> -> vector<8x8xf32>
    "tpu.trace_stop"() : () -> ()
    %502 = arith.addf %501, %6 : vector<8x8xf32>
    %cst_271 = arith.constant dense<0xFF800000> : vector<8xf32>
    %503 = vector.multi_reduction <maximumf>, %502, %cst_271 [1] : vector<8x8xf32> to vector<8xf32>
    %504 = vector.shape_cast %503 : vector<8xf32> to vector<8x1xf32>
    %505 = vector.broadcast %504 : vector<8x1xf32> to vector<8x8xf32>
    %506 = arith.subf %502, %505 : vector<8x8xf32>
    %507 = math.exp %506 : vector<8x8xf32>
    %cst_272 = arith.constant dense<0.000000e+00> : vector<8xf32>
    %508 = vector.multi_reduction <add>, %507, %cst_272 [1] : vector<8x8xf32> to vector<8xf32>
    %509 = vector.shape_cast %508 : vector<8xf32> to vector<8x1xf32>
    %510 = vector.broadcast %509 : vector<8x1xf32> to vector<8x8xf32>
    %511 = arith.divf %507, %510 : vector<8x8xf32>
    %512 = vector.extract_strided_slice %468 {offsets = [0, 16], sizes = [8, 8], strides = [1, 1]} : vector<8x32xf32> to vector<8x8xf32>
    %cst_273 = arith.constant dense<0.000000e+00> : vector<8x8xf32>
    %513 = tpu.matmul %511, %512, %cst_273 {dimension_numbers = #tpu.dot_dimension_numbers<[1], [0], [0], [1], [0, 0, 1, 1], [], []>} : vector<8x8xf32>, vector<8x8xf32>, vector<8x8xf32> -> vector<8x8xf32>
    %514 = vector.extract_strided_slice %462 {offsets = [0, 24], sizes = [8, 8], strides = [1, 1]} : vector<8x32xf32> to vector<8x8xf32>
    %515 = vector.extract_strided_slice %467 {offsets = [0, 24], sizes = [8, 8], strides = [1, 1]} : vector<8x32xf32> to vector<8x8xf32>
    "tpu.trace_start"() <{level = 10 : i32, message = "qd,kd->qk"}> : () -> ()
    %cst_274 = arith.constant dense<0.000000e+00> : vector<8x8xf32>
    %516 = tpu.matmul %514, %515, %cst_274 {dimension_numbers = #tpu.dot_dimension_numbers<[1], [1], [0], [0], [0, 0, 1, 0], [], []>} : vector<8x8xf32>, vector<8x8xf32>, vector<8x8xf32> -> vector<8x8xf32>
    "tpu.trace_stop"() : () -> ()
    %517 = arith.addf %516, %6 : vector<8x8xf32>
    %cst_275 = arith.constant dense<0xFF800000> : vector<8xf32>
    %518 = vector.multi_reduction <maximumf>, %517, %cst_275 [1] : vector<8x8xf32> to vector<8xf32>
    %519 = vector.shape_cast %518 : vector<8xf32> to vector<8x1xf32>
    %520 = vector.broadcast %519 : vector<8x1xf32> to vector<8x8xf32>
    %521 = arith.subf %517, %520 : vector<8x8xf32>
    %522 = math.exp %521 : vector<8x8xf32>
    %cst_276 = arith.constant dense<0.000000e+00> : vector<8xf32>
    %523 = vector.multi_reduction <add>, %522, %cst_276 [1] : vector<8x8xf32> to vector<8xf32>
    %524 = vector.shape_cast %523 : vector<8xf32> to vector<8x1xf32>
    %525 = vector.broadcast %524 : vector<8x1xf32> to vector<8x8xf32>
    %526 = arith.divf %522, %525 : vector<8x8xf32>
    %527 = vector.extract_strided_slice %468 {offsets = [0, 24], sizes = [8, 8], strides = [1, 1]} : vector<8x32xf32> to vector<8x8xf32>
    %cst_277 = arith.constant dense<0.000000e+00> : vector<8x8xf32>
    %528 = tpu.matmul %526, %527, %cst_277 {dimension_numbers = #tpu.dot_dimension_numbers<[1], [0], [0], [1], [0, 0, 1, 1], [], []>} : vector<8x8xf32>, vector<8x8xf32>, vector<8x8xf32> -> vector<8x8xf32>
    %529 = tpu.concatenate %483, %498, %513, %528 in 1 : vector<8x8xf32>, vector<8x8xf32>, vector<8x8xf32>, vector<8x8xf32> -> vector<8x32xf32>
    %530 = arith.truncf %529 : vector<8x32xf32> to vector<8x32xbf16>
    %cst_278 = arith.constant dense<0.000000e+00> : vector<8x32xf32>
    %531 = tpu.matmul %530, %454, %cst_278 {dimension_numbers = #tpu.dot_dimension_numbers<[1], [0], [0], [1], [0, 0, 1, 1], [], []>} : vector<8x32xbf16>, vector<32x32xbf16>, vector<8x32xf32> -> vector<8x32xf32>
    %532 = vector.broadcast %456 : vector<1x32xf32> to vector<8x32xf32>
    %533 = arith.addf %531, %532 : vector<8x32xf32>
    %c1_279 = arith.constant 1 : index
    %c0_280 = arith.constant 0 : index
    %c0_281 = arith.constant 0 : index
    %c0_282 = arith.constant 0 : index
    %534 = vector.load %arg13[%c1_279, %c0_280, %c0_281, %c0_282] : memref<2x3x32x96xbf16, #tpu.memory_space<vmem>>, vector<1x1x32x96xbf16>
    %535 = vector.shape_cast %534 : vector<1x1x32x96xbf16> to vector<32x96xbf16>
    %c1_283 = arith.constant 1 : index
    %c0_284 = arith.constant 0 : index
    %c0_285 = arith.constant 0 : index
    %c0_286 = arith.constant 0 : index
    %536 = vector.load %arg14[%c1_283, %c0_284, %c0_285, %c0_286] : memref<2x3x32x64xbf16, #tpu.memory_space<vmem>>, vector<1x1x32x64xbf16>
    %537 = vector.shape_cast %536 : vector<1x1x32x64xbf16> to vector<32x64xbf16>
    %c1_287 = arith.constant 1 : index
    %c0_288 = arith.constant 0 : index
    %c0_289 = arith.constant 0 : index
    %c0_290 = arith.constant 0 : index
    %538 = vector.load %arg15[%c1_287, %c0_288, %c0_289, %c0_290] : memref<2x3x32x32xbf16, #tpu.memory_space<vmem>>, vector<1x1x32x32xbf16>
    %539 = vector.shape_cast %538 : vector<1x1x32x32xbf16> to vector<32x32xbf16>
    %c1_291 = arith.constant 1 : index
    %c0_292 = arith.constant 0 : index
    %c0_293 = arith.constant 0 : index
    %c0_294 = arith.constant 0 : index
    %540 = vector.load %arg16[%c1_291, %c0_292, %c0_293, %c0_294] : memref<2x3x1x32xf32, #tpu.memory_space<vmem>>, vector<1x1x1x32xf32>
    %541 = vector.shape_cast %540 : vector<1x1x1x32xf32> to vector<1x32xf32>
    %542 = arith.truncf %533 : vector<8x32xf32> to vector<8x32xbf16>
    %cst_295 = arith.constant dense<0.000000e+00> : vector<8x96xf32>
    %543 = tpu.matmul %542, %535, %cst_295 {dimension_numbers = #tpu.dot_dimension_numbers<[1], [0], [0], [1], [0, 0, 1, 1], [], []>} : vector<8x32xbf16>, vector<32x96xbf16>, vector<8x96xf32> -> vector<8x96xf32>
    %544 = arith.truncf %444 : vector<8x32xf32> to vector<8x32xbf16>
    %cst_296 = arith.constant dense<0.000000e+00> : vector<8x64xf32>
    %545 = tpu.matmul %544, %537, %cst_296 {dimension_numbers = #tpu.dot_dimension_numbers<[1], [0], [0], [1], [0, 0, 1, 1], [], []>} : vector<8x32xbf16>, vector<32x64xbf16>, vector<8x64xf32> -> vector<8x64xf32>
    %546 = vector.extract_strided_slice %543 {offsets = [0, 0], sizes = [8, 32], strides = [1, 1]} : vector<8x96xf32> to vector<8x32xf32>
    %547 = vector.extract_strided_slice %545 {offsets = [0, 0], sizes = [8, 32], strides = [1, 1]} : vector<8x64xf32> to vector<8x32xf32>
    %548 = arith.addf %546, %547 : vector<8x32xf32>
    %549 = arith.negf %548 : vector<8x32xf32>
    %550 = math.exp %549 : vector<8x32xf32>
    %cst_297 = arith.constant 1.000000e+00 : f32
    %551 = vector.broadcast %cst_297 : f32 to vector<8x32xf32>
    %552 = arith.addf %551, %550 : vector<8x32xf32>
    %553 = arith.divf %551, %552 : vector<8x32xf32>
    %554 = vector.extract_strided_slice %543 {offsets = [0, 32], sizes = [8, 32], strides = [1, 1]} : vector<8x96xf32> to vector<8x32xf32>
    %555 = vector.extract_strided_slice %545 {offsets = [0, 32], sizes = [8, 32], strides = [1, 1]} : vector<8x64xf32> to vector<8x32xf32>
    %556 = arith.addf %554, %555 : vector<8x32xf32>
    %557 = vector.broadcast %541 : vector<1x32xf32> to vector<8x32xf32>
    %558 = arith.subf %556, %557 : vector<8x32xf32>
    %559 = arith.negf %558 : vector<8x32xf32>
    %560 = math.exp %559 : vector<8x32xf32>
    %cst_298 = arith.constant 1.000000e+00 : f32
    %561 = vector.broadcast %cst_298 : f32 to vector<8x32xf32>
    %562 = arith.addf %561, %560 : vector<8x32xf32>
    %563 = arith.divf %561, %562 : vector<8x32xf32>
    %564 = vector.extract_strided_slice %543 {offsets = [0, 64], sizes = [8, 32], strides = [1, 1]} : vector<8x96xf32> to vector<8x32xf32>
    %565 = arith.mulf %553, %444 : vector<8x32xf32>
    %566 = arith.truncf %565 : vector<8x32xf32> to vector<8x32xbf16>
    %cst_299 = arith.constant dense<0.000000e+00> : vector<8x32xf32>
    %567 = tpu.matmul %566, %539, %cst_299 {dimension_numbers = #tpu.dot_dimension_numbers<[1], [0], [0], [1], [0, 0, 1, 1], [], []>} : vector<8x32xbf16>, vector<32x32xbf16>, vector<8x32xf32> -> vector<8x32xf32>
    %568 = arith.addf %564, %567 : vector<8x32xf32>
    %569 = math.tanh %568 : vector<8x32xf32>
    %cst_300 = arith.constant 1.000000e+00 : f32
    %570 = vector.broadcast %cst_300 : f32 to vector<8x32xf32>
    %571 = arith.subf %570, %563 : vector<8x32xf32>
    %572 = arith.mulf %571, %444 : vector<8x32xf32>
    %573 = arith.mulf %563, %569 : vector<8x32xf32>
    %574 = arith.addf %572, %573 : vector<8x32xf32>
    %c1_301 = arith.constant 1 : index
    %c1_302 = arith.constant 1 : index
    %c0_303 = arith.constant 0 : index
    %c0_304 = arith.constant 0 : index
    %575 = vector.load %arg5[%c1_301, %c1_302, %c0_303, %c0_304] : memref<2x3x1x32xf32, #tpu.memory_space<vmem>>, vector<1x1x1x32xf32>
    %576 = vector.shape_cast %575 : vector<1x1x1x32xf32> to vector<1x32xf32>
    %c1_305 = arith.constant 1 : index
    %c1_306 = arith.constant 1 : index
    %c0_307 = arith.constant 0 : index
    %c0_308 = arith.constant 0 : index
    %577 = vector.load %arg6[%c1_305, %c1_306, %c0_307, %c0_308] : memref<2x3x1x32xf32, #tpu.memory_space<vmem>>, vector<1x1x1x32xf32>
    %578 = vector.shape_cast %577 : vector<1x1x1x32xf32> to vector<1x32xf32>
    %cst_309 = arith.constant dense<0.000000e+00> : vector<8xf32>
    %579 = vector.multi_reduction <add>, %574, %cst_309 [1] : vector<8x32xf32> to vector<8xf32>
    %580 = vector.shape_cast %579 : vector<8xf32> to vector<8x1xf32>
    %cst_310 = arith.constant 3.200000e+01 : f32
    %581 = vector.broadcast %cst_310 : f32 to vector<8x1xf32>
    %582 = arith.divf %580, %581 : vector<8x1xf32>
    %583 = vector.broadcast %582 : vector<8x1xf32> to vector<8x32xf32>
    %584 = arith.subf %574, %583 : vector<8x32xf32>
    %585 = arith.mulf %584, %584 : vector<8x32xf32>
    %cst_311 = arith.constant dense<0.000000e+00> : vector<8xf32>
    %586 = vector.multi_reduction <add>, %585, %cst_311 [1] : vector<8x32xf32> to vector<8xf32>
    %587 = vector.shape_cast %586 : vector<8xf32> to vector<8x1xf32>
    %cst_312 = arith.constant 3.200000e+01 : f32
    %588 = vector.broadcast %cst_312 : f32 to vector<8x1xf32>
    %589 = arith.divf %587, %588 : vector<8x1xf32>
    %590 = vector.broadcast %582 : vector<8x1xf32> to vector<8x32xf32>
    %591 = arith.subf %574, %590 : vector<8x32xf32>
    %cst_313 = arith.constant 9.99999974E-6 : f32
    %592 = vector.broadcast %cst_313 : f32 to vector<8x1xf32>
    %593 = arith.addf %589, %592 : vector<8x1xf32>
    %594 = math.rsqrt %593 : vector<8x1xf32>
    %595 = vector.broadcast %594 : vector<8x1xf32> to vector<8x32xf32>
    %596 = arith.mulf %591, %595 : vector<8x32xf32>
    %597 = vector.broadcast %576 : vector<1x32xf32> to vector<8x32xf32>
    %598 = arith.mulf %596, %597 : vector<8x32xf32>
    %599 = vector.broadcast %578 : vector<1x32xf32> to vector<8x32xf32>
    %600 = arith.addf %598, %599 : vector<8x32xf32>
    %c1_314 = arith.constant 1 : index
    %c1_315 = arith.constant 1 : index
    %c0_316 = arith.constant 0 : index
    %c0_317 = arith.constant 0 : index
    %601 = vector.load %arg7[%c1_314, %c1_315, %c0_316, %c0_317] : memref<2x2x32x32xbf16, #tpu.memory_space<vmem>>, vector<1x1x32x32xbf16>
    %602 = vector.shape_cast %601 : vector<1x1x32x32xbf16> to vector<32x32xbf16>
    %c1_318 = arith.constant 1 : index
    %c1_319 = arith.constant 1 : index
    %c0_320 = arith.constant 0 : index
    %c0_321 = arith.constant 0 : index
    %603 = vector.load %arg8[%c1_318, %c1_319, %c0_320, %c0_321] : memref<2x2x1x32xf32, #tpu.memory_space<vmem>>, vector<1x1x1x32xf32>
    %604 = vector.shape_cast %603 : vector<1x1x1x32xf32> to vector<1x32xf32>
    %c1_322 = arith.constant 1 : index
    %c1_323 = arith.constant 1 : index
    %c0_324 = arith.constant 0 : index
    %c0_325 = arith.constant 0 : index
    %605 = vector.load %arg9[%c1_322, %c1_323, %c0_324, %c0_325] : memref<2x2x32x64xbf16, #tpu.memory_space<vmem>>, vector<1x1x32x64xbf16>
    %606 = vector.shape_cast %605 : vector<1x1x32x64xbf16> to vector<32x64xbf16>
    %c1_326 = arith.constant 1 : index
    %c1_327 = arith.constant 1 : index
    %c0_328 = arith.constant 0 : index
    %c0_329 = arith.constant 0 : index
    %607 = vector.load %arg10[%c1_326, %c1_327, %c0_328, %c0_329] : memref<2x2x1x64xf32, #tpu.memory_space<vmem>>, vector<1x1x1x64xf32>
    %608 = vector.shape_cast %607 : vector<1x1x1x64xf32> to vector<1x64xf32>
    %c1_330 = arith.constant 1 : index
    %c1_331 = arith.constant 1 : index
    %c0_332 = arith.constant 0 : index
    %c0_333 = arith.constant 0 : index
    %609 = vector.load %arg11[%c1_330, %c1_331, %c0_332, %c0_333] : memref<2x2x32x32xbf16, #tpu.memory_space<vmem>>, vector<1x1x32x32xbf16>
    %610 = vector.shape_cast %609 : vector<1x1x32x32xbf16> to vector<32x32xbf16>
    %c1_334 = arith.constant 1 : index
    %c1_335 = arith.constant 1 : index
    %c0_336 = arith.constant 0 : index
    %c0_337 = arith.constant 0 : index
    %611 = vector.load %arg12[%c1_334, %c1_335, %c0_336, %c0_337] : memref<2x2x1x32xf32, #tpu.memory_space<vmem>>, vector<1x1x1x32xf32>
    %612 = vector.shape_cast %611 : vector<1x1x1x32xf32> to vector<1x32xf32>
    %613 = arith.truncf %600 : vector<8x32xf32> to vector<8x32xbf16>
    %cst_338 = arith.constant dense<0.000000e+00> : vector<8x32xf32>
    %614 = tpu.matmul %613, %602, %cst_338 {dimension_numbers = #tpu.dot_dimension_numbers<[1], [0], [0], [1], [0, 0, 1, 1], [], []>} : vector<8x32xbf16>, vector<32x32xbf16>, vector<8x32xf32> -> vector<8x32xf32>
    %615 = vector.broadcast %604 : vector<1x32xf32> to vector<8x32xf32>
    %616 = arith.addf %614, %615 : vector<8x32xf32>
    %cst_339 = arith.constant 0.353553385 : f32
    %617 = vector.broadcast %cst_339 : f32 to vector<8x32xf32>
    %618 = arith.mulf %616, %617 : vector<8x32xf32>
    %619 = arith.truncf %15 : vector<10x32xf32> to vector<10x32xbf16>
    %cst_340 = arith.constant dense<0.000000e+00> : vector<10x64xf32>
    %620 = tpu.matmul %619, %606, %cst_340 {dimension_numbers = #tpu.dot_dimension_numbers<[1], [0], [0], [1], [0, 0, 1, 1], [], []>} : vector<10x32xbf16>, vector<32x64xbf16>, vector<10x64xf32> -> vector<10x64xf32>
    %621 = vector.broadcast %608 : vector<1x64xf32> to vector<10x64xf32>
    %622 = arith.addf %620, %621 : vector<10x64xf32>
    %623 = vector.extract_strided_slice %622 {offsets = [0, 0], sizes = [10, 32], strides = [1, 1]} : vector<10x64xf32> to vector<10x32xf32>
    %624 = vector.extract_strided_slice %622 {offsets = [0, 32], sizes = [10, 32], strides = [1, 1]} : vector<10x64xf32> to vector<10x32xf32>
    %625 = vector.extract_strided_slice %618 {offsets = [0, 0], sizes = [8, 8], strides = [1, 1]} : vector<8x32xf32> to vector<8x8xf32>
    %626 = vector.extract_strided_slice %623 {offsets = [0, 0], sizes = [10, 8], strides = [1, 1]} : vector<10x32xf32> to vector<10x8xf32>
    "tpu.trace_start"() <{level = 10 : i32, message = "qd,kd->qk"}> : () -> ()
    %cst_341 = arith.constant dense<0.000000e+00> : vector<8x10xf32>
    %627 = tpu.matmul %625, %626, %cst_341 {dimension_numbers = #tpu.dot_dimension_numbers<[1], [1], [0], [0], [0, 0, 1, 0], [], []>} : vector<8x8xf32>, vector<10x8xf32>, vector<8x10xf32> -> vector<8x10xf32>
    "tpu.trace_stop"() : () -> ()
    %628 = vector.broadcast %13 : vector<1x10xf32> to vector<8x10xf32>
    %629 = arith.addf %627, %628 : vector<8x10xf32>
    %cst_342 = arith.constant dense<0xFF800000> : vector<8xf32>
    %630 = vector.multi_reduction <maximumf>, %629, %cst_342 [1] : vector<8x10xf32> to vector<8xf32>
    %631 = vector.shape_cast %630 : vector<8xf32> to vector<8x1xf32>
    %632 = vector.broadcast %631 : vector<8x1xf32> to vector<8x10xf32>
    %633 = arith.subf %629, %632 : vector<8x10xf32>
    %634 = math.exp %633 : vector<8x10xf32>
    %cst_343 = arith.constant dense<0.000000e+00> : vector<8xf32>
    %635 = vector.multi_reduction <add>, %634, %cst_343 [1] : vector<8x10xf32> to vector<8xf32>
    %636 = vector.shape_cast %635 : vector<8xf32> to vector<8x1xf32>
    %637 = vector.broadcast %636 : vector<8x1xf32> to vector<8x10xf32>
    %638 = arith.divf %634, %637 : vector<8x10xf32>
    %639 = vector.extract_strided_slice %624 {offsets = [0, 0], sizes = [10, 8], strides = [1, 1]} : vector<10x32xf32> to vector<10x8xf32>
    %cst_344 = arith.constant dense<0.000000e+00> : vector<8x8xf32>
    %640 = tpu.matmul %638, %639, %cst_344 {dimension_numbers = #tpu.dot_dimension_numbers<[1], [0], [0], [1], [0, 0, 1, 1], [], []>} : vector<8x10xf32>, vector<10x8xf32>, vector<8x8xf32> -> vector<8x8xf32>
    %641 = vector.extract_strided_slice %618 {offsets = [0, 8], sizes = [8, 8], strides = [1, 1]} : vector<8x32xf32> to vector<8x8xf32>
    %642 = vector.extract_strided_slice %623 {offsets = [0, 8], sizes = [10, 8], strides = [1, 1]} : vector<10x32xf32> to vector<10x8xf32>
    "tpu.trace_start"() <{level = 10 : i32, message = "qd,kd->qk"}> : () -> ()
    %cst_345 = arith.constant dense<0.000000e+00> : vector<8x10xf32>
    %643 = tpu.matmul %641, %642, %cst_345 {dimension_numbers = #tpu.dot_dimension_numbers<[1], [1], [0], [0], [0, 0, 1, 0], [], []>} : vector<8x8xf32>, vector<10x8xf32>, vector<8x10xf32> -> vector<8x10xf32>
    "tpu.trace_stop"() : () -> ()
    %644 = vector.broadcast %13 : vector<1x10xf32> to vector<8x10xf32>
    %645 = arith.addf %643, %644 : vector<8x10xf32>
    %cst_346 = arith.constant dense<0xFF800000> : vector<8xf32>
    %646 = vector.multi_reduction <maximumf>, %645, %cst_346 [1] : vector<8x10xf32> to vector<8xf32>
    %647 = vector.shape_cast %646 : vector<8xf32> to vector<8x1xf32>
    %648 = vector.broadcast %647 : vector<8x1xf32> to vector<8x10xf32>
    %649 = arith.subf %645, %648 : vector<8x10xf32>
    %650 = math.exp %649 : vector<8x10xf32>
    %cst_347 = arith.constant dense<0.000000e+00> : vector<8xf32>
    %651 = vector.multi_reduction <add>, %650, %cst_347 [1] : vector<8x10xf32> to vector<8xf32>
    %652 = vector.shape_cast %651 : vector<8xf32> to vector<8x1xf32>
    %653 = vector.broadcast %652 : vector<8x1xf32> to vector<8x10xf32>
    %654 = arith.divf %650, %653 : vector<8x10xf32>
    %655 = vector.extract_strided_slice %624 {offsets = [0, 8], sizes = [10, 8], strides = [1, 1]} : vector<10x32xf32> to vector<10x8xf32>
    %cst_348 = arith.constant dense<0.000000e+00> : vector<8x8xf32>
    %656 = tpu.matmul %654, %655, %cst_348 {dimension_numbers = #tpu.dot_dimension_numbers<[1], [0], [0], [1], [0, 0, 1, 1], [], []>} : vector<8x10xf32>, vector<10x8xf32>, vector<8x8xf32> -> vector<8x8xf32>
    %657 = vector.extract_strided_slice %618 {offsets = [0, 16], sizes = [8, 8], strides = [1, 1]} : vector<8x32xf32> to vector<8x8xf32>
    %658 = vector.extract_strided_slice %623 {offsets = [0, 16], sizes = [10, 8], strides = [1, 1]} : vector<10x32xf32> to vector<10x8xf32>
    "tpu.trace_start"() <{level = 10 : i32, message = "qd,kd->qk"}> : () -> ()
    %cst_349 = arith.constant dense<0.000000e+00> : vector<8x10xf32>
    %659 = tpu.matmul %657, %658, %cst_349 {dimension_numbers = #tpu.dot_dimension_numbers<[1], [1], [0], [0], [0, 0, 1, 0], [], []>} : vector<8x8xf32>, vector<10x8xf32>, vector<8x10xf32> -> vector<8x10xf32>
    "tpu.trace_stop"() : () -> ()
    %660 = vector.broadcast %13 : vector<1x10xf32> to vector<8x10xf32>
    %661 = arith.addf %659, %660 : vector<8x10xf32>
    %cst_350 = arith.constant dense<0xFF800000> : vector<8xf32>
    %662 = vector.multi_reduction <maximumf>, %661, %cst_350 [1] : vector<8x10xf32> to vector<8xf32>
    %663 = vector.shape_cast %662 : vector<8xf32> to vector<8x1xf32>
    %664 = vector.broadcast %663 : vector<8x1xf32> to vector<8x10xf32>
    %665 = arith.subf %661, %664 : vector<8x10xf32>
    %666 = math.exp %665 : vector<8x10xf32>
    %cst_351 = arith.constant dense<0.000000e+00> : vector<8xf32>
    %667 = vector.multi_reduction <add>, %666, %cst_351 [1] : vector<8x10xf32> to vector<8xf32>
    %668 = vector.shape_cast %667 : vector<8xf32> to vector<8x1xf32>
    %669 = vector.broadcast %668 : vector<8x1xf32> to vector<8x10xf32>
    %670 = arith.divf %666, %669 : vector<8x10xf32>
    %671 = vector.extract_strided_slice %624 {offsets = [0, 16], sizes = [10, 8], strides = [1, 1]} : vector<10x32xf32> to vector<10x8xf32>
    %cst_352 = arith.constant dense<0.000000e+00> : vector<8x8xf32>
    %672 = tpu.matmul %670, %671, %cst_352 {dimension_numbers = #tpu.dot_dimension_numbers<[1], [0], [0], [1], [0, 0, 1, 1], [], []>} : vector<8x10xf32>, vector<10x8xf32>, vector<8x8xf32> -> vector<8x8xf32>
    %673 = vector.extract_strided_slice %618 {offsets = [0, 24], sizes = [8, 8], strides = [1, 1]} : vector<8x32xf32> to vector<8x8xf32>
    %674 = vector.extract_strided_slice %623 {offsets = [0, 24], sizes = [10, 8], strides = [1, 1]} : vector<10x32xf32> to vector<10x8xf32>
    "tpu.trace_start"() <{level = 10 : i32, message = "qd,kd->qk"}> : () -> ()
    %cst_353 = arith.constant dense<0.000000e+00> : vector<8x10xf32>
    %675 = tpu.matmul %673, %674, %cst_353 {dimension_numbers = #tpu.dot_dimension_numbers<[1], [1], [0], [0], [0, 0, 1, 0], [], []>} : vector<8x8xf32>, vector<10x8xf32>, vector<8x10xf32> -> vector<8x10xf32>
    "tpu.trace_stop"() : () -> ()
    %676 = vector.broadcast %13 : vector<1x10xf32> to vector<8x10xf32>
    %677 = arith.addf %675, %676 : vector<8x10xf32>
    %cst_354 = arith.constant dense<0xFF800000> : vector<8xf32>
    %678 = vector.multi_reduction <maximumf>, %677, %cst_354 [1] : vector<8x10xf32> to vector<8xf32>
    %679 = vector.shape_cast %678 : vector<8xf32> to vector<8x1xf32>
    %680 = vector.broadcast %679 : vector<8x1xf32> to vector<8x10xf32>
    %681 = arith.subf %677, %680 : vector<8x10xf32>
    %682 = math.exp %681 : vector<8x10xf32>
    %cst_355 = arith.constant dense<0.000000e+00> : vector<8xf32>
    %683 = vector.multi_reduction <add>, %682, %cst_355 [1] : vector<8x10xf32> to vector<8xf32>
    %684 = vector.shape_cast %683 : vector<8xf32> to vector<8x1xf32>
    %685 = vector.broadcast %684 : vector<8x1xf32> to vector<8x10xf32>
    %686 = arith.divf %682, %685 : vector<8x10xf32>
    %687 = vector.extract_strided_slice %624 {offsets = [0, 24], sizes = [10, 8], strides = [1, 1]} : vector<10x32xf32> to vector<10x8xf32>
    %cst_356 = arith.constant dense<0.000000e+00> : vector<8x8xf32>
    %688 = tpu.matmul %686, %687, %cst_356 {dimension_numbers = #tpu.dot_dimension_numbers<[1], [0], [0], [1], [0, 0, 1, 1], [], []>} : vector<8x10xf32>, vector<10x8xf32>, vector<8x8xf32> -> vector<8x8xf32>
    %689 = tpu.concatenate %640, %656, %672, %688 in 1 : vector<8x8xf32>, vector<8x8xf32>, vector<8x8xf32>, vector<8x8xf32> -> vector<8x32xf32>
    %690 = arith.truncf %689 : vector<8x32xf32> to vector<8x32xbf16>
    %cst_357 = arith.constant dense<0.000000e+00> : vector<8x32xf32>
    %691 = tpu.matmul %690, %610, %cst_357 {dimension_numbers = #tpu.dot_dimension_numbers<[1], [0], [0], [1], [0, 0, 1, 1], [], []>} : vector<8x32xbf16>, vector<32x32xbf16>, vector<8x32xf32> -> vector<8x32xf32>
    %692 = vector.broadcast %612 : vector<1x32xf32> to vector<8x32xf32>
    %693 = arith.addf %691, %692 : vector<8x32xf32>
    %694 = vector.shape_cast %638 : vector<8x10xf32> to vector<1x8x10xf32>
    %695 = vector.shape_cast %654 : vector<8x10xf32> to vector<1x8x10xf32>
    %696 = vector.shape_cast %670 : vector<8x10xf32> to vector<1x8x10xf32>
    %697 = vector.shape_cast %686 : vector<8x10xf32> to vector<1x8x10xf32>
    %698 = tpu.concatenate %694, %695, %696, %697 in 0 : vector<1x8x10xf32>, vector<1x8x10xf32>, vector<1x8x10xf32>, vector<1x8x10xf32> -> vector<4x8x10xf32>
    %c0_358 = arith.constant 0 : index
    %c0_359 = arith.constant 0 : index
    %c0_360 = arith.constant 0 : index
    %c0_361 = arith.constant 0 : index
    %699 = vector.load %arg24[%c0_358, %c0_359, %c0_360, %c0_361] : memref<1x4x8x10xf32, #tpu.memory_space<vmem>>, vector<1x4x8x10xf32>
    %700 = vector.shape_cast %699 : vector<1x4x8x10xf32> to vector<4x8x10xf32>
    %701 = vector.shape_cast %698 : vector<4x8x10xf32> to vector<1x4x8x10xf32>
    tpu.vector_store %arg24[%c0_358, %c0_359, %c0_360, %c0_361], %701 {strides = array<i32>} : memref<1x4x8x10xf32, #tpu.memory_space<vmem>>, vector<1x4x8x10xf32>,
    %c1_362 = arith.constant 1 : index
    %c1_363 = arith.constant 1 : index
    %c0_364 = arith.constant 0 : index
    %c0_365 = arith.constant 0 : index
    %702 = vector.load %arg13[%c1_362, %c1_363, %c0_364, %c0_365] : memref<2x3x32x96xbf16, #tpu.memory_space<vmem>>, vector<1x1x32x96xbf16>
    %703 = vector.shape_cast %702 : vector<1x1x32x96xbf16> to vector<32x96xbf16>
    %c1_366 = arith.constant 1 : index
    %c1_367 = arith.constant 1 : index
    %c0_368 = arith.constant 0 : index
    %c0_369 = arith.constant 0 : index
    %704 = vector.load %arg14[%c1_366, %c1_367, %c0_368, %c0_369] : memref<2x3x32x64xbf16, #tpu.memory_space<vmem>>, vector<1x1x32x64xbf16>
    %705 = vector.shape_cast %704 : vector<1x1x32x64xbf16> to vector<32x64xbf16>
    %c1_370 = arith.constant 1 : index
    %c1_371 = arith.constant 1 : index
    %c0_372 = arith.constant 0 : index
    %c0_373 = arith.constant 0 : index
    %706 = vector.load %arg15[%c1_370, %c1_371, %c0_372, %c0_373] : memref<2x3x32x32xbf16, #tpu.memory_space<vmem>>, vector<1x1x32x32xbf16>
    %707 = vector.shape_cast %706 : vector<1x1x32x32xbf16> to vector<32x32xbf16>
    %c1_374 = arith.constant 1 : index
    %c1_375 = arith.constant 1 : index
    %c0_376 = arith.constant 0 : index
    %c0_377 = arith.constant 0 : index
    %708 = vector.load %arg16[%c1_374, %c1_375, %c0_376, %c0_377] : memref<2x3x1x32xf32, #tpu.memory_space<vmem>>, vector<1x1x1x32xf32>
    %709 = vector.shape_cast %708 : vector<1x1x1x32xf32> to vector<1x32xf32>
    %710 = arith.truncf %693 : vector<8x32xf32> to vector<8x32xbf16>
    %cst_378 = arith.constant dense<0.000000e+00> : vector<8x96xf32>
    %711 = tpu.matmul %710, %703, %cst_378 {dimension_numbers = #tpu.dot_dimension_numbers<[1], [0], [0], [1], [0, 0, 1, 1], [], []>} : vector<8x32xbf16>, vector<32x96xbf16>, vector<8x96xf32> -> vector<8x96xf32>
    %712 = arith.truncf %600 : vector<8x32xf32> to vector<8x32xbf16>
    %cst_379 = arith.constant dense<0.000000e+00> : vector<8x64xf32>
    %713 = tpu.matmul %712, %705, %cst_379 {dimension_numbers = #tpu.dot_dimension_numbers<[1], [0], [0], [1], [0, 0, 1, 1], [], []>} : vector<8x32xbf16>, vector<32x64xbf16>, vector<8x64xf32> -> vector<8x64xf32>
    %714 = vector.extract_strided_slice %711 {offsets = [0, 0], sizes = [8, 32], strides = [1, 1]} : vector<8x96xf32> to vector<8x32xf32>
    %715 = vector.extract_strided_slice %713 {offsets = [0, 0], sizes = [8, 32], strides = [1, 1]} : vector<8x64xf32> to vector<8x32xf32>
    %716 = arith.addf %714, %715 : vector<8x32xf32>
    %717 = arith.negf %716 : vector<8x32xf32>
    %718 = math.exp %717 : vector<8x32xf32>
    %cst_380 = arith.constant 1.000000e+00 : f32
    %719 = vector.broadcast %cst_380 : f32 to vector<8x32xf32>
    %720 = arith.addf %719, %718 : vector<8x32xf32>
    %721 = arith.divf %719, %720 : vector<8x32xf32>
    %722 = vector.extract_strided_slice %711 {offsets = [0, 32], sizes = [8, 32], strides = [1, 1]} : vector<8x96xf32> to vector<8x32xf32>
    %723 = vector.extract_strided_slice %713 {offsets = [0, 32], sizes = [8, 32], strides = [1, 1]} : vector<8x64xf32> to vector<8x32xf32>
    %724 = arith.addf %722, %723 : vector<8x32xf32>
    %725 = vector.broadcast %709 : vector<1x32xf32> to vector<8x32xf32>
    %726 = arith.subf %724, %725 : vector<8x32xf32>
    %727 = arith.negf %726 : vector<8x32xf32>
    %728 = math.exp %727 : vector<8x32xf32>
    %cst_381 = arith.constant 1.000000e+00 : f32
    %729 = vector.broadcast %cst_381 : f32 to vector<8x32xf32>
    %730 = arith.addf %729, %728 : vector<8x32xf32>
    %731 = arith.divf %729, %730 : vector<8x32xf32>
    %732 = vector.extract_strided_slice %711 {offsets = [0, 64], sizes = [8, 32], strides = [1, 1]} : vector<8x96xf32> to vector<8x32xf32>
    %733 = arith.mulf %721, %600 : vector<8x32xf32>
    %734 = arith.truncf %733 : vector<8x32xf32> to vector<8x32xbf16>
    %cst_382 = arith.constant dense<0.000000e+00> : vector<8x32xf32>
    %735 = tpu.matmul %734, %707, %cst_382 {dimension_numbers = #tpu.dot_dimension_numbers<[1], [0], [0], [1], [0, 0, 1, 1], [], []>} : vector<8x32xbf16>, vector<32x32xbf16>, vector<8x32xf32> -> vector<8x32xf32>
    %736 = arith.addf %732, %735 : vector<8x32xf32>
    %737 = math.tanh %736 : vector<8x32xf32>
    %cst_383 = arith.constant 1.000000e+00 : f32
    %738 = vector.broadcast %cst_383 : f32 to vector<8x32xf32>
    %739 = arith.subf %738, %731 : vector<8x32xf32>
    %740 = arith.mulf %739, %600 : vector<8x32xf32>
    %741 = arith.mulf %731, %737 : vector<8x32xf32>
    %742 = arith.addf %740, %741 : vector<8x32xf32>
    %c1_384 = arith.constant 1 : index
    %c2_385 = arith.constant 2 : index
    %c0_386 = arith.constant 0 : index
    %c0_387 = arith.constant 0 : index
    %743 = vector.load %arg5[%c1_384, %c2_385, %c0_386, %c0_387] : memref<2x3x1x32xf32, #tpu.memory_space<vmem>>, vector<1x1x1x32xf32>
    %744 = vector.shape_cast %743 : vector<1x1x1x32xf32> to vector<1x32xf32>
    %c1_388 = arith.constant 1 : index
    %c2_389 = arith.constant 2 : index
    %c0_390 = arith.constant 0 : index
    %c0_391 = arith.constant 0 : index
    %745 = vector.load %arg6[%c1_388, %c2_389, %c0_390, %c0_391] : memref<2x3x1x32xf32, #tpu.memory_space<vmem>>, vector<1x1x1x32xf32>
    %746 = vector.shape_cast %745 : vector<1x1x1x32xf32> to vector<1x32xf32>
    %cst_392 = arith.constant dense<0.000000e+00> : vector<8xf32>
    %747 = vector.multi_reduction <add>, %742, %cst_392 [1] : vector<8x32xf32> to vector<8xf32>
    %748 = vector.shape_cast %747 : vector<8xf32> to vector<8x1xf32>
    %cst_393 = arith.constant 3.200000e+01 : f32
    %749 = vector.broadcast %cst_393 : f32 to vector<8x1xf32>
    %750 = arith.divf %748, %749 : vector<8x1xf32>
    %751 = vector.broadcast %750 : vector<8x1xf32> to vector<8x32xf32>
    %752 = arith.subf %742, %751 : vector<8x32xf32>
    %753 = arith.mulf %752, %752 : vector<8x32xf32>
    %cst_394 = arith.constant dense<0.000000e+00> : vector<8xf32>
    %754 = vector.multi_reduction <add>, %753, %cst_394 [1] : vector<8x32xf32> to vector<8xf32>
    %755 = vector.shape_cast %754 : vector<8xf32> to vector<8x1xf32>
    %cst_395 = arith.constant 3.200000e+01 : f32
    %756 = vector.broadcast %cst_395 : f32 to vector<8x1xf32>
    %757 = arith.divf %755, %756 : vector<8x1xf32>
    %758 = vector.broadcast %750 : vector<8x1xf32> to vector<8x32xf32>
    %759 = arith.subf %742, %758 : vector<8x32xf32>
    %cst_396 = arith.constant 9.99999974E-6 : f32
    %760 = vector.broadcast %cst_396 : f32 to vector<8x1xf32>
    %761 = arith.addf %757, %760 : vector<8x1xf32>
    %762 = math.rsqrt %761 : vector<8x1xf32>
    %763 = vector.broadcast %762 : vector<8x1xf32> to vector<8x32xf32>
    %764 = arith.mulf %759, %763 : vector<8x32xf32>
    %765 = vector.broadcast %744 : vector<1x32xf32> to vector<8x32xf32>
    %766 = arith.mulf %764, %765 : vector<8x32xf32>
    %767 = vector.broadcast %746 : vector<1x32xf32> to vector<8x32xf32>
    %768 = arith.addf %766, %767 : vector<8x32xf32>
    %c1_397 = arith.constant 1 : index
    %c0_398 = arith.constant 0 : index
    %c0_399 = arith.constant 0 : index
    %769 = vector.load %arg17[%c1_397, %c0_398, %c0_399] : memref<2x32x64xbf16, #tpu.memory_space<vmem>>, vector<1x32x64xbf16>
    %770 = vector.shape_cast %769 : vector<1x32x64xbf16> to vector<32x64xbf16>
    %771 = arith.truncf %768 : vector<8x32xf32> to vector<8x32xbf16>
    %cst_400 = arith.constant dense<0.000000e+00> : vector<8x64xf32>
    %772 = tpu.matmul %771, %770, %cst_400 {dimension_numbers = #tpu.dot_dimension_numbers<[1], [0], [0], [1], [0, 0, 1, 1], [], []>} : vector<8x32xbf16>, vector<32x64xbf16>, vector<8x64xf32> -> vector<8x64xf32>
    %c1_401 = arith.constant 1 : index
    %c0_402 = arith.constant 0 : index
    %c0_403 = arith.constant 0 : index
    %773 = vector.load %arg18[%c1_401, %c0_402, %c0_403] : memref<2x1x64xf32, #tpu.memory_space<vmem>>, vector<1x1x64xf32>
    %774 = vector.shape_cast %773 : vector<1x1x64xf32> to vector<1x64xf32>
    %775 = vector.broadcast %774 : vector<1x64xf32> to vector<8x64xf32>
    %776 = arith.addf %772, %775 : vector<8x64xf32>
    %cst_404 = arith.constant 0.000000e+00 : f32
    %777 = vector.broadcast %cst_404 : f32 to vector<8x64xf32>
    %778 = arith.maximumf %776, %777 : vector<8x64xf32>
    %c1_405 = arith.constant 1 : index
    %c0_406 = arith.constant 0 : index
    %c0_407 = arith.constant 0 : index
    %779 = vector.load %arg19[%c1_405, %c0_406, %c0_407] : memref<2x64x32xbf16, #tpu.memory_space<vmem>>, vector<1x64x32xbf16>
    %780 = vector.shape_cast %779 : vector<1x64x32xbf16> to vector<64x32xbf16>
    %781 = arith.truncf %778 : vector<8x64xf32> to vector<8x64xbf16>
    %cst_408 = arith.constant dense<0.000000e+00> : vector<8x32xf32>
    %782 = tpu.matmul %781, %780, %cst_408 {dimension_numbers = #tpu.dot_dimension_numbers<[1], [0], [0], [1], [0, 0, 1, 1], [], []>} : vector<8x64xbf16>, vector<64x32xbf16>, vector<8x32xf32> -> vector<8x32xf32>
    %c1_409 = arith.constant 1 : index
    %c0_410 = arith.constant 0 : index
    %c0_411 = arith.constant 0 : index
    %783 = vector.load %arg20[%c1_409, %c0_410, %c0_411] : memref<2x1x32xf32, #tpu.memory_space<vmem>>, vector<1x1x32xf32>
    %784 = vector.shape_cast %783 : vector<1x1x32xf32> to vector<1x32xf32>
    %785 = vector.broadcast %784 : vector<1x32xf32> to vector<8x32xf32>
    %786 = arith.addf %782, %785 : vector<8x32xf32>
    %c1_412 = arith.constant 1 : index
    %c2_413 = arith.constant 2 : index
    %c0_414 = arith.constant 0 : index
    %c0_415 = arith.constant 0 : index
    %787 = vector.load %arg13[%c1_412, %c2_413, %c0_414, %c0_415] : memref<2x3x32x96xbf16, #tpu.memory_space<vmem>>, vector<1x1x32x96xbf16>
    %788 = vector.shape_cast %787 : vector<1x1x32x96xbf16> to vector<32x96xbf16>
    %c1_416 = arith.constant 1 : index
    %c2_417 = arith.constant 2 : index
    %c0_418 = arith.constant 0 : index
    %c0_419 = arith.constant 0 : index
    %789 = vector.load %arg14[%c1_416, %c2_417, %c0_418, %c0_419] : memref<2x3x32x64xbf16, #tpu.memory_space<vmem>>, vector<1x1x32x64xbf16>
    %790 = vector.shape_cast %789 : vector<1x1x32x64xbf16> to vector<32x64xbf16>
    %c1_420 = arith.constant 1 : index
    %c2_421 = arith.constant 2 : index
    %c0_422 = arith.constant 0 : index
    %c0_423 = arith.constant 0 : index
    %791 = vector.load %arg15[%c1_420, %c2_421, %c0_422, %c0_423] : memref<2x3x32x32xbf16, #tpu.memory_space<vmem>>, vector<1x1x32x32xbf16>
    %792 = vector.shape_cast %791 : vector<1x1x32x32xbf16> to vector<32x32xbf16>
    %c1_424 = arith.constant 1 : index
    %c2_425 = arith.constant 2 : index
    %c0_426 = arith.constant 0 : index
    %c0_427 = arith.constant 0 : index
    %793 = vector.load %arg16[%c1_424, %c2_425, %c0_426, %c0_427] : memref<2x3x1x32xf32, #tpu.memory_space<vmem>>, vector<1x1x1x32xf32>
    %794 = vector.shape_cast %793 : vector<1x1x1x32xf32> to vector<1x32xf32>
    %795 = arith.truncf %786 : vector<8x32xf32> to vector<8x32xbf16>
    %cst_428 = arith.constant dense<0.000000e+00> : vector<8x96xf32>
    %796 = tpu.matmul %795, %788, %cst_428 {dimension_numbers = #tpu.dot_dimension_numbers<[1], [0], [0], [1], [0, 0, 1, 1], [], []>} : vector<8x32xbf16>, vector<32x96xbf16>, vector<8x96xf32> -> vector<8x96xf32>
    %797 = arith.truncf %768 : vector<8x32xf32> to vector<8x32xbf16>
    %cst_429 = arith.constant dense<0.000000e+00> : vector<8x64xf32>
    %798 = tpu.matmul %797, %790, %cst_429 {dimension_numbers = #tpu.dot_dimension_numbers<[1], [0], [0], [1], [0, 0, 1, 1], [], []>} : vector<8x32xbf16>, vector<32x64xbf16>, vector<8x64xf32> -> vector<8x64xf32>
    %799 = vector.extract_strided_slice %796 {offsets = [0, 0], sizes = [8, 32], strides = [1, 1]} : vector<8x96xf32> to vector<8x32xf32>
    %800 = vector.extract_strided_slice %798 {offsets = [0, 0], sizes = [8, 32], strides = [1, 1]} : vector<8x64xf32> to vector<8x32xf32>
    %801 = arith.addf %799, %800 : vector<8x32xf32>
    %802 = arith.negf %801 : vector<8x32xf32>
    %803 = math.exp %802 : vector<8x32xf32>
    %cst_430 = arith.constant 1.000000e+00 : f32
    %804 = vector.broadcast %cst_430 : f32 to vector<8x32xf32>
    %805 = arith.addf %804, %803 : vector<8x32xf32>
    %806 = arith.divf %804, %805 : vector<8x32xf32>
    %807 = vector.extract_strided_slice %796 {offsets = [0, 32], sizes = [8, 32], strides = [1, 1]} : vector<8x96xf32> to vector<8x32xf32>
    %808 = vector.extract_strided_slice %798 {offsets = [0, 32], sizes = [8, 32], strides = [1, 1]} : vector<8x64xf32> to vector<8x32xf32>
    %809 = arith.addf %807, %808 : vector<8x32xf32>
    %810 = vector.broadcast %794 : vector<1x32xf32> to vector<8x32xf32>
    %811 = arith.subf %809, %810 : vector<8x32xf32>
    %812 = arith.negf %811 : vector<8x32xf32>
    %813 = math.exp %812 : vector<8x32xf32>
    %cst_431 = arith.constant 1.000000e+00 : f32
    %814 = vector.broadcast %cst_431 : f32 to vector<8x32xf32>
    %815 = arith.addf %814, %813 : vector<8x32xf32>
    %816 = arith.divf %814, %815 : vector<8x32xf32>
    %817 = vector.extract_strided_slice %796 {offsets = [0, 64], sizes = [8, 32], strides = [1, 1]} : vector<8x96xf32> to vector<8x32xf32>
    %818 = arith.mulf %806, %768 : vector<8x32xf32>
    %819 = arith.truncf %818 : vector<8x32xf32> to vector<8x32xbf16>
    %cst_432 = arith.constant dense<0.000000e+00> : vector<8x32xf32>
    %820 = tpu.matmul %819, %792, %cst_432 {dimension_numbers = #tpu.dot_dimension_numbers<[1], [0], [0], [1], [0, 0, 1, 1], [], []>} : vector<8x32xbf16>, vector<32x32xbf16>, vector<8x32xf32> -> vector<8x32xf32>
    %821 = arith.addf %817, %820 : vector<8x32xf32>
    %822 = math.tanh %821 : vector<8x32xf32>
    %cst_433 = arith.constant 1.000000e+00 : f32
    %823 = vector.broadcast %cst_433 : f32 to vector<8x32xf32>
    %824 = arith.subf %823, %816 : vector<8x32xf32>
    %825 = arith.mulf %824, %768 : vector<8x32xf32>
    %826 = arith.mulf %816, %822 : vector<8x32xf32>
    %827 = arith.addf %825, %826 : vector<8x32xf32>
    %c0_434 = arith.constant 0 : index
    %c0_435 = arith.constant 0 : index
    %828 = vector.load %arg21[%c0_434, %c0_435] : memref<32x20xbf16, #tpu.memory_space<vmem>>, vector<32x20xbf16>
    %829 = arith.truncf %827 : vector<8x32xf32> to vector<8x32xbf16>
    %cst_436 = arith.constant dense<0.000000e+00> : vector<8x20xf32>
    %830 = tpu.matmul %829, %828, %cst_436 {dimension_numbers = #tpu.dot_dimension_numbers<[1], [0], [0], [1], [0, 0, 1, 1], [], []>} : vector<8x32xbf16>, vector<32x20xbf16>, vector<8x20xf32> -> vector<8x20xf32>
    %c0_437 = arith.constant 0 : index
    %c0_438 = arith.constant 0 : index
    %831 = vector.load %arg22[%c0_437, %c0_438] : memref<1x20xf32, #tpu.memory_space<vmem>>, vector<1x20xf32>
    %832 = vector.broadcast %831 : vector<1x20xf32> to vector<8x20xf32>
    %833 = arith.addf %830, %832 : vector<8x20xf32>
    %c0_439 = arith.constant 0 : index
    %c0_440 = arith.constant 0 : index
    %c0_441 = arith.constant 0 : index
    %834 = vector.load %arg23[%c0_439, %c0_440, %c0_441] : memref<1x8x20xf32, #tpu.memory_space<vmem>>, vector<1x8x20xf32>
    %835 = vector.shape_cast %834 : vector<1x8x20xf32> to vector<8x20xf32>
    %836 = vector.shape_cast %833 : vector<8x20xf32> to vector<1x8x20xf32>
    tpu.vector_store %arg23[%c0_439, %c0_440, %c0_441], %836 {strides = array<i32>} : memref<1x8x20xf32, #tpu.memory_space<vmem>>, vector<1x8x20xf32>,
    return
  }
  func.func @transform_0(%arg0: i32) -> (i32, i32, i32) {
    %c0_i32 = arith.constant 0 : i32
    %c0_i32_0 = arith.constant 0 : i32
    %c0_i32_1 = arith.constant 0 : i32
    return %arg0, %c0_i32, %c0_i32_0 : i32, i32, i32
  }
  func.func @transform_1(%arg0: i32) -> (i32, i32, i32) {
    %c0_i32 = arith.constant 0 : i32
    %c0_i32_0 = arith.constant 0 : i32
    %c0_i32_1 = arith.constant 0 : i32
    return %arg0, %c0_i32, %c0_i32_0 : i32, i32, i32
  }
  func.func @transform_2(%arg0: i32) -> (i32, i32, i32) {
    %c0_i32 = arith.constant 0 : i32
    %c0_i32_0 = arith.constant 0 : i32
    %c0_i32_1 = arith.constant 0 : i32
    return %arg0, %c0_i32, %c0_i32_0 : i32, i32, i32
  }
  func.func @transform_3(%arg0: i32) -> (i32, i32, i32) {
    %c0_i32 = arith.constant 0 : i32
    %c0_i32_0 = arith.constant 0 : i32
    %c0_i32_1 = arith.constant 0 : i32
    return %arg0, %c0_i32, %c0_i32_0 : i32, i32, i32
  }
  func.func @transform_4(%arg0: i32) -> (i32, i32, i32, i32) {
    %c0_i32 = arith.constant 0 : i32
    %c0_i32_0 = arith.constant 0 : i32
    %c0_i32_1 = arith.constant 0 : i32
    %c0_i32_2 = arith.constant 0 : i32
    %c0_i32_3 = arith.constant 0 : i32
    return %c0_i32, %c0_i32_0, %c0_i32_1, %c0_i32_2 : i32, i32, i32, i32
  }
  func.func @transform_5(%arg0: i32) -> (i32, i32, i32, i32) {
    %c0_i32 = arith.constant 0 : i32
    %c0_i32_0 = arith.constant 0 : i32
    %c0_i32_1 = arith.constant 0 : i32
    %c0_i32_2 = arith.constant 0 : i32
    %c0_i32_3 = arith.constant 0 : i32
    return %c0_i32, %c0_i32_0, %c0_i32_1, %c0_i32_2 : i32, i32, i32, i32
  }
  func.func @transform_6(%arg0: i32) -> (i32, i32, i32, i32) {
    %c0_i32 = arith.constant 0 : i32
    %c0_i32_0 = arith.constant 0 : i32
    %c0_i32_1 = arith.constant 0 : i32
    %c0_i32_2 = arith.constant 0 : i32
    %c0_i32_3 = arith.constant 0 : i32
    return %c0_i32, %c0_i32_0, %c0_i32_1, %c0_i32_2 : i32, i32, i32, i32
  }
  func.func @transform_7(%arg0: i32) -> (i32, i32, i32, i32) {
    %c0_i32 = arith.constant 0 : i32
    %c0_i32_0 = arith.constant 0 : i32
    %c0_i32_1 = arith.constant 0 : i32
    %c0_i32_2 = arith.constant 0 : i32
    %c0_i32_3 = arith.constant 0 : i32
    return %c0_i32, %c0_i32_0, %c0_i32_1, %c0_i32_2 : i32, i32, i32, i32
  }
  func.func @transform_8(%arg0: i32) -> (i32, i32, i32, i32) {
    %c0_i32 = arith.constant 0 : i32
    %c0_i32_0 = arith.constant 0 : i32
    %c0_i32_1 = arith.constant 0 : i32
    %c0_i32_2 = arith.constant 0 : i32
    %c0_i32_3 = arith.constant 0 : i32
    return %c0_i32, %c0_i32_0, %c0_i32_1, %c0_i32_2 : i32, i32, i32, i32
  }
  func.func @transform_9(%arg0: i32) -> (i32, i32, i32, i32) {
    %c0_i32 = arith.constant 0 : i32
    %c0_i32_0 = arith.constant 0 : i32
    %c0_i32_1 = arith.constant 0 : i32
    %c0_i32_2 = arith.constant 0 : i32
    %c0_i32_3 = arith.constant 0 : i32
    return %c0_i32, %c0_i32_0, %c0_i32_1, %c0_i32_2 : i32, i32, i32, i32
  }
  func.func @transform_10(%arg0: i32) -> (i32, i32, i32, i32) {
    %c0_i32 = arith.constant 0 : i32
    %c0_i32_0 = arith.constant 0 : i32
    %c0_i32_1 = arith.constant 0 : i32
    %c0_i32_2 = arith.constant 0 : i32
    %c0_i32_3 = arith.constant 0 : i32
    return %c0_i32, %c0_i32_0, %c0_i32_1, %c0_i32_2 : i32, i32, i32, i32
  }
  func.func @transform_11(%arg0: i32) -> (i32, i32, i32, i32) {
    %c0_i32 = arith.constant 0 : i32
    %c0_i32_0 = arith.constant 0 : i32
    %c0_i32_1 = arith.constant 0 : i32
    %c0_i32_2 = arith.constant 0 : i32
    %c0_i32_3 = arith.constant 0 : i32
    return %c0_i32, %c0_i32_0, %c0_i32_1, %c0_i32_2 : i32, i32, i32, i32
  }
  func.func @transform_12(%arg0: i32) -> (i32, i32, i32, i32) {
    %c0_i32 = arith.constant 0 : i32
    %c0_i32_0 = arith.constant 0 : i32
    %c0_i32_1 = arith.constant 0 : i32
    %c0_i32_2 = arith.constant 0 : i32
    %c0_i32_3 = arith.constant 0 : i32
    return %c0_i32, %c0_i32_0, %c0_i32_1, %c0_i32_2 : i32, i32, i32, i32
  }
  func.func @transform_13(%arg0: i32) -> (i32, i32, i32, i32) {
    %c0_i32 = arith.constant 0 : i32
    %c0_i32_0 = arith.constant 0 : i32
    %c0_i32_1 = arith.constant 0 : i32
    %c0_i32_2 = arith.constant 0 : i32
    %c0_i32_3 = arith.constant 0 : i32
    return %c0_i32, %c0_i32_0, %c0_i32_1, %c0_i32_2 : i32, i32, i32, i32
  }
  func.func @transform_14(%arg0: i32) -> (i32, i32, i32, i32) {
    %c0_i32 = arith.constant 0 : i32
    %c0_i32_0 = arith.constant 0 : i32
    %c0_i32_1 = arith.constant 0 : i32
    %c0_i32_2 = arith.constant 0 : i32
    %c0_i32_3 = arith.constant 0 : i32
    return %c0_i32, %c0_i32_0, %c0_i32_1, %c0_i32_2 : i32, i32, i32, i32
  }
  func.func @transform_15(%arg0: i32) -> (i32, i32, i32, i32) {
    %c0_i32 = arith.constant 0 : i32
    %c0_i32_0 = arith.constant 0 : i32
    %c0_i32_1 = arith.constant 0 : i32
    %c0_i32_2 = arith.constant 0 : i32
    %c0_i32_3 = arith.constant 0 : i32
    return %c0_i32, %c0_i32_0, %c0_i32_1, %c0_i32_2 : i32, i32, i32, i32
  }
  func.func @transform_16(%arg0: i32) -> (i32, i32, i32) {
    %c0_i32 = arith.constant 0 : i32
    %c0_i32_0 = arith.constant 0 : i32
    %c0_i32_1 = arith.constant 0 : i32
    %c0_i32_2 = arith.constant 0 : i32
    return %c0_i32, %c0_i32_0, %c0_i32_1 : i32, i32, i32
  }
  func.func @transform_17(%arg0: i32) -> (i32, i32, i32) {
    %c0_i32 = arith.constant 0 : i32
    %c0_i32_0 = arith.constant 0 : i32
    %c0_i32_1 = arith.constant 0 : i32
    %c0_i32_2 = arith.constant 0 : i32
    return %c0_i32, %c0_i32_0, %c0_i32_1 : i32, i32, i32
  }
  func.func @transform_18(%arg0: i32) -> (i32, i32, i32) {
    %c0_i32 = arith.constant 0 : i32
    %c0_i32_0 = arith.constant 0 : i32
    %c0_i32_1 = arith.constant 0 : i32
    %c0_i32_2 = arith.constant 0 : i32
    return %c0_i32, %c0_i32_0, %c0_i32_1 : i32, i32, i32
  }
  func.func @transform_19(%arg0: i32) -> (i32, i32, i32) {
    %c0_i32 = arith.constant 0 : i32
    %c0_i32_0 = arith.constant 0 : i32
    %c0_i32_1 = arith.constant 0 : i32
    %c0_i32_2 = arith.constant 0 : i32
    return %c0_i32, %c0_i32_0, %c0_i32_1 : i32, i32, i32
  }
  func.func @transform_20(%arg0: i32) -> (i32, i32) {
    %c0_i32 = arith.constant 0 : i32
    %c0_i32_0 = arith.constant 0 : i32
    %c0_i32_1 = arith.constant 0 : i32
    return %c0_i32, %c0_i32_0 : i32, i32
  }
  func.func @transform_21(%arg0: i32) -> (i32, i32) {
    %c0_i32 = arith.constant 0 : i32
    %c0_i32_0 = arith.constant 0 : i32
    %c0_i32_1 = arith.constant 0 : i32
    return %c0_i32, %c0_i32_0 : i32, i32
  }
  func.func @transform_22(%arg0: i32) -> (i32, i32, i32) {
    %c0_i32 = arith.constant 0 : i32
    %c0_i32_0 = arith.constant 0 : i32
    %c0_i32_1 = arith.constant 0 : i32
    return %arg0, %c0_i32, %c0_i32_0 : i32, i32, i32
  }
  func.func @transform_23(%arg0: i32) -> (i32, i32, i32, i32) {
    %c0_i32 = arith.constant 0 : i32
    %c0_i32_0 = arith.constant 0 : i32
    %c0_i32_1 = arith.constant 0 : i32
    %c0_i32_2 = arith.constant 0 : i32
    return %arg0, %c0_i32, %c0_i32_0, %c0_i32_1 : i32, i32, i32, i32
  }
}

</mosaic_0001>

<llo_original>
// kernel: decoder_forward.1
$region0: #{decoder_forward.1}
  #allocation0 [shape = 'u32[]', space=smem, size = 0x4, offset = 0x4, fixed_abs, tag = 'smem constant byte address 0x4 - core index']
  #allocation1 [shape = 'u32[72,128]{1,0:T(1,128)}', space=vmem, size = 0x9000, scoped, tag = 'internal scratch']
  %s0 = inlined_call_operand.vmem [shape: f32[2,8,32], index: 0, kind: input, shape index: {}]
  %s1 = inlined_call_operand.vmem [shape: f32[2,10,32], index: 1, kind: input, shape index: {}]
  %s2 = inlined_call_operand.hbm [shape: f32[2,8,8], index: 2, kind: input, shape index: {}]
  %s3 = inlined_call_operand.vmem [shape: f32[2,1,10], index: 3, kind: input, shape index: {}]
  %s4 = inlined_call_operand.hbm [shape: f32[2,3,1,32], index: 4, kind: input, shape index: {}]
  %s5 = inlined_call_operand.hbm [shape: f32[2,3,1,32], index: 5, kind: input, shape index: {}]
  %s6 = inlined_call_operand.vmem [shape: bf16[2,2,32,32], index: 6, kind: input, shape index: {}]
  %s7 = inlined_call_operand.hbm [shape: f32[2,2,1,32], index: 7, kind: input, shape index: {}]
  %s8 = inlined_call_operand.vmem [shape: bf16[2,2,32,64], index: 8, kind: input, shape index: {}]
  %s9 = inlined_call_operand.hbm [shape: f32[2,2,1,64], index: 9, kind: input, shape index: {}]
  %s10 = inlined_call_operand.hbm [shape: bf16[2,2,32,32], index: 10, kind: input, shape index: {}]
  %s11 = inlined_call_operand.hbm [shape: f32[2,2,1,32], index: 11, kind: input, shape index: {}]
  %s12 = inlined_call_operand.vmem [shape: bf16[2,3,32,96], index: 12, kind: input, shape index: {}]
  %s13 = inlined_call_operand.vmem [shape: bf16[2,3,32,64], index: 13, kind: input, shape index: {}]
  %s14 = inlined_call_operand.vmem [shape: bf16[2,3,32,32], index: 14, kind: input, shape index: {}]
  %s15 = inlined_call_operand.hbm [shape: f32[2,3,1,32], index: 15, kind: input, shape index: {}]
  %s16 = inlined_call_operand.hbm [shape: bf16[2,32,64], index: 16, kind: input, shape index: {}]
  %s17 = inlined_call_operand.hbm [shape: f32[2,1,64], index: 17, kind: input, shape index: {}]
  %s18 = inlined_call_operand.vmem [shape: bf16[2,64,32], index: 18, kind: input, shape index: {}]
  %s19 = inlined_call_operand.hbm [shape: f32[2,1,32], index: 19, kind: input, shape index: {}]
  %s20 = inlined_call_operand.vmem [shape: bf16[32,20], index: 20, kind: input, shape index: {}]
  %s21 = inlined_call_operand.hbm [shape: f32[1,20], index: 21, kind: input, shape index: {}]
  %s22 = inlined_call_operand.hbm [shape: f32[2,8,20], index: 22, kind: output, shape index: {0}]
  %s23 = inlined_call_operand.hbm [shape: f32[2,4,8,10], index: 23, kind: output, shape index: {1}]
  %24 = xla_tuple %s22, %s23
  %s25 = sld [smem:[#allocation0]]
  $region177: #{decoder_forward.1} parent=0
    _
  %s27 = ssub.s32 1, %s25
  %s28 = scalar_select 0, %s27, %s25
  $region1: #{decoder_forward.1} parent=0
    #allocation2 [shape = 'u8[8192]{0}', space=vmem, size = 0x2000, scoped, tag = 'input window, operand 2']
    #allocation3 [shape = 's32[2]{0}', space=sflag, size = 0x8, scoped, tag = 'scoped memory for decoder_forward.1']
    #allocation4 [shape = 's32[2]{0}', space=sflag, size = 0x8, scoped, tag = 'scoped memory for decoder_forward.1']
    #allocation5 [shape = 'u8[3072]{0}', space=vmem, size = 0xc00, scoped, tag = 'input window, operand 4, single buffered']
    #allocation6 [shape = 's32[1]{0}', space=sflag, size = 0x4, scoped, tag = 'scoped memory for decoder_forward.1']
    #allocation7 [shape = 'u8[3072]{0}', space=vmem, size = 0xc00, scoped, tag = 'input window, operand 5, single buffered']
    #allocation8 [shape = 'u8[2048]{0}', space=vmem, size = 0x800, scoped, tag = 'input window, operand 7, single buffered']
    #allocation9 [shape = 's32[1]{0}', space=sflag, size = 0x4, scoped, tag = 'scoped memory for decoder_forward.1']
    #allocation10 [shape = 'u8[2048]{0}', space=vmem, size = 0x800, scoped, tag = 'input window, operand 9, single buffered']
    #allocation11 [shape = 'u8[32768]{0}', space=vmem, size = 0x8000, scoped, tag = 'input window, operand 10, single buffered']
    #allocation12 [shape = 's32[1]{0}', space=sflag, size = 0x4, scoped, tag = 'scoped memory for decoder_forward.1']
    #allocation13 [shape = 'u8[2048]{0}', space=vmem, size = 0x800, scoped, tag = 'input window, operand 11, single buffered']
    #allocation14 [shape = 'u8[3072]{0}', space=vmem, size = 0xc00, scoped, tag = 'input window, operand 15, single buffered']
    #allocation15 [shape = 's32[1]{0}', space=sflag, size = 0x4, scoped, tag = 'scoped memory for decoder_forward.1']
    #allocation16 [shape = 'u8[16384]{0}', space=vmem, size = 0x4000, scoped, tag = 'input window, operand 16, single buffered']
    #allocation17 [shape = 'u8[1024]{0}', space=vmem, size = 0x400, scoped, tag = 'input window, operand 17, single buffered']
    #allocation18 [shape = 's32[1]{0}', space=sflag, size = 0x4, scoped, tag = 'scoped memory for decoder_forward.1']
    #allocation19 [shape = 'u8[1024]{0}', space=vmem, size = 0x400, scoped, tag = 'input window, operand 19, single buffered']
    #allocation20 [shape = 'u8[512]{0}', space=vmem, size = 0x400, scoped, tag = 'input window, operand 21, single buffered']
    #allocation21 [shape = 's32[1]{0}', space=sflag, size = 0x4, scoped, tag = 'scoped memory for decoder_forward.1']
    #allocation22 [shape = 'u8[8192]{0}', space=vmem, size = 0x2000, scoped, tag = 'output window, operand 0']
    #allocation23 [shape = 'u8[32768]{0}', space=vmem, size = 0x8000, scoped, tag = 'output window, operand 1']
    #allocation24 [shape = 's32[2]{0}', space=sflag, size = 0x8, scoped, tag = 'scoped memory for decoder_forward.1']
    %29 = vsyncpa [#allocation3], 0
    %s30 = scalar_lea.sflag [#allocation3], 1
    %31 = vsyncpa %s30, 0
    %32 = vsyncpa [#allocation6], 0
    %33 = vsyncpa [#allocation9], 0
    %34 = vsyncpa [#allocation12], 0
    %35 = vsyncpa [#allocation15], 0
    %36 = vsyncpa [#allocation18], 0
    %37 = vsyncpa [#allocation21], 0
    %38 = vsyncpa [#allocation4], 0
    %s39 = scalar_lea.sflag [#allocation4], 1
    %40 = vsyncpa %s39, 0
    %41 = vsyncpa [#allocation24], 0
    %s42 = scalar_lea.sflag [#allocation24], 1
    %43 = vsyncpa %s42, 0
    loop: start=0, step=1, limit=4
    $region2: #{decoder_forward.1} parent=1 // loop_pre_header
      _
    $region3: #{decoder_forward.1} parent=1 // loop_header
      %s45 = sphi 0, %s49
      %p46 = scmp.ge.s32.totalorder %s45, 4
      %s55 = sphi 0, %s57
      %s58 = sphi 0, %s55
      %s59 = sphi 0, %s58
      %s75 = sphi 0, %s59
      %s81 = sphi 0, %s83
      %s84 = sphi 0, %s81
      %s85 = sphi 0, %s84
      %s101 = sphi 0, %s85
      %s107 = sphi 0, %s109
      %s110 = sphi 0, %s107
      %s111 = sphi 0, %s110
      %s127 = sphi 0, %s111
      %s133 = sphi 0, %s135
      %s136 = sphi 0, %s133
      %s137 = sphi 0, %s136
      %s153 = sphi 0, %s137
      %s157 = sphi 0, %s157
      %s159 = sphi 0, %s157
      %s160 = sphi 0, %s159
      %s174 = sphi 0, %s160
      %s178 = sphi 0, %s178
      %s180 = sphi 0, %s178
      %s181 = sphi 0, %s180
      %s195 = sphi 0, %s181
      %s199 = sphi 0, %s199
      %s201 = sphi 0, %s199
      %s202 = sphi 0, %s201
      %s216 = sphi 0, %s202
      %s220 = sphi 0, %s220
      %s222 = sphi 0, %s220
      %s223 = sphi 0, %s222
      %s237 = sphi 0, %s223
      %s241 = sphi 0, %s241
      %s243 = sphi 0, %s241
      %s244 = sphi 0, %s243
      %s258 = sphi 0, %s244
      %s262 = sphi 0, %s262
      %s264 = sphi 0, %s262
      %s265 = sphi 0, %s264
      %s279 = sphi 0, %s265
      %s283 = sphi 0, %s283
      %s285 = sphi 0, %s283
      %s286 = sphi 0, %s285
      %s300 = sphi 0, %s286
      %s304 = sphi 0, %s304
      %s306 = sphi 0, %s304
      %s307 = sphi 0, %s306
      %s321 = sphi 0, %s307
      %s325 = sphi 0, %s325
      %s327 = sphi 0, %s325
      %s328 = sphi 0, %s327
      %s342 = sphi 0, %s328
      %s346 = sphi 0, %s346
      %s348 = sphi 0, %s346
      %s349 = sphi 0, %s348
      %s363 = sphi 0, %s349
      %s367 = sphi 0, %s367
      %s369 = sphi 0, %s367
      %s370 = sphi 0, %s369
      %s384 = sphi 0, %s370
      %s388 = sphi 0, %s388
      %s390 = sphi 0, %s388
      %s391 = sphi 0, %s390
      %s405 = sphi 0, %s391
      %s409 = sphi 0, %s409
      %s411 = sphi 0, %s409
      %s412 = sphi 0, %s411
      %s426 = sphi 0, %s412
      %s430 = sphi 0, %s430
      %s432 = sphi 0, %s430
      %s433 = sphi 0, %s432
      %s447 = sphi 0, %s433
      %s451 = sphi 0, %s451
      %s453 = sphi 0, %s451
      %s454 = sphi 0, %s453
      %s468 = sphi 0, %s454
      %s472 = sphi 0, %s472
      %s474 = sphi 0, %s472
      %s475 = sphi 0, %s474
      %s489 = sphi 0, %s475
      %s493 = sphi 0, %s493
      %s495 = sphi 0, %s493
      %s496 = sphi 0, %s495
      %s510 = sphi 0, %s496
      %s514 = sphi 0, %s514
      %s516 = sphi 0, %s514
      %s517 = sphi 0, %s516
      %s531 = sphi 0, %s517
      %s537 = sphi 0, %s539
      %s540 = sphi 0, %s537
      %s541 = sphi 0, %s540
      %s557 = sphi 0, %s541
      %s563 = sphi 0, %s565
      %s566 = sphi 0, %s563
      %s567 = sphi 0, %s566
      %s583 = sphi 0, %s567
    $region4: #{decoder_forward.1} parent=1 // loop_header_branch
      %48 = sbr.rel (%p46) target = $region8
    $region5: #{decoder_forward.1} parent=1 // loop_body
      %s50 = ssub.s32 %s45, 1
      %s51 = ssub.s32 %s45, 2
      %s52 = sadd.s32 %s45, 1
      %s53 = ssub.s32 %s45, %s52
      %p54 = scmp.eq.s32.totalorder %s53, 0
      %s56 = sadd.s32 %s55, 1
      %s57 = scalar_select %p54, %s55, %s56
      %p60 = pneg %p54
      %p61 = scmp.eq.s32.totalorder %s45, 1
      %p62 = por %p60, %p61
      %p63 = scmp.ne.s32.totalorder %s55, %s58
      %p64 = scmp.eq.s32.totalorder %s45, 0
      %p65 = por %p63, %p64
      %p66 = scmp.ne.s32.totalorder %s55, %s58
      %p67 = scmp.eq.s32.totalorder %s50, 1
      %p68 = por %p66, %p67
      %p69 = scmp.ne.s32.totalorder %s58, %s59
      %p70 = scmp.eq.s32.totalorder %s50, 0
      %p71 = por %p69, %p70
      %p72 = scmp.ne.s32.totalorder %s58, %s59
      %p73 = scmp.eq.s32.totalorder %s51, 1
      %p74 = por %p72, %p73
      %p76 = scmp.ne.s32.totalorder %s59, %s75
      %p77 = scmp.eq.s32.totalorder %s51, 0
      %p78 = por %p76, %p77
      %s79 = ssub.s32 %s45, %s52
      %p80 = scmp.eq.s32.totalorder %s79, 0
      %s82 = sadd.s32 %s81, 1
      %s83 = scalar_select %p80, %s81, %s82
      %p86 = pneg %p80
      %p87 = scmp.eq.s32.totalorder %s45, 1
      %p88 = por %p86, %p87
      %p89 = scmp.ne.s32.totalorder %s81, %s84
      %p90 = scmp.eq.s32.totalorder %s45, 0
      %p91 = por %p89, %p90
      %p92 = scmp.ne.s32.totalorder %s81, %s84
      %p93 = scmp.eq.s32.totalorder %s50, 1
      %p94 = por %p92, %p93
      %p95 = scmp.ne.s32.totalorder %s84, %s85
      %p96 = scmp.eq.s32.totalorder %s50, 0
      %p97 = por %p95, %p96
      %p98 = scmp.ne.s32.totalorder %s84, %s85
      %p99 = scmp.eq.s32.totalorder %s51, 1
      %p100 = por %p98, %p99
      %p102 = scmp.ne.s32.totalorder %s85, %s101
      %p103 = scmp.eq.s32.totalorder %s51, 0
      %p104 = por %p102, %p103
      %s105 = ssub.s32 %s45, %s52
      %p106 = scmp.eq.s32.totalorder %s105, 0
      %s108 = sadd.s32 %s107, 1
      %s109 = scalar_select %p106, %s107, %s108
      %p112 = pneg %p106
      %p113 = scmp.eq.s32.totalorder %s45, 1
      %p114 = por %p112, %p113
      %p115 = scmp.ne.s32.totalorder %s107, %s110
      %p116 = scmp.eq.s32.totalorder %s45, 0
      %p117 = por %p115, %p116
      %p118 = scmp.ne.s32.totalorder %s107, %s110
      %p119 = scmp.eq.s32.totalorder %s50, 1
      %p120 = por %p118, %p119
      %p121 = scmp.ne.s32.totalorder %s110, %s111
      %p122 = scmp.eq.s32.totalorder %s50, 0
      %p123 = por %p121, %p122
      %p124 = scmp.ne.s32.totalorder %s110, %s111
      %p125 = scmp.eq.s32.totalorder %s51, 1
      %p126 = por %p124, %p125
      %p128 = scmp.ne.s32.totalorder %s111, %s127
      %p129 = scmp.eq.s32.totalorder %s51, 0
      %p130 = por %p128, %p129
      %s131 = ssub.s32 %s45, %s52
      %p132 = scmp.eq.s32.totalorder %s131, 0
      %s134 = sadd.s32 %s133, 1
      %s135 = scalar_select %p132, %s133, %s134
      %p138 = pneg %p132
      %p139 = scmp.eq.s32.totalorder %s45, 1
      %p140 = por %p138, %p139
      %p141 = scmp.ne.s32.totalorder %s133, %s136
      %p142 = scmp.eq.s32.totalorder %s45, 0
      %p143 = por %p141, %p142
      %p144 = scmp.ne.s32.totalorder %s133, %s136
      %p145 = scmp.eq.s32.totalorder %s50, 1
      %p146 = por %p144, %p145
      %p147 = scmp.ne.s32.totalorder %s136, %s137
      %p148 = scmp.eq.s32.totalorder %s50, 0
      %p149 = por %p147, %p148
      %p150 = scmp.ne.s32.totalorder %s136, %s137
      %p151 = scmp.eq.s32.totalorder %s51, 1
      %p152 = por %p150, %p151
      %p154 = scmp.ne.s32.totalorder %s137, %s153
      %p155 = scmp.eq.s32.totalorder %s51, 0
      %p156 = por %p154, %p155
      %s158 = sadd.s32 %s157, 1
      %p161 = scmp.eq.s32.totalorder %s45, 1
      %p162 = scmp.ne.s32.totalorder %s157, %s159
      %p163 = scmp.eq.s32.totalorder %s45, 0
      %p164 = por %p162, %p163
      %p165 = scmp.ne.s32.totalorder %s157, %s159
      %p166 = scmp.eq.s32.totalorder %s50, 1
      %p167 = por %p165, %p166
      %p168 = scmp.ne.s32.totalorder %s159, %s160
      %p169 = scmp.eq.s32.totalorder %s50, 0
      %p170 = por %p168, %p169
      %p171 = scmp.ne.s32.totalorder %s159, %s160
      %p172 = scmp.eq.s32.totalorder %s51, 1
      %p173 = por %p171, %p172
      %p175 = scmp.ne.s32.totalorder %s160, %s174
      %p176 = scmp.eq.s32.totalorder %s51, 0
      %p177 = por %p175, %p176
      %s179 = sadd.s32 %s178, 1
      %p182 = scmp.eq.s32.totalorder %s45, 1
      %p183 = scmp.ne.s32.totalorder %s178, %s180
      %p184 = scmp.eq.s32.totalorder %s45, 0
      %p185 = por %p183, %p184
      %p186 = scmp.ne.s32.totalorder %s178, %s180
      %p187 = scmp.eq.s32.totalorder %s50, 1
      %p188 = por %p186, %p187
      %p189 = scmp.ne.s32.totalorder %s180, %s181
      %p190 = scmp.eq.s32.totalorder %s50, 0
      %p191 = por %p189, %p190
      %p192 = scmp.ne.s32.totalorder %s180, %s181
      %p193 = scmp.eq.s32.totalorder %s51, 1
      %p194 = por %p192, %p193
      %p196 = scmp.ne.s32.totalorder %s181, %s195
      %p197 = scmp.eq.s32.totalorder %s51, 0
      %p198 = por %p196, %p197
      %s200 = sadd.s32 %s199, 1
      %p203 = scmp.eq.s32.totalorder %s45, 1
      %p204 = scmp.ne.s32.totalorder %s199, %s201
      %p205 = scmp.eq.s32.totalorder %s45, 0
      %p206 = por %p204, %p205
      %p207 = scmp.ne.s32.totalorder %s199, %s201
      %p208 = scmp.eq.s32.totalorder %s50, 1
      %p209 = por %p207, %p208
      %p210 = scmp.ne.s32.totalorder %s201, %s202
      %p211 = scmp.eq.s32.totalorder %s50, 0
      %p212 = por %p210, %p211
      %p213 = scmp.ne.s32.totalorder %s201, %s202
      %p214 = scmp.eq.s32.totalorder %s51, 1
      %p215 = por %p213, %p214
      %p217 = scmp.ne.s32.totalorder %s202, %s216
      %p218 = scmp.eq.s32.totalorder %s51, 0
      %p219 = por %p217, %p218
      %s221 = sadd.s32 %s220, 1
      %p224 = scmp.eq.s32.totalorder %s45, 1
      %p225 = scmp.ne.s32.totalorder %s220, %s222
      %p226 = scmp.eq.s32.totalorder %s45, 0
      %p227 = por %p225, %p226
      %p228 = scmp.ne.s32.totalorder %s220, %s222
      %p229 = scmp.eq.s32.totalorder %s50, 1
      %p230 = por %p228, %p229
      %p231 = scmp.ne.s32.totalorder %s222, %s223
      %p232 = scmp.eq.s32.totalorder %s50, 0
      %p233 = por %p231, %p232
      %p234 = scmp.ne.s32.totalorder %s222, %s223
      %p235 = scmp.eq.s32.totalorder %s51, 1
      %p236 = por %p234, %p235
      %p238 = scmp.ne.s32.totalorder %s223, %s237
      %p239 = scmp.eq.s32.totalorder %s51, 0
      %p240 = por %p238, %p239
      %s242 = sadd.s32 %s241, 1
      %p245 = scmp.eq.s32.totalorder %s45, 1
      %p246 = scmp.ne.s32.totalorder %s241, %s243
      %p247 = scmp.eq.s32.totalorder %s45, 0
      %p248 = por %p246, %p247
      %p249 = scmp.ne.s32.totalorder %s241, %s243
      %p250 = scmp.eq.s32.totalorder %s50, 1
      %p251 = por %p249, %p250
      %p252 = scmp.ne.s32.totalorder %s243, %s244
      %p253 = scmp.eq.s32.totalorder %s50, 0
      %p254 = por %p252, %p253
      %p255 = scmp.ne.s32.totalorder %s243, %s244
      %p256 = scmp.eq.s32.totalorder %s51, 1
      %p257 = por %p255, %p256
      %p259 = scmp.ne.s32.totalorder %s244, %s258
      %p260 = scmp.eq.s32.totalorder %s51, 0
      %p261 = por %p259, %p260
      %s263 = sadd.s32 %s262, 1
      %p266 = scmp.eq.s32.totalorder %s45, 1
      %p267 = scmp.ne.s32.totalorder %s262, %s264
      %p268 = scmp.eq.s32.totalorder %s45, 0
      %p269 = por %p267, %p268
      %p270 = scmp.ne.s32.totalorder %s262, %s264
      %p271 = scmp.eq.s32.totalorder %s50, 1
      %p272 = por %p270, %p271
      %p273 = scmp.ne.s32.totalorder %s264, %s265
      %p274 = scmp.eq.s32.totalorder %s50, 0
      %p275 = por %p273, %p274
      %p276 = scmp.ne.s32.totalorder %s264, %s265
      %p277 = scmp.eq.s32.totalorder %s51, 1
      %p278 = por %p276, %p277
      %p280 = scmp.ne.s32.totalorder %s265, %s279
      %p281 = scmp.eq.s32.totalorder %s51, 0
      %p282 = por %p280, %p281
      %s284 = sadd.s32 %s283, 1
      %p287 = scmp.eq.s32.totalorder %s45, 1
      %p288 = scmp.ne.s32.totalorder %s283, %s285
      %p289 = scmp.eq.s32.totalorder %s45, 0
      %p290 = por %p288, %p289
      %p291 = scmp.ne.s32.totalorder %s283, %s285
      %p292 = scmp.eq.s32.totalorder %s50, 1
      %p293 = por %p291, %p292
      %p294 = scmp.ne.s32.totalorder %s285, %s286
      %p295 = scmp.eq.s32.totalorder %s50, 0
      %p296 = por %p294, %p295
      %p297 = scmp.ne.s32.totalorder %s285, %s286
      %p298 = scmp.eq.s32.totalorder %s51, 1
      %p299 = por %p297, %p298
      %p301 = scmp.ne.s32.totalorder %s286, %s300
      %p302 = scmp.eq.s32.totalorder %s51, 0
      %p303 = por %p301, %p302
      %s305 = sadd.s32 %s304, 1
      %p308 = scmp.eq.s32.totalorder %s45, 1
      %p309 = scmp.ne.s32.totalorder %s304, %s306
      %p310 = scmp.eq.s32.totalorder %s45, 0
      %p311 = por %p309, %p310
      %p312 = scmp.ne.s32.totalorder %s304, %s306
      %p313 = scmp.eq.s32.totalorder %s50, 1
      %p314 = por %p312, %p313
      %p315 = scmp.ne.s32.totalorder %s306, %s307
      %p316 = scmp.eq.s32.totalorder %s50, 0
      %p317 = por %p315, %p316
      %p318 = scmp.ne.s32.totalorder %s306, %s307
      %p319 = scmp.eq.s32.totalorder %s51, 1
      %p320 = por %p318, %p319
      %p322 = scmp.ne.s32.totalorder %s307, %s321
      %p323 = scmp.eq.s32.totalorder %s51, 0
      %p324 = por %p322, %p323
      %s326 = sadd.s32 %s325, 1
      %p329 = scmp.eq.s32.totalorder %s45, 1
      %p330 = scmp.ne.s32.totalorder %s325, %s327
      %p331 = scmp.eq.s32.totalorder %s45, 0
      %p332 = por %p330, %p331
      %p333 = scmp.ne.s32.totalorder %s325, %s327
      %p334 = scmp.eq.s32.totalorder %s50, 1
      %p335 = por %p333, %p334
      %p336 = scmp.ne.s32.totalorder %s327, %s328
      %p337 = scmp.eq.s32.totalorder %s50, 0
      %p338 = por %p336, %p337
      %p339 = scmp.ne.s32.totalorder %s327, %s328
      %p340 = scmp.eq.s32.totalorder %s51, 1
      %p341 = por %p339, %p340
      %p343 = scmp.ne.s32.totalorder %s328, %s342
      %p344 = scmp.eq.s32.totalorder %s51, 0
      %p345 = por %p343, %p344
      %s347 = sadd.s32 %s346, 1
      %p350 = scmp.eq.s32.totalorder %s45, 1
      %p351 = scmp.ne.s32.totalorder %s346, %s348
      %p352 = scmp.eq.s32.totalorder %s45, 0
      %p353 = por %p351, %p352
      %p354 = scmp.ne.s32.totalorder %s346, %s348
      %p355 = scmp.eq.s32.totalorder %s50, 1
      %p356 = por %p354, %p355
      %p357 = scmp.ne.s32.totalorder %s348, %s349
      %p358 = scmp.eq.s32.totalorder %s50, 0
      %p359 = por %p357, %p358
      %p360 = scmp.ne.s32.totalorder %s348, %s349
      %p361 = scmp.eq.s32.totalorder %s51, 1
      %p362 = por %p360, %p361
      %p364 = scmp.ne.s32.totalorder %s349, %s363
      %p365 = scmp.eq.s32.totalorder %s51, 0
      %p366 = por %p364, %p365
      %s368 = sadd.s32 %s367, 1
      %p371 = scmp.eq.s32.totalorder %s45, 1
      %p372 = scmp.ne.s32.totalorder %s367, %s369
      %p373 = scmp.eq.s32.totalorder %s45, 0
      %p374 = por %p372, %p373
      %p375 = scmp.ne.s32.totalorder %s367, %s369
      %p376 = scmp.eq.s32.totalorder %s50, 1
      %p377 = por %p375, %p376
      %p378 = scmp.ne.s32.totalorder %s369, %s370
      %p379 = scmp.eq.s32.totalorder %s50, 0
      %p380 = por %p378, %p379
      %p381 = scmp.ne.s32.totalorder %s369, %s370
      %p382 = scmp.eq.s32.totalorder %s51, 1
      %p383 = por %p381, %p382
      %p385 = scmp.ne.s32.totalorder %s370, %s384
      %p386 = scmp.eq.s32.totalorder %s51, 0
      %p387 = por %p385, %p386
      %s389 = sadd.s32 %s388, 1
      %p392 = scmp.eq.s32.totalorder %s45, 1
      %p393 = scmp.ne.s32.totalorder %s388, %s390
      %p394 = scmp.eq.s32.totalorder %s45, 0
      %p395 = por %p393, %p394
      %p396 = scmp.ne.s32.totalorder %s388, %s390
      %p397 = scmp.eq.s32.totalorder %s50, 1
      %p398 = por %p396, %p397
      %p399 = scmp.ne.s32.totalorder %s390, %s391
      %p400 = scmp.eq.s32.totalorder %s50, 0
      %p401 = por %p399, %p400
      %p402 = scmp.ne.s32.totalorder %s390, %s391
      %p403 = scmp.eq.s32.totalorder %s51, 1
      %p404 = por %p402, %p403
      %p406 = scmp.ne.s32.totalorder %s391, %s405
      %p407 = scmp.eq.s32.totalorder %s51, 0
      %p408 = por %p406, %p407
      %s410 = sadd.s32 %s409, 1
      %p413 = scmp.eq.s32.totalorder %s45, 1
      %p414 = scmp.ne.s32.totalorder %s409, %s411
      %p415 = scmp.eq.s32.totalorder %s45, 0
      %p416 = por %p414, %p415
      %p417 = scmp.ne.s32.totalorder %s409, %s411
      %p418 = scmp.eq.s32.totalorder %s50, 1
      %p419 = por %p417, %p418
      %p420 = scmp.ne.s32.totalorder %s411, %s412
      %p421 = scmp.eq.s32.totalorder %s50, 0
      %p422 = por %p420, %p421
      %p423 = scmp.ne.s32.totalorder %s411, %s412
      %p424 = scmp.eq.s32.totalorder %s51, 1
      %p425 = por %p423, %p424
      %p427 = scmp.ne.s32.totalorder %s412, %s426
      %p428 = scmp.eq.s32.totalorder %s51, 0
      %p429 = por %p427, %p428
      %s431 = sadd.s32 %s430, 1
      %p434 = scmp.eq.s32.totalorder %s45, 1
      %p435 = scmp.ne.s32.totalorder %s430, %s432
      %p436 = scmp.eq.s32.totalorder %s45, 0
      %p437 = por %p435, %p436
      %p438 = scmp.ne.s32.totalorder %s430, %s432
      %p439 = scmp.eq.s32.totalorder %s50, 1
      %p440 = por %p438, %p439
      %p441 = scmp.ne.s32.totalorder %s432, %s433
      %p442 = scmp.eq.s32.totalorder %s50, 0
      %p443 = por %p441, %p442
      %p444 = scmp.ne.s32.totalorder %s432, %s433
      %p445 = scmp.eq.s32.totalorder %s51, 1
      %p446 = por %p444, %p445
      %p448 = scmp.ne.s32.totalorder %s433, %s447
      %p449 = scmp.eq.s32.totalorder %s51, 0
      %p450 = por %p448, %p449
      %s452 = sadd.s32 %s451, 1
      %p455 = scmp.eq.s32.totalorder %s45, 1
      %p456 = scmp.ne.s32.totalorder %s451, %s453
      %p457 = scmp.eq.s32.totalorder %s45, 0
      %p458 = por %p456, %p457
      %p459 = scmp.ne.s32.totalorder %s451, %s453
      %p460 = scmp.eq.s32.totalorder %s50, 1
      %p461 = por %p459, %p460
      %p462 = scmp.ne.s32.totalorder %s453, %s454
      %p463 = scmp.eq.s32.totalorder %s50, 0
      %p464 = por %p462, %p463
      %p465 = scmp.ne.s32.totalorder %s453, %s454
      %p466 = scmp.eq.s32.totalorder %s51, 1
      %p467 = por %p465, %p466
      %p469 = scmp.ne.s32.totalorder %s454, %s468
      %p470 = scmp.eq.s32.totalorder %s51, 0
      %p471 = por %p469, %p470
      %s473 = sadd.s32 %s472, 1
      %p476 = scmp.eq.s32.totalorder %s45, 1
      %p477 = scmp.ne.s32.totalorder %s472, %s474
      %p478 = scmp.eq.s32.totalorder %s45, 0
      %p479 = por %p477, %p478
      %p480 = scmp.ne.s32.totalorder %s472, %s474
      %p481 = scmp.eq.s32.totalorder %s50, 1
      %p482 = por %p480, %p481
      %p483 = scmp.ne.s32.totalorder %s474, %s475
      %p484 = scmp.eq.s32.totalorder %s50, 0
      %p485 = por %p483, %p484
      %p486 = scmp.ne.s32.totalorder %s474, %s475
      %p487 = scmp.eq.s32.totalorder %s51, 1
      %p488 = por %p486, %p487
      %p490 = scmp.ne.s32.totalorder %s475, %s489
      %p491 = scmp.eq.s32.totalorder %s51, 0
      %p492 = por %p490, %p491
      %s494 = sadd.s32 %s493, 1
      %p497 = scmp.eq.s32.totalorder %s45, 1
      %p498 = scmp.ne.s32.totalorder %s493, %s495
      %p499 = scmp.eq.s32.totalorder %s45, 0
      %p500 = por %p498, %p499
      %p501 = scmp.ne.s32.totalorder %s493, %s495
      %p502 = scmp.eq.s32.totalorder %s50, 1
      %p503 = por %p501, %p502
      %p504 = scmp.ne.s32.totalorder %s495, %s496
      %p505 = scmp.eq.s32.totalorder %s50, 0
      %p506 = por %p504, %p505
      %p507 = scmp.ne.s32.totalorder %s495, %s496
      %p508 = scmp.eq.s32.totalorder %s51, 1
      %p509 = por %p507, %p508
      %p511 = scmp.ne.s32.totalorder %s496, %s510
      %p512 = scmp.eq.s32.totalorder %s51, 0
      %p513 = por %p511, %p512
      %s515 = sadd.s32 %s514, 1
      %p518 = scmp.eq.s32.totalorder %s45, 1
      %p519 = scmp.ne.s32.totalorder %s514, %s516
      %p520 = scmp.eq.s32.totalorder %s45, 0
      %p521 = por %p519, %p520
      %p522 = scmp.ne.s32.totalorder %s514, %s516
      %p523 = scmp.eq.s32.totalorder %s50, 1
      %p524 = por %p522, %p523
      %p525 = scmp.ne.s32.totalorder %s516, %s517
      %p526 = scmp.eq.s32.totalorder %s50, 0
      %p527 = por %p525, %p526
      %p528 = scmp.ne.s32.totalorder %s516, %s517
      %p529 = scmp.eq.s32.totalorder %s51, 1
      %p530 = por %p528, %p529
      %p532 = scmp.ne.s32.totalorder %s517, %s531
      %p533 = scmp.eq.s32.totalorder %s51, 0
      %p534 = por %p532, %p533
      %s535 = ssub.s32 %s45, %s52
      %p536 = scmp.eq.s32.totalorder %s535, 0
      %s538 = sadd.s32 %s537, 1
      %s539 = scalar_select %p536, %s537, %s538
      %p542 = pneg %p536
      %p543 = scmp.eq.s32.totalorder %s45, 1
      %p544 = por %p542, %p543
      %p545 = scmp.ne.s32.totalorder %s537, %s540
      %p546 = scmp.eq.s32.totalorder %s45, 0
      %p547 = por %p545, %p546
      %p548 = scmp.ne.s32.totalorder %s537, %s540
      %p549 = scmp.eq.s32.totalorder %s50, 1
      %p550 = por %p548, %p549
      %p551 = scmp.ne.s32.totalorder %s540, %s541
      %p552 = scmp.eq.s32.totalorder %s50, 0
      %p553 = por %p551, %p552
      %p554 = scmp.ne.s32.totalorder %s540, %s541
      %p555 = scmp.eq.s32.totalorder %s51, 1
      %p556 = por %p554, %p555
      %p558 = scmp.ne.s32.totalorder %s541, %s557
      %p559 = scmp.eq.s32.totalorder %s51, 0
      %p560 = por %p558, %p559
      %s561 = ssub.s32 %s45, %s52
      %p562 = scmp.eq.s32.totalorder %s561, 0
      %s564 = sadd.s32 %s563, 1
      %s565 = scalar_select %p562, %s563, %s564
      %p568 = pneg %p562
      %p569 = scmp.eq.s32.totalorder %s45, 1
      %p570 = por %p568, %p569
      %p571 = scmp.ne.s32.totalorder %s563, %s566
      %p572 = scmp.eq.s32.totalorder %s45, 0
      %p573 = por %p571, %p572
      %p574 = scmp.ne.s32.totalorder %s563, %s566
      %p575 = scmp.eq.s32.totalorder %s50, 1
      %p576 = por %p574, %p575
      %p577 = scmp.ne.s32.totalorder %s566, %s567
      %p578 = scmp.eq.s32.totalorder %s50, 0
      %p579 = por %p577, %p578
      %p580 = scmp.ne.s32.totalorder %s566, %s567
      %p581 = scmp.eq.s32.totalorder %s51, 1
      %p582 = por %p580, %p581
      %p584 = scmp.ne.s32.totalorder %s567, %s583
      %p585 = scmp.eq.s32.totalorder %s51, 0
      %p586 = por %p584, %p585
      %p587 = scmp.le.s32.totalorder 1, %s45
      %p588 = scmp.lt.s32.totalorder %s45, 3
      %p589 = pnand %p587, %p588
      %p590 = pneg %p589
      // Predicated region
      $region9: #{decoder_forward.1} parent=5 // pred_check
        _
      $region10: #{decoder_forward.1} parent=5 // pred_check_branch
        %592 = sbr.rel (%p589) target = $region12
      $region11: #{decoder_forward.1} parent=5 // pred_region
        %s593 = ssub.s32 %s45, 1
        // Predicated region
        $region13: #{decoder_forward.1} parent=11 // pred_check
          %p594 = pneg %p170
        $region14: #{decoder_forward.1} parent=11 // pred_check_branch
          %596 = sbr.rel (%p594) target = $region16
        $region15: #{decoder_forward.1} parent=11 // pred_region
          %598 = vsyncadd [#allocation6], 0
          %s599 = sshll.u32 %s4, 4
          %s600 = int_to_ptr.hbm [resolvable:$true] %s599
          %s601 = sshll.u32 [#allocation5], 4
          %s602 = int_to_ptr.vmem [resolvable:$true] %s601
          %607 = dma.hbm_to_vmem [thread:$0]  %s600, 96, %s602, [#allocation6], 16, 16, 1
        $region16: #{decoder_forward.1} parent=11 // pred_fallthru
          _
        // Predicated region
        $region17: #{decoder_forward.1} parent=11 // pred_check
          %p608 = pneg %p191
        $region18: #{decoder_forward.1} parent=11 // pred_check_branch
          %610 = sbr.rel (%p608) target = $region20
        $region19: #{decoder_forward.1} parent=11 // pred_region
          %612 = vsyncadd [#allocation6], 0
          %s613 = sshll.u32 %s5, 4
          %s614 = int_to_ptr.hbm [resolvable:$true] %s613
          %s615 = sshll.u32 [#allocation7], 4
          %s616 = int_to_ptr.vmem [resolvable:$true] %s615
          %621 = dma.hbm_to_vmem [thread:$0]  %s614, 96, %s616, [#allocation6], 16, 16, 1
        $region20: #{decoder_forward.1} parent=11 // pred_fallthru
          _
        // Predicated region
        $region21: #{decoder_forward.1} parent=11 // pred_check
          %p622 = pneg %p212
        $region22: #{decoder_forward.1} parent=11 // pred_check_branch
          %624 = sbr.rel (%p622) target = $region24
        $region23: #{decoder_forward.1} parent=11 // pred_region
          _
        $region24: #{decoder_forward.1} parent=11 // pred_fallthru
          _
        // Predicated region
        $region25: #{decoder_forward.1} parent=11 // pred_check
          %p625 = pneg %p233
        $region26: #{decoder_forward.1} parent=11 // pred_check_branch
          %627 = sbr.rel (%p625) target = $region28
        $region27: #{decoder_forward.1} parent=11 // pred_region
          %629 = vsyncadd [#allocation9], 0
          %s630 = sshll.u32 %s7, 4
          %s631 = int_to_ptr.hbm [resolvable:$true] %s630
          %s632 = sshll.u32 [#allocation8], 4
          %s633 = int_to_ptr.vmem [resolvable:$true] %s632
          %638 = dma.hbm_to_vmem [thread:$0]  %s631, 64, %s633, [#allocation9], 16, 16, 1
        $region28: #{decoder_forward.1} parent=11 // pred_fallthru
          _
        // Predicated region
        $region29: #{decoder_forward.1} parent=11 // pred_check
          %p639 = pneg %p254
        $region30: #{decoder_forward.1} parent=11 // pred_check_branch
          %641 = sbr.rel (%p639) target = $region32
        $region31: #{decoder_forward.1} parent=11 // pred_region
          _
        $region32: #{decoder_forward.1} parent=11 // pred_fallthru
          _
        // Predicated region
        $region33: #{decoder_forward.1} parent=11 // pred_check
          %p642 = pneg %p275
        $region34: #{decoder_forward.1} parent=11 // pred_check_branch
          %644 = sbr.rel (%p642) target = $region36
        $region35: #{decoder_forward.1} parent=11 // pred_region
          %646 = vsyncadd [#allocation9], 0
          %s647 = sshll.u32 %s9, 4
          %s648 = int_to_ptr.hbm [resolvable:$true] %s647
          %s649 = sshll.u32 [#allocation10], 4
          %s650 = int_to_ptr.vmem [resolvable:$true] %s649
          %655 = dma.hbm_to_vmem [thread:$0]  %s648, 64, %s650, [#allocation9], 16, 16, 1
        $region36: #{decoder_forward.1} parent=11 // pred_fallthru
          _
        // Predicated region
        $region37: #{decoder_forward.1} parent=11 // pred_check
          %p656 = pneg %p296
        $region38: #{decoder_forward.1} parent=11 // pred_check_branch
          %658 = sbr.rel (%p656) target = $region40
        $region39: #{decoder_forward.1} parent=11 // pred_region
          %660 = vsyncadd [#allocation12], 0
          %s661 = sshll.u32 %s10, 4
          %s662 = int_to_ptr.hbm [resolvable:$true] %s661
          %s663 = sshll.u32 [#allocation11], 4
          %s664 = int_to_ptr.vmem [resolvable:$true] %s663
          %669 = dma.hbm_to_vmem [thread:$0]  %s662, 1024, %s664, [#allocation12], 64, 64, 4
        $region40: #{decoder_forward.1} parent=11 // pred_fallthru
          _
        // Predicated region
        $region41: #{decoder_forward.1} parent=11 // pred_check
          %p670 = pneg %p317
        $region42: #{decoder_forward.1} parent=11 // pred_check_branch
          %672 = sbr.rel (%p670) target = $region44
        $region43: #{decoder_forward.1} parent=11 // pred_region
          %674 = vsyncadd [#allocation12], 0
          %s675 = sshll.u32 %s11, 4
          %s676 = int_to_ptr.hbm [resolvable:$true] %s675
          %s677 = sshll.u32 [#allocation13], 4
          %s678 = int_to_ptr.vmem [resolvable:$true] %s677
          %683 = dma.hbm_to_vmem [thread:$0]  %s676, 64, %s678, [#allocation12], 16, 16, 1
        $region44: #{decoder_forward.1} parent=11 // pred_fallthru
          _
        // Predicated region
        $region45: #{decoder_forward.1} parent=11 // pred_check
          %p684 = pneg %p338
        $region46: #{decoder_forward.1} parent=11 // pred_check_branch
          %686 = sbr.rel (%p684) target = $region48
        $region47: #{decoder_forward.1} parent=11 // pred_region
          _
        $region48: #{decoder_forward.1} parent=11 // pred_fallthru
          _
        // Predicated region
        $region49: #{decoder_forward.1} parent=11 // pred_check
          %p687 = pneg %p359
        $region50: #{decoder_forward.1} parent=11 // pred_check_branch
          %689 = sbr.rel (%p687) target = $region52
        $region51: #{decoder_forward.1} parent=11 // pred_region
          _
        $region52: #{decoder_forward.1} parent=11 // pred_fallthru
          _
        // Predicated region
        $region53: #{decoder_forward.1} parent=11 // pred_check
          %p690 = pneg %p380
        $region54: #{decoder_forward.1} parent=11 // pred_check_branch
          %692 = sbr.rel (%p690) target = $region56
        $region55: #{decoder_forward.1} parent=11 // pred_region
          _
        $region56: #{decoder_forward.1} parent=11 // pred_fallthru
          _
        // Predicated region
        $region57: #{decoder_forward.1} parent=11 // pred_check
          %p693 = pneg %p401
        $region58: #{decoder_forward.1} parent=11 // pred_check_branch
          %695 = sbr.rel (%p693) target = $region60
        $region59: #{decoder_forward.1} parent=11 // pred_region
          %697 = vsyncadd [#allocation15], 0
          %s698 = sshll.u32 %s15, 4
          %s699 = int_to_ptr.hbm [resolvable:$true] %s698
          %s700 = sshll.u32 [#allocation14], 4
          %s701 = int_to_ptr.vmem [resolvable:$true] %s700
          %706 = dma.hbm_to_vmem [thread:$0]  %s699, 96, %s701, [#allocation15], 16, 16, 1
        $region60: #{decoder_forward.1} parent=11 // pred_fallthru
          _
        // Predicated region
        $region61: #{decoder_forward.1} parent=11 // pred_check
          %p707 = pneg %p422
        $region62: #{decoder_forward.1} parent=11 // pred_check_branch
          %709 = sbr.rel (%p707) target = $region64
        $region63: #{decoder_forward.1} parent=11 // pred_region
          %711 = vsyncadd [#allocation15], 0
          %s712 = sshll.u32 %s16, 4
          %s713 = int_to_ptr.hbm [resolvable:$true] %s712
          %s714 = sshll.u32 [#allocation16], 4
          %s715 = int_to_ptr.vmem [resolvable:$true] %s714
          %720 = dma.hbm_to_vmem [thread:$0]  %s713, 512, %s715, [#allocation15], 64, 64, 4
        $region64: #{decoder_forward.1} parent=11 // pred_fallthru
          _
        // Predicated region
        $region65: #{decoder_forward.1} parent=11 // pred_check
          %p721 = pneg %p443
        $region66: #{decoder_forward.1} parent=11 // pred_check_branch
          %723 = sbr.rel (%p721) target = $region68
        $region67: #{decoder_forward.1} parent=11 // pred_region
          %725 = vsyncadd [#allocation18], 0
          %s726 = sshll.u32 %s17, 4
          %s727 = int_to_ptr.hbm [resolvable:$true] %s726
          %s728 = sshll.u32 [#allocation17], 4
          %s729 = int_to_ptr.vmem [resolvable:$true] %s728
          %734 = dma.hbm_to_vmem [thread:$0]  %s727, 32, %s729, [#allocation18], 16, 16, 1
        $region68: #{decoder_forward.1} parent=11 // pred_fallthru
          _
        // Predicated region
        $region69: #{decoder_forward.1} parent=11 // pred_check
          %p735 = pneg %p464
        $region70: #{decoder_forward.1} parent=11 // pred_check_branch
          %737 = sbr.rel (%p735) target = $region72
        $region71: #{decoder_forward.1} parent=11 // pred_region
          _
        $region72: #{decoder_forward.1} parent=11 // pred_fallthru
          _
        // Predicated region
        $region73: #{decoder_forward.1} parent=11 // pred_check
          %p738 = pneg %p485
        $region74: #{decoder_forward.1} parent=11 // pred_check_branch
          %740 = sbr.rel (%p738) target = $region76
        $region75: #{decoder_forward.1} parent=11 // pred_region
          %742 = vsyncadd [#allocation18], 0
          %s743 = sshll.u32 %s19, 4
          %s744 = int_to_ptr.hbm [resolvable:$true] %s743
          %s745 = sshll.u32 [#allocation19], 4
          %s746 = int_to_ptr.vmem [resolvable:$true] %s745
          %751 = dma.hbm_to_vmem [thread:$0]  %s744, 32, %s746, [#allocation18], 16, 16, 1
        $region76: #{decoder_forward.1} parent=11 // pred_fallthru
          _
        // Predicated region
        $region77: #{decoder_forward.1} parent=11 // pred_check
          %p752 = pneg %p506
        $region78: #{decoder_forward.1} parent=11 // pred_check_branch
          %754 = sbr.rel (%p752) target = $region80
        $region79: #{decoder_forward.1} parent=11 // pred_region
          _
        $region80: #{decoder_forward.1} parent=11 // pred_fallthru
          _
        // Predicated region
        $region81: #{decoder_forward.1} parent=11 // pred_check
          %p755 = pneg %p527
        $region82: #{decoder_forward.1} parent=11 // pred_check_branch
          %757 = sbr.rel (%p755) target = $region84
        $region83: #{decoder_forward.1} parent=11 // pred_region
          %759 = vsyncadd [#allocation21], 0
          %s761 = sshll.u32 %s21, 4
          %s762 = int_to_ptr.hbm [resolvable:$true] %s761
          %s763 = sshll.u32 [#allocation20], 4
          %s764 = int_to_ptr.vmem [resolvable:$true] %s763
          %766 = dma.hbm_to_vmem [thread:$0]  %s762, 16, %s764, [#allocation21]
        $region84: #{decoder_forward.1} parent=11 // pred_fallthru
          _
      $region12: #{decoder_forward.1} parent=5 // pred_fallthru
        _
      %p767 = scmp.lt.s32.totalorder %s45, 2
      // Predicated region
      $region85: #{decoder_forward.1} parent=5 // pred_check
        %p768 = pneg %p767
      $region86: #{decoder_forward.1} parent=5 // pred_check_branch
        %770 = sbr.rel (%p768) target = $region88
      $region87: #{decoder_forward.1} parent=5 // pred_region
        // Predicated region
        $region89: #{decoder_forward.1} parent=87 // pred_check
          %p771 = pneg %p65
        $region90: #{decoder_forward.1} parent=87 // pred_check_branch
          %773 = sbr.rel (%p771) target = $region92
        $region91: #{decoder_forward.1} parent=87 // pred_region
          %p774 = scmp.lt.s32.totalorder %s45, 1
          %s775 = scalar_select %p774, %s45, 1
          %s776 = smul.addr %s775, 8
          %s777 = scalar_lea.vmem %s0, %s776
        $region92: #{decoder_forward.1} parent=87 // pred_fallthru
          _
        // Predicated region
        $region93: #{decoder_forward.1} parent=87 // pred_check
          %p778 = pneg %p91
        $region94: #{decoder_forward.1} parent=87 // pred_check_branch
          %780 = sbr.rel (%p778) target = $region96
        $region95: #{decoder_forward.1} parent=87 // pred_region
          %p781 = scmp.lt.s32.totalorder %s45, 1
          %s782 = scalar_select %p781, %s45, 1
          %s783 = smul.addr %s782, 2
          %s784 = smul.addr %s783, 8
          %s785 = scalar_lea.vmem %s1, %s784
        $region96: #{decoder_forward.1} parent=87 // pred_fallthru
          _
        // Predicated region
        $region97: #{decoder_forward.1} parent=87 // pred_check
          %p786 = pneg %p117
        $region98: #{decoder_forward.1} parent=87 // pred_check_branch
          %788 = sbr.rel (%p786) target = $region100
        $region99: #{decoder_forward.1} parent=87 // pred_region
          %s789 = sand.u32 %s107, 1
          %s790 = scalar_lea.sflag [#allocation3], %s789
          %s791 = sand.u32 %s107, 1
          %s792 = smul.addr %s791, 8
          %s793 = scalar_lea.vmem [#allocation2], %s792
          %795 = vsyncadd %s790, 0
          %s796 = smul.addr %s45, 8
          %s797 = scalar_lea.hbm %s2, %s796
          %s799 = sshll.u32 %s797, 4
          %s800 = int_to_ptr.hbm [resolvable:$true] %s799
          %s801 = sshll.u32 %s793, 4
          %s802 = int_to_ptr.vmem [resolvable:$true] %s801
          %804 = dma.hbm_to_vmem [thread:$0]  %s800, 128, %s802, %s790
        $region100: #{decoder_forward.1} parent=87 // pred_fallthru
          _
        // Predicated region
        $region101: #{decoder_forward.1} parent=87 // pred_check
          %p805 = pneg %p143
        $region102: #{decoder_forward.1} parent=87 // pred_check_branch
          %807 = sbr.rel (%p805) target = $region104
        $region103: #{decoder_forward.1} parent=87 // pred_region
          %p808 = scmp.lt.s32.totalorder %s45, 1
          %s809 = scalar_select %p808, %s45, 1
          %s810 = scalar_lea.vmem %s3, %s809
        $region104: #{decoder_forward.1} parent=87 // pred_fallthru
          _
      $region88: #{decoder_forward.1} parent=5 // pred_fallthru
        _
      %p811 = scmp.le.s32.totalorder 1, %s45
      %p812 = scmp.lt.s32.totalorder %s45, 3
      %p813 = pnand %p811, %p812
      %p814 = pneg %p813
      // Predicated region
      $region105: #{decoder_forward.1} parent=5 // pred_check
        _
      $region106: #{decoder_forward.1} parent=5 // pred_check_branch
        %816 = sbr.rel (%p813) target = $region108
      $region107: #{decoder_forward.1} parent=5 // pred_region
        %s817 = ssub.s32 %s45, 1
        %s818 = sand.u32 %s110, 1
        %s819 = scalar_lea.sflag [#allocation3], %s818
        %s820 = sand.u32 %s110, 1
        %s821 = smul.addr %s820, 8
        %s822 = scalar_lea.vmem [#allocation2], %s821
        // Predicated region
        $region109: #{decoder_forward.1} parent=107 // pred_check
          %p823 = pneg %p123
        $region110: #{decoder_forward.1} parent=107 // pred_check_branch
          %825 = sbr.rel (%p823) target = $region112
        $region111: #{decoder_forward.1} parent=107 // pred_region
          %827 = dma.done %s819, 128
        $region112: #{decoder_forward.1} parent=107 // pred_fallthru
          _
        // Predicated region
        $region113: #{decoder_forward.1} parent=107 // pred_check
          %p828 = pneg %p170
        $region114: #{decoder_forward.1} parent=107 // pred_check_branch
          %830 = sbr.rel (%p828) target = $region116
        $region115: #{decoder_forward.1} parent=107 // pred_region
          %832 = dma.done [#allocation6], 96
        $region116: #{decoder_forward.1} parent=107 // pred_fallthru
          _
        // Predicated region
        $region117: #{decoder_forward.1} parent=107 // pred_check
          %p833 = pneg %p191
        $region118: #{decoder_forward.1} parent=107 // pred_check_branch
          %835 = sbr.rel (%p833) target = $region120
        $region119: #{decoder_forward.1} parent=107 // pred_region
          %837 = dma.done [#allocation6], 96
        $region120: #{decoder_forward.1} parent=107 // pred_fallthru
          _
        // Predicated region
        $region121: #{decoder_forward.1} parent=107 // pred_check
          %p838 = pneg %p233
        $region122: #{decoder_forward.1} parent=107 // pred_check_branch
          %840 = sbr.rel (%p838) target = $region124
        $region123: #{decoder_forward.1} parent=107 // pred_region
          %842 = dma.done [#allocation9], 64
        $region124: #{decoder_forward.1} parent=107 // pred_fallthru
          _
        // Predicated region
        $region125: #{decoder_forward.1} parent=107 // pred_check
          %p843 = pneg %p275
        $region126: #{decoder_forward.1} parent=107 // pred_check_branch
          %845 = sbr.rel (%p843) target = $region128
        $region127: #{decoder_forward.1} parent=107 // pred_region
          %847 = dma.done [#allocation9], 64
        $region128: #{decoder_forward.1} parent=107 // pred_fallthru
          _
        // Predicated region
        $region129: #{decoder_forward.1} parent=107 // pred_check
          %p848 = pneg %p296
        $region130: #{decoder_forward.1} parent=107 // pred_check_branch
          %850 = sbr.rel (%p848) target = $region132
        $region131: #{decoder_forward.1} parent=107 // pred_region
          %852 = dma.done [#allocation12], 1024
        $region132: #{decoder_forward.1} parent=107 // pred_fallthru
          _
        // Predicated region
        $region133: #{decoder_forward.1} parent=107 // pred_check
          %p853 = pneg %p317
        $region134: #{decoder_forward.1} parent=107 // pred_check_branch
          %855 = sbr.rel (%p853) target = $region136
        $region135: #{decoder_forward.1} parent=107 // pred_region
          %857 = dma.done [#allocation12], 64
        $region136: #{decoder_forward.1} parent=107 // pred_fallthru
          _
        // Predicated region
        $region137: #{decoder_forward.1} parent=107 // pred_check
          %p858 = pneg %p401
        $region138: #{decoder_forward.1} parent=107 // pred_check_branch
          %860 = sbr.rel (%p858) target = $region140
        $region139: #{decoder_forward.1} parent=107 // pred_region
          %862 = dma.done [#allocation15], 96
        $region140: #{decoder_forward.1} parent=107 // pred_fallthru
          _
        // Predicated region
        $region141: #{decoder_forward.1} parent=107 // pred_check
          %p863 = pneg %p422
        $region142: #{decoder_forward.1} parent=107 // pred_check_branch
          %865 = sbr.rel (%p863) target = $region144
        $region143: #{decoder_forward.1} parent=107 // pred_region
          %867 = dma.done [#allocation15], 512
        $region144: #{decoder_forward.1} parent=107 // pred_fallthru
          _
        // Predicated region
        $region145: #{decoder_forward.1} parent=107 // pred_check
          %p868 = pneg %p443
        $region146: #{decoder_forward.1} parent=107 // pred_check_branch
          %870 = sbr.rel (%p868) target = $region148
        $region147: #{decoder_forward.1} parent=107 // pred_region
          %872 = dma.done [#allocation18], 32
        $region148: #{decoder_forward.1} parent=107 // pred_fallthru
          _
        // Predicated region
        $region149: #{decoder_forward.1} parent=107 // pred_check
          %p873 = pneg %p485
        $region150: #{decoder_forward.1} parent=107 // pred_check_branch
          %875 = sbr.rel (%p873) target = $region152
        $region151: #{decoder_forward.1} parent=107 // pred_region
          %877 = dma.done [#allocation18], 32
        $region152: #{decoder_forward.1} parent=107 // pred_fallthru
          _
        // Predicated region
        $region153: #{decoder_forward.1} parent=107 // pred_check
          %p878 = pneg %p527
        $region154: #{decoder_forward.1} parent=107 // pred_check_branch
          %880 = sbr.rel (%p878) target = $region156
        $region155: #{decoder_forward.1} parent=107 // pred_region
          %882 = dma.done [#allocation21], 16
        $region156: #{decoder_forward.1} parent=107 // pred_fallthru
          _
        %p883 = scmp.lt.s32.totalorder %s50, 1
        %s884 = scalar_select %p883, %s50, 1
        %s885 = smul.addr %s884, 8
        %s886 = scalar_lea.vmem %s0, %s885
        %p887 = pneg %p71
        %p888 = pneg %p68
        %p889 = scmp.lt.s32.totalorder %s50, 1
        %s890 = scalar_select %p889, %s50, 1
        %s891 = smul.addr %s890, 2
        %s892 = smul.addr %s891, 8
        %s893 = scalar_lea.vmem %s1, %s892
        %p894 = pneg %p97
        %p895 = pneg %p94
        %s896 = sand.u32 %s110, 1
        %s897 = scalar_lea.sflag [#allocation3], %s896
        %s898 = sand.u32 %s110, 1
        %s899 = smul.addr %s898, 8
        %s900 = scalar_lea.vmem [#allocation2], %s899
        %p901 = pneg %p123
        %p902 = pneg %p120
        %p903 = scmp.lt.s32.totalorder %s50, 1
        %s904 = scalar_select %p903, %s50, 1
        %s905 = scalar_lea.vmem %s3, %s904
        %p906 = pneg %p149
        %p907 = pneg %p146
        %p908 = pneg %p170
        %p909 = pneg %p167
        %p910 = pneg %p191
        %p911 = pneg %p188
        %p912 = pneg %p212
        %p913 = pneg %p209
        %p914 = pneg %p233
        %p915 = pneg %p230
        %p916 = pneg %p254
        %p917 = pneg %p251
        %p918 = pneg %p275
        %p919 = pneg %p272
        %p920 = pneg %p296
        %p921 = pneg %p293
        %p922 = pneg %p317
        %p923 = pneg %p314
        %p924 = pneg %p338
        %p925 = pneg %p335
        %p926 = pneg %p359
        %p927 = pneg %p356
        %p928 = pneg %p380
        %p929 = pneg %p377
        %p930 = pneg %p401
        %p931 = pneg %p398
        %p932 = pneg %p422
        %p933 = pneg %p419
        %p934 = pneg %p443
        %p935 = pneg %p440
        %p936 = pneg %p464
        %p937 = pneg %p461
        %p938 = pneg %p485
        %p939 = pneg %p482
        %p940 = pneg %p506
        %p941 = pneg %p503
        %p942 = pneg %p527
        %p943 = pneg %p524
        %p944 = pneg %p553
        %p945 = pneg %p550
        %s946 = sand.u32 %s540, 1
        %s947 = scalar_lea.sflag [#allocation4], %s946
        %s948 = sand.u32 %s540, 1
        %s949 = smul.addr %s948, 8
        %s950 = scalar_lea.vmem [#allocation22], %s949
        %p951 = pneg %p579
        %p952 = pneg %p576
        %s953 = sand.u32 %s566, 1
        %s954 = scalar_lea.sflag [#allocation24], %s953
        %s955 = sand.u32 %s566, 1
        %s956 = smul.addr %s955, 32
        %s957 = scalar_lea.vmem [#allocation23], %s956
        %p958 = scmp.lt.s32.totalorder %s50, 1
        %s959 = scalar_select %p958, %s50, 1
        %s960 = smul.addr %s959, 8
        %s961 = scalar_lea.vmem %s0, %s960
        %p962 = scmp.lt.s32.totalorder %s50, 1
        %s963 = scalar_select %p962, %s50, 1
        %s964 = smul.addr %s963, 2
        %s965 = smul.addr %s964, 8
        %s966 = scalar_lea.vmem %s1, %s965
        %p967 = scmp.lt.s32.totalorder %s50, 1
        %s968 = scalar_select %p967, %s50, 1
        %s969 = scalar_lea.vmem %s3, %s968
        %v971 = vld [vmem:[%s822] sm:$0xff]
        %vm972 = vcmp.ne.f32.partialorder %v971, 0.0
        %v973 = vsel %vm972, 0.0, -1e+10
        %v974 = vld [vmem:[%s969] sm:$0x1]
        %vm975 = vcmp.ne.f32.partialorder %v974, 0.0
        %v976 = vsel %vm975, 0.0, -1e+10
        %v977 = vld [vmem:[%s966] sm:$0xff]
        %v978 = vld [vmem:[%s966 + $0x8] sm:$0x3]
        %v979 = vld [vmem:[%s961] sm:$0xff]
        %v980 = vld [vmem:[#allocation5] sm:$0x1]
        %v981 = vld [vmem:[#allocation7] sm:$0x1]
        %vm982 = vcmask 261120
        %v983 = vsel %vm982, %v979, 0.0
        %984 = vadd.xlane.f32.xlu0 %v983
        %v985 = vpop.xlane.xlu0 %984
        %v986 = vrcp.pop 32.0
        %v987 = vmul.f32 32.0, %v986
        %v988 = vsub.f32 1.0, %v987
        %v989 = vmul.f32 %v986, %v988
        %v990 = vadd.f32 %v986, %v989
        %vm991 = vweird.f32 %v986
        %v992 = vsel %vm991, %v986, %v990
        %v993 = vmul.f32 %v985, %v992
        %v994 = vsub.f32 %v979, %v993
        %v995 = vmul.f32 %v994, %v994
        %v996 = vsel %vm982, %v995, 0.0
        %997 = vadd.xlane.f32.xlu0 %v996
        %v998 = vpop.xlane.xlu0 %997
        %v999 = vmul.f32 %v998, %v992
        %v1000 = vadd.f32 %v999, 1e-05
        %v1001 = vrsqrt.pop %v1000
        %v1002 = vmul.f32 %v1001, %v1000
        %v1003 = vmul.f32 %v1002, %v1001
        %v1004 = vmul.f32 0.5, %v1003
        %v1005 = vsub.f32 1.5, %v1004
        %v1006 = vmul.f32 %v1001, %v1005
        %vm1007 = vweird.f32 %v1000
        %vm1008 = vweird.f32 %v1001
        %vm1009 = vmor %vm1007, %vm1008
        %v1010 = vsel %vm1009, %v1001, %v1006
        %v1011 = vmul.f32 %v994, %v1010
        %v1013 = vperm.slane %v980, 0
        %v1015 = vmul.f32 %v1011, %v1013
        %v1017 = vperm.slane %v981, 0
        %v1019 = vadd.f32 %v1015, %v1017
        %v1020 = vld [vmem:[%s6] sm:$0xf]
        %v1021 = vld [vmem:[%s6 + $0x4] sm:$0xf]
        %v1022 = vld [vmem:[%s6 + $0x8] sm:$0xf]
        %v1023 = vld [vmem:[%s6 + $0xc] sm:$0xf]
        %v1024 = vld [vmem:[#allocation8] sm:$0x1]
        %v1025 = vld [vmem:[%s8] sm:$0xf]
        %v1026 = vld [vmem:[%s8 + $0x4] sm:$0xf]
        %v1027 = vld [vmem:[%s8 + $0x8] sm:$0xf]
        %v1028 = vld [vmem:[%s8 + $0xc] sm:$0xf]
        %v1029 = vld [vmem:[#allocation10] sm:$0x1]
        %v1030 = vld [vmem:[#allocation11] sm:$0xf]
        %v1031 = vld [vmem:[#allocation11 + $0x4] sm:$0xf]
        %v1032 = vld [vmem:[#allocation11 + $0x8] sm:$0xf]
        %v1033 = vld [vmem:[#allocation11 + $0xc] sm:$0xf]
        %v1034 = vld [vmem:[#allocation13] sm:$0x1]
        %v1035 = vpack.c.bf16 %v1019, %v1019
        %v1037 = vperm.slane %v1024, 0
        %v1043 = vunpack.c.l.b16 %v1020
        %v1044 = vunpack.c.l.b16 %v1021
        %v1045 = vunpack.c.l.b16 %v1022
        %v1046 = vunpack.c.l.b16 %v1023
        %v1047 = vpack.c.b16 %v1044, %v1043
        %v1048 = vpack.c.b16 %v1046, %v1045
        %v1052 = vsel %vm982, %v1035, 0
        %1054 = vmatpush.bf16.msra.mxu0 0
        %1055 = vmatpush.bf16.msra.mxu0 0
        %1056 = vmatpush.bf16.msra.mxu0 0
        %1057 = vmatpush.bf16.msra.mxu0 0
        %1058 = vmatpush.bf16.msra.mxu0 0
        %1059 = vmatpush.bf16.msra.mxu0 0
        %1060 = vmatpush.bf16.msra.mxu0 %v1048
        %1061 = vmatpush.bf16.msra.mxu0 %v1047
        %1062 = vmatmul.bf16.gmra.mxu0 %v1052
        %v1063 = vpop.f32.mrf.mxu0
        %v1064 = vadd.f32 %v1037, %v1063
        %v1065 = vpop.f32.mrf.mxu0
        %1066 = vdwg.mxu0
        %v1067 = vmul.f32 %v1064, 0.35355338
        %v1069 = vperm.slane %v1029, 0
        %v1075 = vunpack.c.l.b16 %v1025
        %v1076 = vunpack.c.l.b16 %v1026
        %v1077 = vunpack.c.l.b16 %v1027
        %v1078 = vunpack.c.l.b16 %v1028
        %v1079 = vpack.c.b16 %v1076, %v1075
        %v1080 = vpack.c.b16 %v1078, %v1077
        %1083 = vmatpush.bf16.msra.mxu0 0
        %1084 = vmatpush.bf16.msra.mxu0 0
        %1085 = vmatpush.bf16.msra.mxu0 0
        %1086 = vmatpush.bf16.msra.mxu0 0
        %1087 = vmatpush.bf16.msra.mxu0 0
        %1088 = vmatpush.bf16.msra.mxu0 0
        %1089 = vmatpush.bf16.msra.mxu0 %v1080
        %1090 = vmatpush.bf16.msra.mxu0 %v1079
        %1091 = vmatmul.bf16.gmra.mxu0 %v1052
        %v1092 = vpop.f32.mrf.mxu0
        %v1093 = vadd.f32 %v1069, %v1092
        %v1094 = vpop.f32.mrf.mxu0
        %1095 = vdwg.mxu0
        %vm1096 = vcmask 64512
        %v1098 = vsel %vm1096, %v1067, 0
        %v1101 = vsel %vm1096, %v1093, 0
        %1103 = vmatpush.xpose.msra.mxu0 0.0
        %1104 = vmatpush.xpose.msra.mxu0 0.0
        %1105 = vmatpush.xpose.msra.mxu0 0.0
        %1106 = vmatpush.xpose.msra.mxu0 0.0
        %1107 = vmatpush.xpose.msra.mxu0 0.0
        %1108 = vmatpush.xpose.msra.mxu0 0.0
        %1109 = vmatpush.xpose.msra.mxu0 0.0
        %1110 = vmatpush.xpose.msra.mxu0 0.0
        %1111 = vmatpush.xpose.msra.mxu0 0.0
        %1112 = vmatpush.xpose.msra.mxu0 0.0
        %1113 = vmatpush.xpose.msra.mxu0 0.0
        %1114 = vmatpush.xpose.msra.mxu0 0.0
        %1115 = vmatpush.xpose.msra.mxu0 0.0
        %1116 = vmatpush.xpose.msra.mxu0 0.0
        %1117 = vmatpush.xpose.msra.mxu0 0.0
        %1118 = vmatpush.xpose.msra.mxu0 %v1101
        %1119 = vmatmul.f32.gmra.mxu0 %v1098
        %v1120 = vpop.f32.mrf.mxu0
        %v1121 = vadd.f32 %v973, %v1120
        %1122 = vdwg.mxu0
        %v1123 = vsel %vm1096, %v1121, -inf
        %1124 = vmax.xlane.f32.xlu0 %v1123
        %v1125 = vpop.xlane.xlu0 %1124
        %v1126 = vsub.f32 %v1121, %v1125
        %v1127 = vmul.f32 %v1126, 1.442695
        %v1128 = vpow.pop %v1127
        %v1129 = vsel %vm1096, %v1128, 0.0
        %1130 = vadd.xlane.f32.xlu0 %v1129
        %v1131 = vpop.xlane.xlu0 %1130
        %v1132 = vrcp.pop %v1131
        %v1133 = vmul.f32 %v1131, %v1132
        %v1134 = vsub.f32 1.0, %v1133
        %v1135 = vmul.f32 %v1132, %v1134
        %v1136 = vadd.f32 %v1132, %v1135
        %vm1137 = vweird.f32 %v1131
        %vm1138 = vweird.f32 %v1132
        %vm1139 = vmor %vm1137, %vm1138
        %v1140 = vsel %vm1139, %v1132, %v1136
        %v1141 = vand.u32 2147483647, %v1131
        %vm1142 = vcmp.eq.f32.partialorder %v1141, 8.507059e+37
        %v1143 = vand.u32 %v1131, 2147483648
        %v1144 = vor.u32 1.1754944e-38, %v1143
        %v1145 = vsel %vm1142, %v1144, %v1140
        %v1146 = vmul.f32 %v1128, %v1145
        %1147 = vrot.lane.b32.xlu0 %v1093, 96
        %v1148 = vpop.permute.xlu0 %1147
        %v1151 = vsel %vm1096, %v1146, 0
        %1153 = vmatpush.msra.mxu0 0.0
        %1154 = vmatpush.msra.mxu0 0.0
        %1155 = vmatpush.msra.mxu0 0.0
        %1156 = vmatpush.msra.mxu0 0.0
        %1157 = vmatpush.msra.mxu0 0.0
        %1158 = vmatpush.msra.mxu0 0.0
        %1159 = vmatpush.msra.mxu0 0.0
        %1160 = vmatpush.msra.mxu0 0.0
        %1161 = vmatpush.msra.mxu0 0.0
        %1162 = vmatpush.msra.mxu0 0.0
        %1163 = vmatpush.msra.mxu0 0.0
        %1164 = vmatpush.msra.mxu0 0.0
        %1165 = vmatpush.msra.mxu0 0.0
        %1166 = vmatpush.msra.mxu0 0.0
        %1167 = vmatpush.msra.mxu0 0.0
        %1168 = vmatpush.msra.mxu0 %v1148
        %1169 = vmatmul.f32.gmra.mxu0 %v1151
        %v1170 = vpop.f32.mrf.mxu0
        %v1171 = vadd.f32 0.0, %v1170
        %1172 = vdwg.mxu0
        %1173 = vrot.lane.b32.xlu0 %v1067, 120
        %v1174 = vpop.permute.xlu0 %1173
        %1175 = vrot.lane.b32.xlu0 %v1093, 120
        %v1176 = vpop.permute.xlu0 %1175
        %v1177 = vsel %vm1096, %v1174, 0
        %v1179 = vsel %vm1096, %v1176, 0
        %1181 = vmatpush.xpose.msra.mxu0 0.0
        %1182 = vmatpush.xpose.msra.mxu0 0.0
        %1183 = vmatpush.xpose.msra.mxu0 0.0
        %1184 = vmatpush.xpose.msra.mxu0 0.0
        %1185 = vmatpush.xpose.msra.mxu0 0.0
        %1186 = vmatpush.xpose.msra.mxu0 0.0
        %1187 = vmatpush.xpose.msra.mxu0 0.0
        %1188 = vmatpush.xpose.msra.mxu0 0.0
        %1189 = vmatpush.xpose.msra.mxu0 0.0
        %1190 = vmatpush.xpose.msra.mxu0 0.0
        %1191 = vmatpush.xpose.msra.mxu0 0.0
        %1192 = vmatpush.xpose.msra.mxu0 0.0
        %1193 = vmatpush.xpose.msra.mxu0 0.0
        %1194 = vmatpush.xpose.msra.mxu0 0.0
        %1195 = vmatpush.xpose.msra.mxu0 0.0
        %1196 = vmatpush.xpose.msra.mxu0 %v1179
        %1197 = vmatmul.f32.gmra.mxu0 %v1177
        %v1198 = vpop.f32.mrf.mxu0
        %v1199 = vadd.f32 %v973, %v1198
        %1200 = vdwg.mxu0
        %v1201 = vsel %vm1096, %v1199, -inf
        %1202 = vmax.xlane.f32.xlu0 %v1201
        %v1203 = vpop.xlane.xlu0 %1202
        %v1204 = vsub.f32 %v1199, %v1203
        %v1205 = vmul.f32 %v1204, 1.442695
        %v1206 = vpow.pop %v1205
        %v1207 = vsel %vm1096, %v1206, 0.0
        %1208 = vadd.xlane.f32.xlu0 %v1207
        %v1209 = vpop.xlane.xlu0 %1208
        %v1210 = vrcp.pop %v1209
        %v1211 = vmul.f32 %v1209, %v1210
        %v1212 = vsub.f32 1.0, %v1211
        %v1213 = vmul.f32 %v1210, %v1212
        %v1214 = vadd.f32 %v1210, %v1213
        %vm1215 = vweird.f32 %v1209
        %vm1216 = vweird.f32 %v1210
        %vm1217 = vmor %vm1215, %vm1216
        %v1218 = vsel %vm1217, %v1210, %v1214
        %v1219 = vand.u32 2147483647, %v1209
        %vm1220 = vcmp.eq.f32.partialorder %v1219, 8.507059e+37
        %v1221 = vand.u32 %v1209, 2147483648
        %v1222 = vor.u32 1.1754944e-38, %v1221
        %v1223 = vsel %vm1220, %v1222, %v1218
        %v1224 = vmul.f32 %v1206, %v1223
        %1225 = vrot.lane.b32.xlu0 %v1093, 88
        %v1226 = vpop.permute.xlu0 %1225
        %v1229 = vsel %vm1096, %v1224, 0
        %1231 = vmatpush.msra.mxu0 0.0
        %1232 = vmatpush.msra.mxu0 0.0
        %1233 = vmatpush.msra.mxu0 0.0
        %1234 = vmatpush.msra.mxu0 0.0
        %1235 = vmatpush.msra.mxu0 0.0
        %1236 = vmatpush.msra.mxu0 0.0
        %1237 = vmatpush.msra.mxu0 0.0
        %1238 = vmatpush.msra.mxu0 0.0
        %1239 = vmatpush.msra.mxu0 0.0
        %1240 = vmatpush.msra.mxu0 0.0
        %1241 = vmatpush.msra.mxu0 0.0
        %1242 = vmatpush.msra.mxu0 0.0
        %1243 = vmatpush.msra.mxu0 0.0
        %1244 = vmatpush.msra.mxu0 0.0
        %1245 = vmatpush.msra.mxu0 0.0
        %1246 = vmatpush.msra.mxu0 %v1226
        %1247 = vmatmul.f32.gmra.mxu0 %v1229
        %v1248 = vpop.f32.mrf.mxu0
        %v1249 = vadd.f32 0.0, %v1248
        %1250 = vdwg.mxu0
        %1251 = vrot.lane.b32.xlu0 %v1067, 112
        %v1252 = vpop.permute.xlu0 %1251
        %1253 = vrot.lane.b32.xlu0 %v1093, 112
        %v1254 = vpop.permute.xlu0 %1253
        %v1255 = vsel %vm1096, %v1252, 0
        %v1257 = vsel %vm1096, %v1254, 0
        %1259 = vmatpush.xpose.msra.mxu0 0.0
        %1260 = vmatpush.xpose.msra.mxu0 0.0
        %1261 = vmatpush.xpose.msra.mxu0 0.0
        %1262 = vmatpush.xpose.msra.mxu0 0.0
        %1263 = vmatpush.xpose.msra.mxu0 0.0
        %1264 = vmatpush.xpose.msra.mxu0 0.0
        %1265 = vmatpush.xpose.msra.mxu0 0.0
        %1266 = vmatpush.xpose.msra.mxu0 0.0
        %1267 = vmatpush.xpose.msra.mxu0 0.0
        %1268 = vmatpush.xpose.msra.mxu0 0.0
        %1269 = vmatpush.xpose.msra.mxu0 0.0
        %1270 = vmatpush.xpose.msra.mxu0 0.0
        %1271 = vmatpush.xpose.msra.mxu0 0.0
        %1272 = vmatpush.xpose.msra.mxu0 0.0
        %1273 = vmatpush.xpose.msra.mxu0 0.0
        %1274 = vmatpush.xpose.msra.mxu0 %v1257
        %1275 = vmatmul.f32.gmra.mxu0 %v1255
        %v1276 = vpop.f32.mrf.mxu0
        %v1277 = vadd.f32 %v973, %v1276
        %1278 = vdwg.mxu0
        %v1279 = vsel %vm1096, %v1277, -inf
        %1280 = vmax.xlane.f32.xlu0 %v1279
        %v1281 = vpop.xlane.xlu0 %1280
        %v1282 = vsub.f32 %v1277, %v1281
        %v1283 = vmul.f32 %v1282, 1.442695
        %v1284 = vpow.pop %v1283
        %v1285 = vsel %vm1096, %v1284, 0.0
        %1286 = vadd.xlane.f32.xlu0 %v1285
        %v1287 = vpop.xlane.xlu0 %1286
        %v1288 = vrcp.pop %v1287
        %v1289 = vmul.f32 %v1287, %v1288
        %v1290 = vsub.f32 1.0, %v1289
        %v1291 = vmul.f32 %v1288, %v1290
        %v1292 = vadd.f32 %v1288, %v1291
        %vm1293 = vweird.f32 %v1287
        %vm1294 = vweird.f32 %v1288
        %vm1295 = vmor %vm1293, %vm1294
        %v1296 = vsel %vm1295, %v1288, %v1292
        %v1297 = vand.u32 2147483647, %v1287
        %vm1298 = vcmp.eq.f32.partialorder %v1297, 8.507059e+37
        %v1299 = vand.u32 %v1287, 2147483648
        %v1300 = vor.u32 1.1754944e-38, %v1299
        %v1301 = vsel %vm1298, %v1300, %v1296
        %v1302 = vmul.f32 %v1284, %v1301
        %1303 = vrot.lane.b32.xlu0 %v1093, 80
        %v1304 = vpop.permute.xlu0 %1303
        %v1307 = vsel %vm1096, %v1302, 0
        %1309 = vmatpush.msra.mxu0 0.0
        %1310 = vmatpush.msra.mxu0 0.0
        %1311 = vmatpush.msra.mxu0 0.0
        %1312 = vmatpush.msra.mxu0 0.0
        %1313 = vmatpush.msra.mxu0 0.0
        %1314 = vmatpush.msra.mxu0 0.0
        %1315 = vmatpush.msra.mxu0 0.0
        %1316 = vmatpush.msra.mxu0 0.0
        %1317 = vmatpush.msra.mxu0 0.0
        %1318 = vmatpush.msra.mxu0 0.0
        %1319 = vmatpush.msra.mxu0 0.0
        %1320 = vmatpush.msra.mxu0 0.0
        %1321 = vmatpush.msra.mxu0 0.0
        %1322 = vmatpush.msra.mxu0 0.0
        %1323 = vmatpush.msra.mxu0 0.0
        %1324 = vmatpush.msra.mxu0 %v1304
        %1325 = vmatmul.f32.gmra.mxu0 %v1307
        %v1326 = vpop.f32.mrf.mxu0
        %v1327 = vadd.f32 0.0, %v1326
        %1328 = vdwg.mxu0
        %1329 = vrot.lane.b32.xlu0 %v1067, 104
        %v1330 = vpop.permute.xlu0 %1329
        %1331 = vrot.lane.b32.xlu0 %v1093, 104
        %v1332 = vpop.permute.xlu0 %1331
        %v1333 = vsel %vm1096, %v1330, 0
        %v1335 = vsel %vm1096, %v1332, 0
        %1337 = vmatpush.xpose.msra.mxu0 0.0
        %1338 = vmatpush.xpose.msra.mxu0 0.0
        %1339 = vmatpush.xpose.msra.mxu0 0.0
        %1340 = vmatpush.xpose.msra.mxu0 0.0
        %1341 = vmatpush.xpose.msra.mxu0 0.0
        %1342 = vmatpush.xpose.msra.mxu0 0.0
        %1343 = vmatpush.xpose.msra.mxu0 0.0
        %1344 = vmatpush.xpose.msra.mxu0 0.0
        %1345 = vmatpush.xpose.msra.mxu0 0.0
        %1346 = vmatpush.xpose.msra.mxu0 0.0
        %1347 = vmatpush.xpose.msra.mxu0 0.0
        %1348 = vmatpush.xpose.msra.mxu0 0.0
        %1349 = vmatpush.xpose.msra.mxu0 0.0
        %1350 = vmatpush.xpose.msra.mxu0 0.0
        %1351 = vmatpush.xpose.msra.mxu0 0.0
        %1352 = vmatpush.xpose.msra.mxu0 %v1335
        %1353 = vmatmul.f32.gmra.mxu0 %v1333
        %v1354 = vpop.f32.mrf.mxu0
        %v1355 = vadd.f32 %v973, %v1354
        %1356 = vdwg.mxu0
        %v1357 = vsel %vm1096, %v1355, -inf
        %1358 = vmax.xlane.f32.xlu0 %v1357
        %v1359 = vpop.xlane.xlu0 %1358
        %v1360 = vsub.f32 %v1355, %v1359
        %v1361 = vmul.f32 %v1360, 1.442695
        %v1362 = vpow.pop %v1361
        %v1363 = vsel %vm1096, %v1362, 0.0
        %1364 = vadd.xlane.f32.xlu0 %v1363
        %v1365 = vpop.xlane.xlu0 %1364
        %v1366 = vrcp.pop %v1365
        %v1367 = vmul.f32 %v1365, %v1366
        %v1368 = vsub.f32 1.0, %v1367
        %v1369 = vmul.f32 %v1366, %v1368
        %v1370 = vadd.f32 %v1366, %v1369
        %vm1371 = vweird.f32 %v1365
        %vm1372 = vweird.f32 %v1366
        %vm1373 = vmor %vm1371, %vm1372
        %v1374 = vsel %vm1373, %v1366, %v1370
        %v1375 = vand.u32 2147483647, %v1365
        %vm1376 = vcmp.eq.f32.partialorder %v1375, 8.507059e+37
        %v1377 = vand.u32 %v1365, 2147483648
        %v1378 = vor.u32 1.1754944e-38, %v1377
        %v1379 = vsel %vm1376, %v1378, %v1374
        %v1380 = vmul.f32 %v1362, %v1379
        %1381 = vrot.lane.b32.xlu0 %v1093, 72
        %v1382 = vpop.permute.xlu0 %1381
        %v1385 = vsel %vm1096, %v1380, 0
        %1387 = vmatpush.msra.mxu0 0.0
        %1388 = vmatpush.msra.mxu0 0.0
        %1389 = vmatpush.msra.mxu0 0.0
        %1390 = vmatpush.msra.mxu0 0.0
        %1391 = vmatpush.msra.mxu0 0.0
        %1392 = vmatpush.msra.mxu0 0.0
        %1393 = vmatpush.msra.mxu0 0.0
        %1394 = vmatpush.msra.mxu0 0.0
        %1395 = vmatpush.msra.mxu0 0.0
        %1396 = vmatpush.msra.mxu0 0.0
        %1397 = vmatpush.msra.mxu0 0.0
        %1398 = vmatpush.msra.mxu0 0.0
        %1399 = vmatpush.msra.mxu0 0.0
        %1400 = vmatpush.msra.mxu0 0.0
        %1401 = vmatpush.msra.mxu0 0.0
        %1402 = vmatpush.msra.mxu0 %v1382
        %1403 = vmatmul.f32.gmra.mxu0 %v1385
        %v1404 = vpop.f32.mrf.mxu0
        %v1405 = vadd.f32 0.0, %v1404
        %1406 = vdwg.mxu0
        %1408 = vrot.lane.b32.xlu0 %v1249, 8
        %v1409 = vpop.permute.xlu0 %1408
        %1412 = vrot.lane.b32.xlu0 %v1327, 16
        %v1413 = vpop.permute.xlu0 %1412
        %1416 = vrot.lane.b32.xlu0 %v1405, 24
        %v1417 = vpop.permute.xlu0 %1416
        %v1419 = vsel %vm1096, %v1171, %v1409
        %vm1420 = vcmask 130048
        %v1421 = vsel %vm1420, %v1419, %v1413
        %vm1422 = vcmask 195584
        %v1423 = vsel %vm1422, %v1421, %v1417
        %v1424 = vpack.c.bf16 %v1423, %v1423
        %v1426 = vperm.slane %v1034, 0
        %v1432 = vunpack.c.l.b16 %v1030
        %v1433 = vunpack.c.l.b16 %v1031
        %v1434 = vunpack.c.l.b16 %v1032
        %v1435 = vunpack.c.l.b16 %v1033
        %v1436 = vpack.c.b16 %v1433, %v1432
        %v1437 = vpack.c.b16 %v1435, %v1434
        %v1441 = vsel %vm982, %v1424, 0
        %1443 = vmatpush.bf16.msra.mxu0 0
        %1444 = vmatpush.bf16.msra.mxu0 0
        %1445 = vmatpush.bf16.msra.mxu0 0
        %1446 = vmatpush.bf16.msra.mxu0 0
        %1447 = vmatpush.bf16.msra.mxu0 0
        %1448 = vmatpush.bf16.msra.mxu0 0
        %1449 = vmatpush.bf16.msra.mxu0 %v1437
        %1450 = vmatpush.bf16.msra.mxu0 %v1436
        %1451 = vmatmul.bf16.gmra.mxu0 %v1441
        %v1452 = vpop.f32.mrf.mxu0
        %v1453 = vadd.f32 %v1426, %v1452
        %v1454 = vpop.f32.mrf.mxu0
        %1455 = vdwg.mxu0
        %v1456 = vld [vmem:[%s12] sm:$0xf]
        %v1457 = vld [vmem:[%s12 + $0x4] sm:$0xf]
        %v1458 = vld [vmem:[%s12 + $0x8] sm:$0xf]
        %v1459 = vld [vmem:[%s12 + $0xc] sm:$0xf]
        %v1460 = vld [vmem:[%s13] sm:$0xf]
        %v1461 = vld [vmem:[%s13 + $0x4] sm:$0xf]
        %v1462 = vld [vmem:[%s13 + $0x8] sm:$0xf]
        %v1463 = vld [vmem:[%s13 + $0xc] sm:$0xf]
        %v1464 = vld [vmem:[%s14] sm:$0xf]
        %v1465 = vld [vmem:[%s14 + $0x4] sm:$0xf]
        %v1466 = vld [vmem:[%s14 + $0x8] sm:$0xf]
        %v1467 = vld [vmem:[%s14 + $0xc] sm:$0xf]
        %v1468 = vld [vmem:[#allocation14] sm:$0x1]
        %v1469 = vpack.c.bf16 %v1453, %v1453
        %v1474 = vunpack.c.l.b16 %v1456
        %v1475 = vunpack.c.l.b16 %v1457
        %v1476 = vunpack.c.l.b16 %v1458
        %v1477 = vunpack.c.l.b16 %v1459
        %v1478 = vpack.c.b16 %v1475, %v1474
        %v1479 = vpack.c.b16 %v1477, %v1476
        %v1483 = vsel %vm982, %v1469, 0
        %1485 = vmatpush.bf16.msra.mxu0 0
        %1486 = vmatpush.bf16.msra.mxu0 0
        %1487 = vmatpush.bf16.msra.mxu0 0
        %1488 = vmatpush.bf16.msra.mxu0 0
        %1489 = vmatpush.bf16.msra.mxu0 0
        %1490 = vmatpush.bf16.msra.mxu0 0
        %1491 = vmatpush.bf16.msra.mxu0 %v1479
        %1492 = vmatpush.bf16.msra.mxu0 %v1478
        %1493 = vmatmul.bf16.gmra.mxu0 %v1483
        %v1494 = vpop.f32.mrf.mxu0
        %v1495 = vadd.f32 0.0, %v1494
        %v1496 = vpop.f32.mrf.mxu0
        %1497 = vdwg.mxu0
        %v1502 = vunpack.c.l.b16 %v1460
        %v1503 = vunpack.c.l.b16 %v1461
        %v1504 = vunpack.c.l.b16 %v1462
        %v1505 = vunpack.c.l.b16 %v1463
        %v1506 = vpack.c.b16 %v1503, %v1502
        %v1507 = vpack.c.b16 %v1505, %v1504
        %1510 = vmatpush.bf16.msra.mxu0 0
        %1511 = vmatpush.bf16.msra.mxu0 0
        %1512 = vmatpush.bf16.msra.mxu0 0
        %1513 = vmatpush.bf16.msra.mxu0 0
        %1514 = vmatpush.bf16.msra.mxu0 0
        %1515 = vmatpush.bf16.msra.mxu0 0
        %1516 = vmatpush.bf16.msra.mxu0 %v1507
        %1517 = vmatpush.bf16.msra.mxu0 %v1506
        %1518 = vmatmul.bf16.gmra.mxu0 %v1052
        %v1519 = vpop.f32.mrf.mxu0
        %v1520 = vadd.f32 0.0, %v1519
        %v1521 = vpop.f32.mrf.mxu0
        %1522 = vdwg.mxu0
        %v1523 = vadd.f32 %v1495, %v1520
        %v1524 = vxor.u32 %v1523, 2147483648
        %v1525 = vmul.f32 %v1524, 1.442695
        %v1526 = vpow.pop %v1525
        %v1527 = vadd.f32 %v1526, 1.0
        %v1528 = vrcp.pop %v1527
        %v1529 = vmul.f32 %v1527, %v1528
        %v1530 = vsub.f32 1.0, %v1529
        %v1531 = vmul.f32 %v1528, %v1530
        %v1532 = vadd.f32 %v1528, %v1531
        %vm1533 = vweird.f32 %v1527
        %vm1534 = vweird.f32 %v1528
        %vm1535 = vmor %vm1533, %vm1534
        %v1536 = vsel %vm1535, %v1528, %v1532
        %v1537 = vand.u32 2147483647, %v1527
        %vm1538 = vcmp.eq.f32.partialorder %v1537, 8.507059e+37
        %v1539 = vand.u32 %v1527, 2147483648
        %v1540 = vor.u32 1.1754944e-38, %v1539
        %v1541 = vsel %vm1538, %v1540, %v1536
        %v1542 = vmul.f32 1.0, %v1541
        %v1544 = vperm.slane %v1468, 0
        %1545 = vrot.lane.b32.xlu0 %v1544, 32
        %v1546 = vpop.permute.xlu0 %1545
        %v1548 = vsub.f32 %v1523, %v1546
        %v1549 = vxor.u32 %v1548, 2147483648
        %v1550 = vmul.f32 %v1549, 1.442695
        %v1551 = vpow.pop %v1550
        %v1552 = vadd.f32 %v1551, 1.0
        %v1553 = vrcp.pop %v1552
        %v1554 = vmul.f32 %v1552, %v1553
        %v1555 = vsub.f32 1.0, %v1554
        %v1556 = vmul.f32 %v1553, %v1555
        %v1557 = vadd.f32 %v1553, %v1556
        %vm1558 = vweird.f32 %v1552
        %vm1559 = vweird.f32 %v1553
        %vm1560 = vmor %vm1558, %vm1559
        %v1561 = vsel %vm1560, %v1553, %v1557
        %v1562 = vand.u32 2147483647, %v1552
        %vm1563 = vcmp.eq.f32.partialorder %v1562, 8.507059e+37
        %v1564 = vand.u32 %v1552, 2147483648
        %v1565 = vor.u32 1.1754944e-38, %v1564
        %v1566 = vsel %vm1563, %v1565, %v1561
        %v1567 = vmul.f32 1.0, %v1566
        %v1568 = vmul.f32 %v1542, %v1019
        %v1569 = vpack.c.bf16 %v1568, %v1568
        %v1574 = vunpack.c.l.b16 %v1464
        %v1575 = vunpack.c.l.b16 %v1465
        %v1576 = vunpack.c.l.b16 %v1466
        %v1577 = vunpack.c.l.b16 %v1467
        %v1578 = vpack.c.b16 %v1575, %v1574
        %v1579 = vpack.c.b16 %v1577, %v1576
        %v1583 = vsel %vm982, %v1569, 0
        %1585 = vmatpush.bf16.msra.mxu0 0
        %1586 = vmatpush.bf16.msra.mxu0 0
        %1587 = vmatpush.bf16.msra.mxu0 0
        %1588 = vmatpush.bf16.msra.mxu0 0
        %1589 = vmatpush.bf16.msra.mxu0 0
        %1590 = vmatpush.bf16.msra.mxu0 0
        %1591 = vmatpush.bf16.msra.mxu0 %v1579
        %1592 = vmatpush.bf16.msra.mxu0 %v1578
        %1593 = vmatmul.bf16.gmra.mxu0 %v1583
        %v1594 = vpop.f32.mrf.mxu0
        %v1595 = vadd.f32 0.0, %v1594
        %v1596 = vpop.f32.mrf.mxu0
        %1597 = vdwg.mxu0
        %1599 = vrot.lane.b32.xlu0 %v1595, 64
        %v1600 = vpop.permute.xlu0 %1599
        %v1602 = vadd.f32 %v1495, %v1600
        %v1603 = vtanh.pop %v1602
        %v1604 = vsub.f32 1.0, %v1567
        %1606 = vrot.lane.b32.xlu0 %v1019, 32
        %v1607 = vpop.permute.xlu0 %1606
        %v1609 = vmul.f32 %v1604, %v1607
        %1611 = vrot.lane.b32.xlu0 %v1603, 96
        %v1612 = vpop.permute.xlu0 %1611
        %v1614 = vmul.f32 %v1567, %v1612
        %v1615 = vadd.f32 %v1609, %v1614
        %s1616 = scalar_lea.vmem [#allocation5], 1
        %v1617 = vld [vmem:[%s1616] sm:$0x1]
        %s1618 = scalar_lea.vmem [#allocation7], 1
        %v1619 = vld [vmem:[%s1618] sm:$0x1]
        %1621 = vrot.lane.b32.xlu0 %v1615, 96
        %v1622 = vpop.permute.xlu0 %1621
        %v1624 = vsel %vm982, %v1622, 0.0
        %1625 = vadd.xlane.f32.xlu0 %v1624
        %v1626 = vpop.xlane.xlu0 %1625
        %v1627 = vmul.f32 %v1626, %v992
        %v1628 = vsub.f32 %v1615, %v1627
        %v1629 = vmul.f32 %v1628, %v1628
        %1631 = vrot.lane.b32.xlu0 %v1629, 96
        %v1632 = vpop.permute.xlu0 %1631
        %v1634 = vsel %vm982, %v1632, 0.0
        %1635 = vadd.xlane.f32.xlu0 %v1634
        %v1636 = vpop.xlane.xlu0 %1635
        %v1637 = vmul.f32 %v1636, %v992
        %v1638 = vadd.f32 %v1637, 1e-05
        %v1639 = vrsqrt.pop %v1638
        %v1640 = vmul.f32 %v1639, %v1638
        %v1641 = vmul.f32 %v1640, %v1639
        %v1642 = vmul.f32 0.5, %v1641
        %v1643 = vsub.f32 1.5, %v1642
        %v1644 = vmul.f32 %v1639, %v1643
        %vm1645 = vweird.f32 %v1638
        %vm1646 = vweird.f32 %v1639
        %vm1647 = vmor %vm1645, %vm1646
        %v1648 = vsel %vm1647, %v1639, %v1644
        %v1649 = vmul.f32 %v1628, %v1648
        %v1651 = vperm.slane %v1617, 0
        %1652 = vrot.lane.b32.xlu0 %v1651, 32
        %v1653 = vpop.permute.xlu0 %1652
        %v1655 = vmul.f32 %v1649, %v1653
        %v1657 = vperm.slane %v1619, 0
        %1658 = vrot.lane.b32.xlu0 %v1657, 32
        %v1659 = vpop.permute.xlu0 %1658
        %v1661 = vadd.f32 %v1655, %v1659
        %s1662 = scalar_lea.vmem %s6, 16
        %v1663 = vld [vmem:[%s1662] sm:$0xf]
        %v1664 = vld [vmem:[%s1662 + $0x4] sm:$0xf]
        %v1665 = vld [vmem:[%s1662 + $0x8] sm:$0xf]
        %v1666 = vld [vmem:[%s1662 + $0xc] sm:$0xf]
        %s1667 = scalar_lea.vmem [#allocation8], 1
        %v1668 = vld [vmem:[%s1667] sm:$0x1]
        %s1669 = scalar_lea.vmem %s8, 16
        %v1670 = vld [vmem:[%s1669] sm:$0xf]
        %v1671 = vld [vmem:[%s1669 + $0x4] sm:$0xf]
        %v1672 = vld [vmem:[%s1669 + $0x8] sm:$0xf]
        %v1673 = vld [vmem:[%s1669 + $0xc] sm:$0xf]
        %s1674 = scalar_lea.vmem [#allocation10], 1
        %v1675 = vld [vmem:[%s1674] sm:$0x1]
        %s1676 = scalar_lea.vmem [#allocation11], 16
        %v1677 = vld [vmem:[%s1676] sm:$0xf]
        %v1678 = vld [vmem:[%s1676 + $0x4] sm:$0xf]
        %v1679 = vld [vmem:[%s1676 + $0x8] sm:$0xf]
        %v1680 = vld [vmem:[%s1676 + $0xc] sm:$0xf]
        %s1681 = scalar_lea.vmem [#allocation13], 1
        %v1682 = vld [vmem:[%s1681] sm:$0x1]
        %v1683 = vpack.c.bf16 %v1661, %v1661
        %v1685 = vperm.slane %v1668, 0
        %1688 = vrot.lane.b32.xlu0 %v1683, 96
        %v1689 = vpop.permute.xlu0 %1688
        %v1694 = vunpack.c.l.b16 %v1663
        %v1695 = vunpack.c.l.b16 %v1664
        %v1696 = vunpack.c.l.b16 %v1665
        %v1697 = vunpack.c.l.b16 %v1666
        %v1698 = vpack.c.b16 %v1695, %v1694
        %v1699 = vpack.c.b16 %v1697, %v1696
        %v1703 = vsel %vm982, %v1689, 0
        %1705 = vmatpush.bf16.msra.mxu0 0
        %1706 = vmatpush.bf16.msra.mxu0 0
        %1707 = vmatpush.bf16.msra.mxu0 0
        %1708 = vmatpush.bf16.msra.mxu0 0
        %1709 = vmatpush.bf16.msra.mxu0 0
        %1710 = vmatpush.bf16.msra.mxu0 0
        %1711 = vmatpush.bf16.msra.mxu0 %v1699
        %1712 = vmatpush.bf16.msra.mxu0 %v1698
        %1713 = vmatmul.bf16.gmra.mxu0 %v1703
        %v1714 = vpop.f32.mrf.mxu0
        %v1715 = vadd.f32 %v1685, %v1714
        %v1716 = vpop.f32.mrf.mxu0
        %1717 = vdwg.mxu0
        %v1718 = vmul.f32 %v1715, 0.35355338
        %v1719 = vpack.c.bf16 %v978, %v977
        %v1721 = vperm.slane %v1675, 0
        %v1727 = vunpack.c.l.b16 %v1670
        %v1728 = vunpack.c.l.b16 %v1671
        %v1729 = vunpack.c.l.b16 %v1672
        %v1730 = vunpack.c.l.b16 %v1673
        %v1731 = vpack.c.b16 %v1728, %v1727
        %v1732 = vpack.c.b16 %v1730, %v1729
        %v1736 = vsel %vm982, %v1719, 0
        %1738 = vmatpush.bf16.msra.mxu0 0
        %1739 = vmatpush.bf16.msra.mxu0 0
        %1740 = vmatpush.bf16.msra.mxu0 0
        %1741 = vmatpush.bf16.msra.mxu0 0
        %1742 = vmatpush.bf16.msra.mxu0 0
        %1743 = vmatpush.bf16.msra.mxu0 0
        %1744 = vmatpush.bf16.msra.mxu0 %v1732
        %1745 = vmatpush.bf16.msra.mxu0 %v1731
        %1746 = vmatmul.bf16.gmra.mxu0 %v1736
        %v1747 = vpop.f32.mrf.mxu0
        %v1748 = vadd.f32 %v1721, %v1747
        %v1749 = vpop.f32.mrf.mxu0
        %v1750 = vadd.f32 %v1721, %v1749
        %1751 = vdwg.mxu0
        %v1753 = vperm.slane %v976, 0
        %v1756 = vsel %vm1096, %v1718, 0
        %v1759 = vsel %vm1096, %v1748, 0
        %v1762 = vsel %vm1096, %v1750, 0
        %1764 = vmatpush.xpose.msra.mxu0 0.0
        %1765 = vmatpush.xpose.msra.mxu0 0.0
        %1766 = vmatpush.xpose.msra.mxu0 0.0
        %1767 = vmatpush.xpose.msra.mxu0 0.0
        %1768 = vmatpush.xpose.msra.mxu0 0.0
        %1769 = vmatpush.xpose.msra.mxu0 0.0
        %1770 = vmatpush.xpose.msra.mxu0 0.0
        %1771 = vmatpush.xpose.msra.mxu0 0.0
        %1772 = vmatpush.xpose.msra.mxu0 0.0
        %1773 = vmatpush.xpose.msra.mxu0 0.0
        %1774 = vmatpush.xpose.msra.mxu0 0.0
        %1775 = vmatpush.xpose.msra.mxu0 0.0
        %1776 = vmatpush.xpose.msra.mxu0 0.0
        %1777 = vmatpush.xpose.msra.mxu0 0.0
        %1778 = vmatpush.xpose.msra.mxu0 %v1762
        %1779 = vmatpush.xpose.msra.mxu0 %v1759
        %1780 = vmatmul.f32.gmra.mxu0 %v1756
        %v1781 = vpop.f32.mrf.mxu0
        %v1782 = vadd.f32 %v1753, %v1781
        %1783 = vdwg.mxu0
        %vm1784 = vcmask 80896
        %v1785 = vsel %vm1784, %v1782, -inf
        %1786 = vmax.xlane.f32.xlu0 %v1785
        %v1787 = vpop.xlane.xlu0 %1786
        %v1788 = vsub.f32 %v1782, %v1787
        %v1789 = vmul.f32 %v1788, 1.442695
        %v1790 = vpow.pop %v1789
        %v1791 = vsel %vm1784, %v1790, 0.0
        %1792 = vadd.xlane.f32.xlu0 %v1791
        %v1793 = vpop.xlane.xlu0 %1792
        %v1794 = vrcp.pop %v1793
        %v1795 = vmul.f32 %v1793, %v1794
        %v1796 = vsub.f32 1.0, %v1795
        %v1797 = vmul.f32 %v1794, %v1796
        %v1798 = vadd.f32 %v1794, %v1797
        %vm1799 = vweird.f32 %v1793
        %vm1800 = vweird.f32 %v1794
        %vm1801 = vmor %vm1799, %vm1800
        %v1802 = vsel %vm1801, %v1794, %v1798
        %v1803 = vand.u32 2147483647, %v1793
        %vm1804 = vcmp.eq.f32.partialorder %v1803, 8.507059e+37
        %v1805 = vand.u32 %v1793, 2147483648
        %v1806 = vor.u32 1.1754944e-38, %v1805
        %v1807 = vsel %vm1804, %v1806, %v1802
        %v1808 = vmul.f32 %v1790, %v1807
        %1809 = vrot.lane.b32.xlu0 %v1748, 96
        %v1810 = vpop.permute.xlu0 %1809
        %1811 = vrot.lane.b32.xlu0 %v1750, 96
        %v1812 = vpop.permute.xlu0 %1811
        %v1815 = vsel %vm1784, %v1808, 0
        %vm1817 = vcmask 1041408
        %v1818 = vsel %vm1817, %v1812, 0
        %1820 = vmatpush.msra.mxu0 0.0
        %1821 = vmatpush.msra.mxu0 0.0
        %1822 = vmatpush.msra.mxu0 0.0
        %1823 = vmatpush.msra.mxu0 0.0
        %1824 = vmatpush.msra.mxu0 0.0
        %1825 = vmatpush.msra.mxu0 0.0
        %1826 = vmatpush.msra.mxu0 0.0
        %1827 = vmatpush.msra.mxu0 0.0
        %1828 = vmatpush.msra.mxu0 0.0
        %1829 = vmatpush.msra.mxu0 0.0
        %1830 = vmatpush.msra.mxu0 0.0
        %1831 = vmatpush.msra.mxu0 0.0
        %1832 = vmatpush.msra.mxu0 0.0
        %1833 = vmatpush.msra.mxu0 0.0
        %1834 = vmatpush.msra.mxu0 %v1818
        %1835 = vmatpush.msra.mxu0 %v1810
        %1836 = vmatmul.f32.gmra.mxu0 %v1815
        %v1837 = vpop.f32.mrf.mxu0
        %v1838 = vadd.f32 0.0, %v1837
        %1839 = vdwg.mxu0
        %1840 = vrot.lane.b32.xlu0 %v1718, 120
        %v1841 = vpop.permute.xlu0 %1840
        %1842 = vrot.lane.b32.xlu0 %v1748, 120
        %v1843 = vpop.permute.xlu0 %1842
        %1844 = vrot.lane.b32.xlu0 %v1750, 120
        %v1845 = vpop.permute.xlu0 %1844
        %v1846 = vsel %vm1096, %v1841, 0
        %v1848 = vsel %vm1096, %v1843, 0
        %v1850 = vsel %vm1096, %v1845, 0
        %1852 = vmatpush.xpose.msra.mxu0 0.0
        %1853 = vmatpush.xpose.msra.mxu0 0.0
        %1854 = vmatpush.xpose.msra.mxu0 0.0
        %1855 = vmatpush.xpose.msra.mxu0 0.0
        %1856 = vmatpush.xpose.msra.mxu0 0.0
        %1857 = vmatpush.xpose.msra.mxu0 0.0
        %1858 = vmatpush.xpose.msra.mxu0 0.0
        %1859 = vmatpush.xpose.msra.mxu0 0.0
        %1860 = vmatpush.xpose.msra.mxu0 0.0
        %1861 = vmatpush.xpose.msra.mxu0 0.0
        %1862 = vmatpush.xpose.msra.mxu0 0.0
        %1863 = vmatpush.xpose.msra.mxu0 0.0
        %1864 = vmatpush.xpose.msra.mxu0 0.0
        %1865 = vmatpush.xpose.msra.mxu0 0.0
        %1866 = vmatpush.xpose.msra.mxu0 %v1850
        %1867 = vmatpush.xpose.msra.mxu0 %v1848
        %1868 = vmatmul.f32.gmra.mxu0 %v1846
        %v1869 = vpop.f32.mrf.mxu0
        %v1870 = vadd.f32 %v1753, %v1869
        %1871 = vdwg.mxu0
        %v1872 = vsel %vm1784, %v1870, -inf
        %1873 = vmax.xlane.f32.xlu0 %v1872
        %v1874 = vpop.xlane.xlu0 %1873
        %v1875 = vsub.f32 %v1870, %v1874
        %v1876 = vmul.f32 %v1875, 1.442695
        %v1877 = vpow.pop %v1876
        %v1878 = vsel %vm1784, %v1877, 0.0
        %1879 = vadd.xlane.f32.xlu0 %v1878
        %v1880 = vpop.xlane.xlu0 %1879
        %v1881 = vrcp.pop %v1880
        %v1882 = vmul.f32 %v1880, %v1881
        %v1883 = vsub.f32 1.0, %v1882
        %v1884 = vmul.f32 %v1881, %v1883
        %v1885 = vadd.f32 %v1881, %v1884
        %vm1886 = vweird.f32 %v1880
        %vm1887 = vweird.f32 %v1881
        %vm1888 = vmor %vm1886, %vm1887
        %v1889 = vsel %vm1888, %v1881, %v1885
        %v1890 = vand.u32 2147483647, %v1880
        %vm1891 = vcmp.eq.f32.partialorder %v1890, 8.507059e+37
        %v1892 = vand.u32 %v1880, 2147483648
        %v1893 = vor.u32 1.1754944e-38, %v1892
        %v1894 = vsel %vm1891, %v1893, %v1889
        %v1895 = vmul.f32 %v1877, %v1894
        %1896 = vrot.lane.b32.xlu0 %v1748, 88
        %v1897 = vpop.permute.xlu0 %1896
        %1898 = vrot.lane.b32.xlu0 %v1750, 88
        %v1899 = vpop.permute.xlu0 %1898
        %v1902 = vsel %vm1784, %v1895, 0
        %v1904 = vsel %vm1817, %v1899, 0
        %1906 = vmatpush.msra.mxu0 0.0
        %1907 = vmatpush.msra.mxu0 0.0
        %1908 = vmatpush.msra.mxu0 0.0
        %1909 = vmatpush.msra.mxu0 0.0
        %1910 = vmatpush.msra.mxu0 0.0
        %1911 = vmatpush.msra.mxu0 0.0
        %1912 = vmatpush.msra.mxu0 0.0
        %1913 = vmatpush.msra.mxu0 0.0
        %1914 = vmatpush.msra.mxu0 0.0
        %1915 = vmatpush.msra.mxu0 0.0
        %1916 = vmatpush.msra.mxu0 0.0
        %1917 = vmatpush.msra.mxu0 0.0
        %1918 = vmatpush.msra.mxu0 0.0
        %1919 = vmatpush.msra.mxu0 0.0
        %1920 = vmatpush.msra.mxu0 %v1904
        %1921 = vmatpush.msra.mxu0 %v1897
        %1922 = vmatmul.f32.gmra.mxu0 %v1902
        %v1923 = vpop.f32.mrf.mxu0
        %v1924 = vadd.f32 0.0, %v1923
        %1925 = vdwg.mxu0
        %1926 = vrot.lane.b32.xlu0 %v1718, 112
        %v1927 = vpop.permute.xlu0 %1926
        %1928 = vrot.lane.b32.xlu0 %v1748, 112
        %v1929 = vpop.permute.xlu0 %1928
        %1930 = vrot.lane.b32.xlu0 %v1750, 112
        %v1931 = vpop.permute.xlu0 %1930
        %v1932 = vsel %vm1096, %v1927, 0
        %v1934 = vsel %vm1096, %v1929, 0
        %v1936 = vsel %vm1096, %v1931, 0
        %1938 = vmatpush.xpose.msra.mxu0 0.0
        %1939 = vmatpush.xpose.msra.mxu0 0.0
        %1940 = vmatpush.xpose.msra.mxu0 0.0
        %1941 = vmatpush.xpose.msra.mxu0 0.0
        %1942 = vmatpush.xpose.msra.mxu0 0.0
        %1943 = vmatpush.xpose.msra.mxu0 0.0
        %1944 = vmatpush.xpose.msra.mxu0 0.0
        %1945 = vmatpush.xpose.msra.mxu0 0.0
        %1946 = vmatpush.xpose.msra.mxu0 0.0
        %1947 = vmatpush.xpose.msra.mxu0 0.0
        %1948 = vmatpush.xpose.msra.mxu0 0.0
        %1949 = vmatpush.xpose.msra.mxu0 0.0
        %1950 = vmatpush.xpose.msra.mxu0 0.0
        %1951 = vmatpush.xpose.msra.mxu0 0.0
        %1952 = vmatpush.xpose.msra.mxu0 %v1936
        %1953 = vmatpush.xpose.msra.mxu0 %v1934
        %1954 = vmatmul.f32.gmra.mxu0 %v1932
        %v1955 = vpop.f32.mrf.mxu0
        %v1956 = vadd.f32 %v1753, %v1955
        %1957 = vdwg.mxu0
        %v1958 = vsel %vm1784, %v1956, -inf
        %1959 = vmax.xlane.f32.xlu0 %v1958
        %v1960 = vpop.xlane.xlu0 %1959
        %v1961 = vsub.f32 %v1956, %v1960
        %v1962 = vmul.f32 %v1961, 1.442695
        %v1963 = vpow.pop %v1962
        %v1964 = vsel %vm1784, %v1963, 0.0
        %1965 = vadd.xlane.f32.xlu0 %v1964
        %v1966 = vpop.xlane.xlu0 %1965
        %v1967 = vrcp.pop %v1966
        %v1968 = vmul.f32 %v1966, %v1967
        %v1969 = vsub.f32 1.0, %v1968
        %v1970 = vmul.f32 %v1967, %v1969
        %v1971 = vadd.f32 %v1967, %v1970
        %vm1972 = vweird.f32 %v1966
        %vm1973 = vweird.f32 %v1967
        %vm1974 = vmor %vm1972, %vm1973
        %v1975 = vsel %vm1974, %v1967, %v1971
        %v1976 = vand.u32 2147483647, %v1966
        %vm1977 = vcmp.eq.f32.partialorder %v1976, 8.507059e+37
        %v1978 = vand.u32 %v1966, 2147483648
        %v1979 = vor.u32 1.1754944e-38, %v1978
        %v1980 = vsel %vm1977, %v1979, %v1975
        %v1981 = vmul.f32 %v1963, %v1980
        %1982 = vrot.lane.b32.xlu0 %v1748, 80
        %v1983 = vpop.permute.xlu0 %1982
        %1984 = vrot.lane.b32.xlu0 %v1750, 80
        %v1985 = vpop.permute.xlu0 %1984
        %v1988 = vsel %vm1784, %v1981, 0
        %v1990 = vsel %vm1817, %v1985, 0
        %1992 = vmatpush.msra.mxu0 0.0
        %1993 = vmatpush.msra.mxu0 0.0
        %1994 = vmatpush.msra.mxu0 0.0
        %1995 = vmatpush.msra.mxu0 0.0
        %1996 = vmatpush.msra.mxu0 0.0
        %1997 = vmatpush.msra.mxu0 0.0
        %1998 = vmatpush.msra.mxu0 0.0
        %1999 = vmatpush.msra.mxu0 0.0
        %2000 = vmatpush.msra.mxu0 0.0
        %2001 = vmatpush.msra.mxu0 0.0
        %2002 = vmatpush.msra.mxu0 0.0
        %2003 = vmatpush.msra.mxu0 0.0
        %2004 = vmatpush.msra.mxu0 0.0
        %2005 = vmatpush.msra.mxu0 0.0
        %2006 = vmatpush.msra.mxu0 %v1990
        %2007 = vmatpush.msra.mxu0 %v1983
        %2008 = vmatmul.f32.gmra.mxu0 %v1988
        %v2009 = vpop.f32.mrf.mxu0
        %v2010 = vadd.f32 0.0, %v2009
        %2011 = vdwg.mxu0
        %2012 = vrot.lane.b32.xlu0 %v1718, 104
        %v2013 = vpop.permute.xlu0 %2012
        %2014 = vrot.lane.b32.xlu0 %v1748, 104
        %v2015 = vpop.permute.xlu0 %2014
        %2016 = vrot.lane.b32.xlu0 %v1750, 104
        %v2017 = vpop.permute.xlu0 %2016
        %v2018 = vsel %vm1096, %v2013, 0
        %v2020 = vsel %vm1096, %v2015, 0
        %v2022 = vsel %vm1096, %v2017, 0
        %2024 = vmatpush.xpose.msra.mxu0 0.0
        %2025 = vmatpush.xpose.msra.mxu0 0.0
        %2026 = vmatpush.xpose.msra.mxu0 0.0
        %2027 = vmatpush.xpose.msra.mxu0 0.0
        %2028 = vmatpush.xpose.msra.mxu0 0.0
        %2029 = vmatpush.xpose.msra.mxu0 0.0
        %2030 = vmatpush.xpose.msra.mxu0 0.0
        %2031 = vmatpush.xpose.msra.mxu0 0.0
        %2032 = vmatpush.xpose.msra.mxu0 0.0
        %2033 = vmatpush.xpose.msra.mxu0 0.0
        %2034 = vmatpush.xpose.msra.mxu0 0.0
        %2035 = vmatpush.xpose.msra.mxu0 0.0
        %2036 = vmatpush.xpose.msra.mxu0 0.0
        %2037 = vmatpush.xpose.msra.mxu0 0.0
        %2038 = vmatpush.xpose.msra.mxu0 %v2022
        %2039 = vmatpush.xpose.msra.mxu0 %v2020
        %2040 = vmatmul.f32.gmra.mxu0 %v2018
        %v2041 = vpop.f32.mrf.mxu0
        %v2042 = vadd.f32 %v1753, %v2041
        %2043 = vdwg.mxu0
        %v2044 = vsel %vm1784, %v2042, -inf
        %2045 = vmax.xlane.f32.xlu0 %v2044
        %v2046 = vpop.xlane.xlu0 %2045
        %v2047 = vsub.f32 %v2042, %v2046
        %v2048 = vmul.f32 %v2047, 1.442695
        %v2049 = vpow.pop %v2048
        %v2050 = vsel %vm1784, %v2049, 0.0
        %2051 = vadd.xlane.f32.xlu0 %v2050
        %v2052 = vpop.xlane.xlu0 %2051
        %v2053 = vrcp.pop %v2052
        %v2054 = vmul.f32 %v2052, %v2053
        %v2055 = vsub.f32 1.0, %v2054
        %v2056 = vmul.f32 %v2053, %v2055
        %v2057 = vadd.f32 %v2053, %v2056
        %vm2058 = vweird.f32 %v2052
        %vm2059 = vweird.f32 %v2053
        %vm2060 = vmor %vm2058, %vm2059
        %v2061 = vsel %vm2060, %v2053, %v2057
        %v2062 = vand.u32 2147483647, %v2052
        %vm2063 = vcmp.eq.f32.partialorder %v2062, 8.507059e+37
        %v2064 = vand.u32 %v2052, 2147483648
        %v2065 = vor.u32 1.1754944e-38, %v2064
        %v2066 = vsel %vm2063, %v2065, %v2061
        %v2067 = vmul.f32 %v2049, %v2066
        %2068 = vrot.lane.b32.xlu0 %v1748, 72
        %v2069 = vpop.permute.xlu0 %2068
        %2070 = vrot.lane.b32.xlu0 %v1750, 72
        %v2071 = vpop.permute.xlu0 %2070
        %v2074 = vsel %vm1784, %v2067, 0
        %v2076 = vsel %vm1817, %v2071, 0
        %2078 = vmatpush.msra.mxu0 0.0
        %2079 = vmatpush.msra.mxu0 0.0
        %2080 = vmatpush.msra.mxu0 0.0
        %2081 = vmatpush.msra.mxu0 0.0
        %2082 = vmatpush.msra.mxu0 0.0
        %2083 = vmatpush.msra.mxu0 0.0
        %2084 = vmatpush.msra.mxu0 0.0
        %2085 = vmatpush.msra.mxu0 0.0
        %2086 = vmatpush.msra.mxu0 0.0
        %2087 = vmatpush.msra.mxu0 0.0
        %2088 = vmatpush.msra.mxu0 0.0
        %2089 = vmatpush.msra.mxu0 0.0
        %2090 = vmatpush.msra.mxu0 0.0
        %2091 = vmatpush.msra.mxu0 0.0
        %2092 = vmatpush.msra.mxu0 %v2076
        %2093 = vmatpush.msra.mxu0 %v2069
        %2094 = vmatmul.f32.gmra.mxu0 %v2074
        %v2095 = vpop.f32.mrf.mxu0
        %v2096 = vadd.f32 0.0, %v2095
        %2097 = vdwg.mxu0
        %2099 = vrot.lane.b32.xlu0 %v1924, 8
        %v2100 = vpop.permute.xlu0 %2099
        %2103 = vrot.lane.b32.xlu0 %v2010, 16
        %v2104 = vpop.permute.xlu0 %2103
        %2107 = vrot.lane.b32.xlu0 %v2096, 24
        %v2108 = vpop.permute.xlu0 %2107
        %v2110 = vsel %vm1096, %v1838, %v2100
        %v2111 = vsel %vm1420, %v2110, %v2104
        %v2112 = vsel %vm1422, %v2111, %v2108
        %v2113 = vpack.c.bf16 %v2112, %v2112
        %v2115 = vperm.slane %v1682, 0
        %v2121 = vunpack.c.l.b16 %v1677
        %v2122 = vunpack.c.l.b16 %v1678
        %v2123 = vunpack.c.l.b16 %v1679
        %v2124 = vunpack.c.l.b16 %v1680
        %v2125 = vpack.c.b16 %v2122, %v2121
        %v2126 = vpack.c.b16 %v2124, %v2123
        %v2130 = vsel %vm982, %v2113, 0
        %2132 = vmatpush.bf16.msra.mxu0 0
        %2133 = vmatpush.bf16.msra.mxu0 0
        %2134 = vmatpush.bf16.msra.mxu0 0
        %2135 = vmatpush.bf16.msra.mxu0 0
        %2136 = vmatpush.bf16.msra.mxu0 0
        %2137 = vmatpush.bf16.msra.mxu0 0
        %2138 = vmatpush.bf16.msra.mxu0 %v2126
        %2139 = vmatpush.bf16.msra.mxu0 %v2125
        %2140 = vmatmul.bf16.gmra.mxu0 %v2130
        %v2141 = vpop.f32.mrf.mxu0
        %v2142 = vadd.f32 %v2115, %v2141
        %v2143 = vpop.f32.mrf.mxu0
        %2144 = vdwg.mxu0
        %s2145 = scalar_lea.vmem %s12, 16
        %v2146 = vld [vmem:[%s2145] sm:$0xf]
        %v2147 = vld [vmem:[%s2145 + $0x4] sm:$0xf]
        %v2148 = vld [vmem:[%s2145 + $0x8] sm:$0xf]
        %v2149 = vld [vmem:[%s2145 + $0xc] sm:$0xf]
        %s2150 = scalar_lea.vmem %s13, 16
        %v2151 = vld [vmem:[%s2150] sm:$0xf]
        %v2152 = vld [vmem:[%s2150 + $0x4] sm:$0xf]
        %v2153 = vld [vmem:[%s2150 + $0x8] sm:$0xf]
        %v2154 = vld [vmem:[%s2150 + $0xc] sm:$0xf]
        %s2155 = scalar_lea.vmem %s14, 16
        %v2156 = vld [vmem:[%s2155] sm:$0xf]
        %v2157 = vld [vmem:[%s2155 + $0x4] sm:$0xf]
        %v2158 = vld [vmem:[%s2155 + $0x8] sm:$0xf]
        %v2159 = vld [vmem:[%s2155 + $0xc] sm:$0xf]
        %s2160 = scalar_lea.vmem [#allocation14], 1
        %v2161 = vld [vmem:[%s2160] sm:$0x1]
        %v2162 = vpack.c.bf16 %v2142, %v2142
        %v2167 = vunpack.c.l.b16 %v2146
        %v2168 = vunpack.c.l.b16 %v2147
        %v2169 = vunpack.c.l.b16 %v2148
        %v2170 = vunpack.c.l.b16 %v2149
        %v2171 = vpack.c.b16 %v2168, %v2167
        %v2172 = vpack.c.b16 %v2170, %v2169
        %v2176 = vsel %vm982, %v2162, 0
        %2178 = vmatpush.bf16.msra.mxu0 0
        %2179 = vmatpush.bf16.msra.mxu0 0
        %2180 = vmatpush.bf16.msra.mxu0 0
        %2181 = vmatpush.bf16.msra.mxu0 0
        %2182 = vmatpush.bf16.msra.mxu0 0
        %2183 = vmatpush.bf16.msra.mxu0 0
        %2184 = vmatpush.bf16.msra.mxu0 %v2172
        %2185 = vmatpush.bf16.msra.mxu0 %v2171
        %2186 = vmatmul.bf16.gmra.mxu0 %v2176
        %v2187 = vpop.f32.mrf.mxu0
        %v2188 = vadd.f32 0.0, %v2187
        %v2189 = vpop.f32.mrf.mxu0
        %2190 = vdwg.mxu0
        %v2195 = vunpack.c.l.b16 %v2151
        %v2196 = vunpack.c.l.b16 %v2152
        %v2197 = vunpack.c.l.b16 %v2153
        %v2198 = vunpack.c.l.b16 %v2154
        %v2199 = vpack.c.b16 %v2196, %v2195
        %v2200 = vpack.c.b16 %v2198, %v2197
        %2203 = vmatpush.bf16.msra.mxu0 0
        %2204 = vmatpush.bf16.msra.mxu0 0
        %2205 = vmatpush.bf16.msra.mxu0 0
        %2206 = vmatpush.bf16.msra.mxu0 0
        %2207 = vmatpush.bf16.msra.mxu0 0
        %2208 = vmatpush.bf16.msra.mxu0 0
        %2209 = vmatpush.bf16.msra.mxu0 %v2200
        %2210 = vmatpush.bf16.msra.mxu0 %v2199
        %2211 = vmatmul.bf16.gmra.mxu0 %v1703
        %v2212 = vpop.f32.mrf.mxu0
        %v2213 = vadd.f32 0.0, %v2212
        %v2214 = vpop.f32.mrf.mxu0
        %2215 = vdwg.mxu0
        %v2216 = vadd.f32 %v2188, %v2213
        %v2217 = vxor.u32 %v2216, 2147483648
        %v2218 = vmul.f32 %v2217, 1.442695
        %v2219 = vpow.pop %v2218
        %v2220 = vadd.f32 %v2219, 1.0
        %v2221 = vrcp.pop %v2220
        %v2222 = vmul.f32 %v2220, %v2221
        %v2223 = vsub.f32 1.0, %v2222
        %v2224 = vmul.f32 %v2221, %v2223
        %v2225 = vadd.f32 %v2221, %v2224
        %vm2226 = vweird.f32 %v2220
        %vm2227 = vweird.f32 %v2221
        %vm2228 = vmor %vm2226, %vm2227
        %v2229 = vsel %vm2228, %v2221, %v2225
        %v2230 = vand.u32 2147483647, %v2220
        %vm2231 = vcmp.eq.f32.partialorder %v2230, 8.507059e+37
        %v2232 = vand.u32 %v2220, 2147483648
        %v2233 = vor.u32 1.1754944e-38, %v2232
        %v2234 = vsel %vm2231, %v2233, %v2229
        %v2235 = vmul.f32 1.0, %v2234
        %v2237 = vperm.slane %v2161, 0
        %2238 = vrot.lane.b32.xlu0 %v2237, 32
        %v2239 = vpop.permute.xlu0 %2238
        %v2241 = vsub.f32 %v2216, %v2239
        %v2242 = vxor.u32 %v2241, 2147483648
        %v2243 = vmul.f32 %v2242, 1.442695
        %v2244 = vpow.pop %v2243
        %v2245 = vadd.f32 %v2244, 1.0
        %v2246 = vrcp.pop %v2245
        %v2247 = vmul.f32 %v2245, %v2246
        %v2248 = vsub.f32 1.0, %v2247
        %v2249 = vmul.f32 %v2246, %v2248
        %v2250 = vadd.f32 %v2246, %v2249
        %vm2251 = vweird.f32 %v2245
        %vm2252 = vweird.f32 %v2246
        %vm2253 = vmor %vm2251, %vm2252
        %v2254 = vsel %vm2253, %v2246, %v2250
        %v2255 = vand.u32 2147483647, %v2245
        %vm2256 = vcmp.eq.f32.partialorder %v2255, 8.507059e+37
        %v2257 = vand.u32 %v2245, 2147483648
        %v2258 = vor.u32 1.1754944e-38, %v2257
        %v2259 = vsel %vm2256, %v2258, %v2254
        %v2260 = vmul.f32 1.0, %v2259
        %2262 = vrot.lane.b32.xlu0 %v1661, 96
        %v2263 = vpop.permute.xlu0 %2262
        %v2265 = vmul.f32 %v2235, %v2263
        %v2266 = vpack.c.bf16 %v2265, %v2265
        %v2271 = vunpack.c.l.b16 %v2156
        %v2272 = vunpack.c.l.b16 %v2157
        %v2273 = vunpack.c.l.b16 %v2158
        %v2274 = vunpack.c.l.b16 %v2159
        %v2275 = vpack.c.b16 %v2272, %v2271
        %v2276 = vpack.c.b16 %v2274, %v2273
        %v2280 = vsel %vm982, %v2266, 0
        %2282 = vmatpush.bf16.msra.mxu0 0
        %2283 = vmatpush.bf16.msra.mxu0 0
        %2284 = vmatpush.bf16.msra.mxu0 0
        %2285 = vmatpush.bf16.msra.mxu0 0
        %2286 = vmatpush.bf16.msra.mxu0 0
        %2287 = vmatpush.bf16.msra.mxu0 0
        %2288 = vmatpush.bf16.msra.mxu0 %v2276
        %2289 = vmatpush.bf16.msra.mxu0 %v2275
        %2290 = vmatmul.bf16.gmra.mxu0 %v2280
        %v2291 = vpop.f32.mrf.mxu0
        %v2292 = vadd.f32 0.0, %v2291
        %v2293 = vpop.f32.mrf.mxu0
        %2294 = vdwg.mxu0
        %2296 = vrot.lane.b32.xlu0 %v2292, 64
        %v2297 = vpop.permute.xlu0 %2296
        %v2299 = vadd.f32 %v2188, %v2297
        %v2300 = vtanh.pop %v2299
        %v2301 = vsub.f32 1.0, %v2260
        %v2302 = vmul.f32 %v2301, %v1661
        %2304 = vrot.lane.b32.xlu0 %v2300, 96
        %v2305 = vpop.permute.xlu0 %2304
        %v2307 = vmul.f32 %v2260, %v2305
        %v2308 = vadd.f32 %v2302, %v2307
        %s2309 = scalar_lea.vmem [#allocation5], 2
        %v2310 = vld [vmem:[%s2309] sm:$0x1]
        %s2311 = scalar_lea.vmem [#allocation7], 2
        %v2312 = vld [vmem:[%s2311] sm:$0x1]
        %2314 = vrot.lane.b32.xlu0 %v2308, 96
        %v2315 = vpop.permute.xlu0 %2314
        %v2317 = vsel %vm982, %v2315, 0.0
        %2318 = vadd.xlane.f32.xlu0 %v2317
        %v2319 = vpop.xlane.xlu0 %2318
        %v2320 = vmul.f32 %v2319, %v992
        %v2321 = vsub.f32 %v2308, %v2320
        %v2322 = vmul.f32 %v2321, %v2321
        %2324 = vrot.lane.b32.xlu0 %v2322, 96
        %v2325 = vpop.permute.xlu0 %2324
        %v2327 = vsel %vm982, %v2325, 0.0
        %2328 = vadd.xlane.f32.xlu0 %v2327
        %v2329 = vpop.xlane.xlu0 %2328
        %v2330 = vmul.f32 %v2329, %v992
        %v2331 = vadd.f32 %v2330, 1e-05
        %v2332 = vrsqrt.pop %v2331
        %v2333 = vmul.f32 %v2332, %v2331
        %v2334 = vmul.f32 %v2333, %v2332
        %v2335 = vmul.f32 0.5, %v2334
        %v2336 = vsub.f32 1.5, %v2335
        %v2337 = vmul.f32 %v2332, %v2336
        %vm2338 = vweird.f32 %v2331
        %vm2339 = vweird.f32 %v2332
        %vm2340 = vmor %vm2338, %vm2339
        %v2341 = vsel %vm2340, %v2332, %v2337
        %v2342 = vmul.f32 %v2321, %v2341
        %v2344 = vperm.slane %v2310, 0
        %2345 = vrot.lane.b32.xlu0 %v2344, 32
        %v2346 = vpop.permute.xlu0 %2345
        %v2348 = vmul.f32 %v2342, %v2346
        %v2350 = vperm.slane %v2312, 0
        %2351 = vrot.lane.b32.xlu0 %v2350, 32
        %v2352 = vpop.permute.xlu0 %2351
        %v2354 = vadd.f32 %v2348, %v2352
        %v2355 = vld [vmem:[#allocation16] sm:$0xf]
        %v2356 = vld [vmem:[#allocation16 + $0x4] sm:$0xf]
        %v2357 = vld [vmem:[#allocation16 + $0x8] sm:$0xf]
        %v2358 = vld [vmem:[#allocation16 + $0xc] sm:$0xf]
        %v2359 = vpack.c.bf16 %v2354, %v2354
        %v2360 = vld [vmem:[#allocation17] sm:$0x1]
        %v2362 = vperm.slane %v2360, 0
        %2365 = vrot.lane.b32.xlu0 %v2359, 96
        %v2366 = vpop.permute.xlu0 %2365
        %v2371 = vunpack.c.l.b16 %v2355
        %v2372 = vunpack.c.l.b16 %v2356
        %v2373 = vunpack.c.l.b16 %v2357
        %v2374 = vunpack.c.l.b16 %v2358
        %v2375 = vpack.c.b16 %v2372, %v2371
        %v2376 = vpack.c.b16 %v2374, %v2373
        %v2380 = vsel %vm982, %v2366, 0
        %2382 = vmatpush.bf16.msra.mxu0 0
        %2383 = vmatpush.bf16.msra.mxu0 0
        %2384 = vmatpush.bf16.msra.mxu0 0
        %2385 = vmatpush.bf16.msra.mxu0 0
        %2386 = vmatpush.bf16.msra.mxu0 0
        %2387 = vmatpush.bf16.msra.mxu0 0
        %2388 = vmatpush.bf16.msra.mxu0 %v2376
        %2389 = vmatpush.bf16.msra.mxu0 %v2375
        %2390 = vmatmul.bf16.gmra.mxu0 %v2380
        %v2391 = vpop.f32.mrf.mxu0
        %v2392 = vadd.f32 %v2362, %v2391
        %v2393 = vpop.f32.mrf.mxu0
        %2394 = vdwg.mxu0
        %v2395 = vmax.f32 %v2392, 0.0
        %v2396 = vld [vmem:[%s18] sm:$0xf]
        %v2397 = vld [vmem:[%s18 + $0x4] sm:$0xf]
        %v2398 = vld [vmem:[%s18 + $0x8] sm:$0xf]
        %v2399 = vld [vmem:[%s18 + $0xc] sm:$0xf]
        %v2400 = vld [vmem:[%s18 + $0x10] sm:$0xf]
        %v2401 = vld [vmem:[%s18 + $0x14] sm:$0xf]
        %v2402 = vld [vmem:[%s18 + $0x18] sm:$0xf]
        %v2403 = vld [vmem:[%s18 + $0x1c] sm:$0xf]
        %v2404 = vpack.c.bf16 %v2395, %v2395
        %v2405 = vld [vmem:[#allocation19] sm:$0x1]
        %v2407 = vperm.slane %v2405, 0
        %v2417 = vunpack.c.l.b16 %v2396
        %v2418 = vunpack.c.l.b16 %v2397
        %v2419 = vunpack.c.l.b16 %v2398
        %v2420 = vunpack.c.l.b16 %v2399
        %v2421 = vunpack.c.l.b16 %v2400
        %v2422 = vunpack.c.l.b16 %v2401
        %v2423 = vunpack.c.l.b16 %v2402
        %v2424 = vunpack.c.l.b16 %v2403
        %v2425 = vpack.c.b16 %v2418, %v2417
        %v2426 = vpack.c.b16 %v2420, %v2419
        %v2427 = vpack.c.b16 %v2422, %v2421
        %v2428 = vpack.c.b16 %v2424, %v2423
        %vm2433 = vcmask 523264
        %v2435 = vsel %vm2433, %v2404, 0
        %2437 = vmatpush.bf16.msra.mxu0 0
        %2438 = vmatpush.bf16.msra.mxu0 0
        %2439 = vmatpush.bf16.msra.mxu0 0
        %2440 = vmatpush.bf16.msra.mxu0 0
        %2441 = vmatpush.bf16.msra.mxu0 %v2428
        %2442 = vmatpush.bf16.msra.mxu0 %v2427
        %2443 = vmatpush.bf16.msra.mxu0 %v2426
        %2444 = vmatpush.bf16.msra.mxu0 %v2425
        %2445 = vmatmul.bf16.gmra.mxu0 %v2435
        %v2446 = vpop.f32.mrf.mxu0
        %v2447 = vadd.f32 %v2407, %v2446
        %v2448 = vpop.f32.mrf.mxu0
        %2449 = vdwg.mxu0
        %s2450 = scalar_lea.vmem %s12, 32
        %v2451 = vld [vmem:[%s2450] sm:$0xf]
        %v2452 = vld [vmem:[%s2450 + $0x4] sm:$0xf]
        %v2453 = vld [vmem:[%s2450 + $0x8] sm:$0xf]
        %v2454 = vld [vmem:[%s2450 + $0xc] sm:$0xf]
        %s2455 = scalar_lea.vmem %s13, 32
        %v2456 = vld [vmem:[%s2455] sm:$0xf]
        %v2457 = vld [vmem:[%s2455 + $0x4] sm:$0xf]
        %v2458 = vld [vmem:[%s2455 + $0x8] sm:$0xf]
        %v2459 = vld [vmem:[%s2455 + $0xc] sm:$0xf]
        %s2460 = scalar_lea.vmem %s14, 32
        %v2461 = vld [vmem:[%s2460] sm:$0xf]
        %v2462 = vld [vmem:[%s2460 + $0x4] sm:$0xf]
        %v2463 = vld [vmem:[%s2460 + $0x8] sm:$0xf]
        %v2464 = vld [vmem:[%s2460 + $0xc] sm:$0xf]
        %s2465 = scalar_lea.vmem [#allocation14], 2
        %v2466 = vld [vmem:[%s2465] sm:$0x1]
        %v2467 = vpack.c.bf16 %v2447, %v2447
        %v2472 = vunpack.c.l.b16 %v2451
        %v2473 = vunpack.c.l.b16 %v2452
        %v2474 = vunpack.c.l.b16 %v2453
        %v2475 = vunpack.c.l.b16 %v2454
        %v2476 = vpack.c.b16 %v2473, %v2472
        %v2477 = vpack.c.b16 %v2475, %v2474
        %v2481 = vsel %vm982, %v2467, 0
        %2483 = vmatpush.bf16.msra.mxu0 0
        %2484 = vmatpush.bf16.msra.mxu0 0
        %2485 = vmatpush.bf16.msra.mxu0 0
        %2486 = vmatpush.bf16.msra.mxu0 0
        %2487 = vmatpush.bf16.msra.mxu0 0
        %2488 = vmatpush.bf16.msra.mxu0 0
        %2489 = vmatpush.bf16.msra.mxu0 %v2477
        %2490 = vmatpush.bf16.msra.mxu0 %v2476
        %2491 = vmatmul.bf16.gmra.mxu0 %v2481
        %v2492 = vpop.f32.mrf.mxu0
        %v2493 = vadd.f32 0.0, %v2492
        %v2494 = vpop.f32.mrf.mxu0
        %2495 = vdwg.mxu0
        %v2500 = vunpack.c.l.b16 %v2456
        %v2501 = vunpack.c.l.b16 %v2457
        %v2502 = vunpack.c.l.b16 %v2458
        %v2503 = vunpack.c.l.b16 %v2459
        %v2504 = vpack.c.b16 %v2501, %v2500
        %v2505 = vpack.c.b16 %v2503, %v2502
        %2508 = vmatpush.bf16.msra.mxu0 0
        %2509 = vmatpush.bf16.msra.mxu0 0
        %2510 = vmatpush.bf16.msra.mxu0 0
        %2511 = vmatpush.bf16.msra.mxu0 0
        %2512 = vmatpush.bf16.msra.mxu0 0
        %2513 = vmatpush.bf16.msra.mxu0 0
        %2514 = vmatpush.bf16.msra.mxu0 %v2505
        %2515 = vmatpush.bf16.msra.mxu0 %v2504
        %2516 = vmatmul.bf16.gmra.mxu0 %v2380
        %v2517 = vpop.f32.mrf.mxu0
        %v2518 = vadd.f32 0.0, %v2517
        %v2519 = vpop.f32.mrf.mxu0
        %2520 = vdwg.mxu0
        %v2521 = vadd.f32 %v2493, %v2518
        %v2522 = vxor.u32 %v2521, 2147483648
        %v2523 = vmul.f32 %v2522, 1.442695
        %v2524 = vpow.pop %v2523
        %v2525 = vadd.f32 %v2524, 1.0
        %v2526 = vrcp.pop %v2525
        %v2527 = vmul.f32 %v2525, %v2526
        %v2528 = vsub.f32 1.0, %v2527
        %v2529 = vmul.f32 %v2526, %v2528
        %v2530 = vadd.f32 %v2526, %v2529
        %vm2531 = vweird.f32 %v2525
        %vm2532 = vweird.f32 %v2526
        %vm2533 = vmor %vm2531, %vm2532
        %v2534 = vsel %vm2533, %v2526, %v2530
        %v2535 = vand.u32 2147483647, %v2525
        %vm2536 = vcmp.eq.f32.partialorder %v2535, 8.507059e+37
        %v2537 = vand.u32 %v2525, 2147483648
        %v2538 = vor.u32 1.1754944e-38, %v2537
        %v2539 = vsel %vm2536, %v2538, %v2534
        %v2540 = vmul.f32 1.0, %v2539
        %v2542 = vperm.slane %v2466, 0
        %2543 = vrot.lane.b32.xlu0 %v2542, 32
        %v2544 = vpop.permute.xlu0 %2543
        %v2546 = vsub.f32 %v2521, %v2544
        %v2547 = vxor.u32 %v2546, 2147483648
        %v2548 = vmul.f32 %v2547, 1.442695
        %v2549 = vpow.pop %v2548
        %v2550 = vadd.f32 %v2549, 1.0
        %v2551 = vrcp.pop %v2550
        %v2552 = vmul.f32 %v2550, %v2551
        %v2553 = vsub.f32 1.0, %v2552
        %v2554 = vmul.f32 %v2551, %v2553
        %v2555 = vadd.f32 %v2551, %v2554
        %vm2556 = vweird.f32 %v2550
        %vm2557 = vweird.f32 %v2551
        %vm2558 = vmor %vm2556, %vm2557
        %v2559 = vsel %vm2558, %v2551, %v2555
        %v2560 = vand.u32 2147483647, %v2550
        %vm2561 = vcmp.eq.f32.partialorder %v2560, 8.507059e+37
        %v2562 = vand.u32 %v2550, 2147483648
        %v2563 = vor.u32 1.1754944e-38, %v2562
        %v2564 = vsel %vm2561, %v2563, %v2559
        %v2565 = vmul.f32 1.0, %v2564
        %2567 = vrot.lane.b32.xlu0 %v2354, 96
        %v2568 = vpop.permute.xlu0 %2567
        %v2570 = vmul.f32 %v2540, %v2568
        %v2571 = vpack.c.bf16 %v2570, %v2570
        %v2576 = vunpack.c.l.b16 %v2461
        %v2577 = vunpack.c.l.b16 %v2462
        %v2578 = vunpack.c.l.b16 %v2463
        %v2579 = vunpack.c.l.b16 %v2464
        %v2580 = vpack.c.b16 %v2577, %v2576
        %v2581 = vpack.c.b16 %v2579, %v2578
        %v2585 = vsel %vm982, %v2571, 0
        %2587 = vmatpush.bf16.msra.mxu0 0
        %2588 = vmatpush.bf16.msra.mxu0 0
        %2589 = vmatpush.bf16.msra.mxu0 0
        %2590 = vmatpush.bf16.msra.mxu0 0
        %2591 = vmatpush.bf16.msra.mxu0 0
        %2592 = vmatpush.bf16.msra.mxu0 0
        %2593 = vmatpush.bf16.msra.mxu0 %v2581
        %2594 = vmatpush.bf16.msra.mxu0 %v2580
        %2595 = vmatmul.bf16.gmra.mxu0 %v2585
        %v2596 = vpop.f32.mrf.mxu0
        %v2597 = vadd.f32 0.0, %v2596
        %v2598 = vpop.f32.mrf.mxu0
        %2599 = vdwg.mxu0
        %2601 = vrot.lane.b32.xlu0 %v2597, 64
        %v2602 = vpop.permute.xlu0 %2601
        %v2604 = vadd.f32 %v2493, %v2602
        %v2605 = vtanh.pop %v2604
        %v2606 = vsub.f32 1.0, %v2565
        %v2607 = vmul.f32 %v2606, %v2354
        %2609 = vrot.lane.b32.xlu0 %v2605, 96
        %v2610 = vpop.permute.xlu0 %2609
        %v2612 = vmul.f32 %v2565, %v2610
        %v2613 = vadd.f32 %v2607, %v2612
        %s2614 = scalar_lea.vmem [#allocation5], 3
        %v2615 = vld [vmem:[%s2614] sm:$0x1]
        %s2616 = scalar_lea.vmem [#allocation7], 3
        %v2617 = vld [vmem:[%s2616] sm:$0x1]
        %2619 = vrot.lane.b32.xlu0 %v2613, 96
        %v2620 = vpop.permute.xlu0 %2619
        %v2622 = vsel %vm982, %v2620, 0.0
        %2623 = vadd.xlane.f32.xlu0 %v2622
        %v2624 = vpop.xlane.xlu0 %2623
        %v2625 = vmul.f32 %v2624, %v992
        %v2626 = vsub.f32 %v2613, %v2625
        %v2627 = vmul.f32 %v2626, %v2626
        %2629 = vrot.lane.b32.xlu0 %v2627, 96
        %v2630 = vpop.permute.xlu0 %2629
        %v2632 = vsel %vm982, %v2630, 0.0
        %2633 = vadd.xlane.f32.xlu0 %v2632
        %v2634 = vpop.xlane.xlu0 %2633
        %v2635 = vmul.f32 %v2634, %v992
        %v2636 = vadd.f32 %v2635, 1e-05
        %v2637 = vrsqrt.pop %v2636
        %v2638 = vmul.f32 %v2637, %v2636
        %v2639 = vmul.f32 %v2638, %v2637
        %v2640 = vmul.f32 0.5, %v2639
        %v2641 = vsub.f32 1.5, %v2640
        %v2642 = vmul.f32 %v2637, %v2641
        %vm2643 = vweird.f32 %v2636
        %vm2644 = vweird.f32 %v2637
        %vm2645 = vmor %vm2643, %vm2644
        %v2646 = vsel %vm2645, %v2637, %v2642
        %v2647 = vmul.f32 %v2626, %v2646
        %v2649 = vperm.slane %v2615, 0
        %2650 = vrot.lane.b32.xlu0 %v2649, 32
        %v2651 = vpop.permute.xlu0 %2650
        %v2653 = vmul.f32 %v2647, %v2651
        %v2655 = vperm.slane %v2617, 0
        %2656 = vrot.lane.b32.xlu0 %v2655, 32
        %v2657 = vpop.permute.xlu0 %2656
        %v2659 = vadd.f32 %v2653, %v2657
        %s2660 = scalar_lea.vmem %s6, 32
        %v2661 = vld [vmem:[%s2660] sm:$0xf]
        %v2662 = vld [vmem:[%s2660 + $0x4] sm:$0xf]
        %v2663 = vld [vmem:[%s2660 + $0x8] sm:$0xf]
        %v2664 = vld [vmem:[%s2660 + $0xc] sm:$0xf]
        %s2665 = scalar_lea.vmem [#allocation8], 2
        %v2666 = vld [vmem:[%s2665] sm:$0x1]
        %s2667 = scalar_lea.vmem %s8, 32
        %v2668 = vld [vmem:[%s2667] sm:$0xf]
        %v2669 = vld [vmem:[%s2667 + $0x4] sm:$0xf]
        %v2670 = vld [vmem:[%s2667 + $0x8] sm:$0xf]
        %v2671 = vld [vmem:[%s2667 + $0xc] sm:$0xf]
        %s2672 = scalar_lea.vmem [#allocation10], 2
        %v2673 = vld [vmem:[%s2672] sm:$0x1]
        %s2674 = scalar_lea.vmem [#allocation11], 32
        %v2675 = vld [vmem:[%s2674] sm:$0xf]
        %v2676 = vld [vmem:[%s2674 + $0x4] sm:$0xf]
        %v2677 = vld [vmem:[%s2674 + $0x8] sm:$0xf]
        %v2678 = vld [vmem:[%s2674 + $0xc] sm:$0xf]
        %s2679 = scalar_lea.vmem [#allocation13], 2
        %v2680 = vld [vmem:[%s2679] sm:$0x1]
        %v2681 = vpack.c.bf16 %v2659, %v2659
        %v2683 = vperm.slane %v2666, 0
        %2686 = vrot.lane.b32.xlu0 %v2681, 96
        %v2687 = vpop.permute.xlu0 %2686
        %v2692 = vunpack.c.l.b16 %v2661
        %v2693 = vunpack.c.l.b16 %v2662
        %v2694 = vunpack.c.l.b16 %v2663
        %v2695 = vunpack.c.l.b16 %v2664
        %v2696 = vpack.c.b16 %v2693, %v2692
        %v2697 = vpack.c.b16 %v2695, %v2694
        %v2701 = vsel %vm982, %v2687, 0
        %2703 = vmatpush.bf16.msra.mxu0 0
        %2704 = vmatpush.bf16.msra.mxu0 0
        %2705 = vmatpush.bf16.msra.mxu0 0
        %2706 = vmatpush.bf16.msra.mxu0 0
        %2707 = vmatpush.bf16.msra.mxu0 0
        %2708 = vmatpush.bf16.msra.mxu0 0
        %2709 = vmatpush.bf16.msra.mxu0 %v2697
        %2710 = vmatpush.bf16.msra.mxu0 %v2696
        %2711 = vmatmul.bf16.gmra.mxu0 %v2701
        %v2712 = vpop.f32.mrf.mxu0
        %v2713 = vadd.f32 %v2683, %v2712
        %v2714 = vpop.f32.mrf.mxu0
        %2715 = vdwg.mxu0
        %v2716 = vmul.f32 %v2713, 0.35355338
        %v2718 = vperm.slane %v2673, 0
        %v2724 = vunpack.c.l.b16 %v2668
        %v2725 = vunpack.c.l.b16 %v2669
        %v2726 = vunpack.c.l.b16 %v2670
        %v2727 = vunpack.c.l.b16 %v2671
        %v2728 = vpack.c.b16 %v2725, %v2724
        %v2729 = vpack.c.b16 %v2727, %v2726
        %2732 = vmatpush.bf16.msra.mxu0 0
        %2733 = vmatpush.bf16.msra.mxu0 0
        %2734 = vmatpush.bf16.msra.mxu0 0
        %2735 = vmatpush.bf16.msra.mxu0 0
        %2736 = vmatpush.bf16.msra.mxu0 0
        %2737 = vmatpush.bf16.msra.mxu0 0
        %2738 = vmatpush.bf16.msra.mxu0 %v2729
        %2739 = vmatpush.bf16.msra.mxu0 %v2728
        %2740 = vmatmul.bf16.gmra.mxu0 %v2701
        %v2741 = vpop.f32.mrf.mxu0
        %v2742 = vadd.f32 %v2718, %v2741
        %v2743 = vpop.f32.mrf.mxu0
        %2744 = vdwg.mxu0
        %v2746 = vsel %vm1096, %v2716, 0
        %v2749 = vsel %vm1096, %v2742, 0
        %2751 = vmatpush.xpose.msra.mxu0 0.0
        %2752 = vmatpush.xpose.msra.mxu0 0.0
        %2753 = vmatpush.xpose.msra.mxu0 0.0
        %2754 = vmatpush.xpose.msra.mxu0 0.0
        %2755 = vmatpush.xpose.msra.mxu0 0.0
        %2756 = vmatpush.xpose.msra.mxu0 0.0
        %2757 = vmatpush.xpose.msra.mxu0 0.0
        %2758 = vmatpush.xpose.msra.mxu0 0.0
        %2759 = vmatpush.xpose.msra.mxu0 0.0
        %2760 = vmatpush.xpose.msra.mxu0 0.0
        %2761 = vmatpush.xpose.msra.mxu0 0.0
        %2762 = vmatpush.xpose.msra.mxu0 0.0
        %2763 = vmatpush.xpose.msra.mxu0 0.0
        %2764 = vmatpush.xpose.msra.mxu0 0.0
        %2765 = vmatpush.xpose.msra.mxu0 0.0
        %2766 = vmatpush.xpose.msra.mxu0 %v2749
        %2767 = vmatmul.f32.gmra.mxu0 %v2746
        %v2768 = vpop.f32.mrf.mxu0
        %v2769 = vadd.f32 %v973, %v2768
        %2770 = vdwg.mxu0
        %v2771 = vsel %vm1096, %v2769, -inf
        %2772 = vmax.xlane.f32.xlu0 %v2771
        %v2773 = vpop.xlane.xlu0 %2772
        %v2774 = vsub.f32 %v2769, %v2773
        %v2775 = vmul.f32 %v2774, 1.442695
        %v2776 = vpow.pop %v2775
        %v2777 = vsel %vm1096, %v2776, 0.0
        %2778 = vadd.xlane.f32.xlu0 %v2777
        %v2779 = vpop.xlane.xlu0 %2778
        %v2780 = vrcp.pop %v2779
        %v2781 = vmul.f32 %v2779, %v2780
        %v2782 = vsub.f32 1.0, %v2781
        %v2783 = vmul.f32 %v2780, %v2782
        %v2784 = vadd.f32 %v2780, %v2783
        %vm2785 = vweird.f32 %v2779
        %vm2786 = vweird.f32 %v2780
        %vm2787 = vmor %vm2785, %vm2786
        %v2788 = vsel %vm2787, %v2780, %v2784
        %v2789 = vand.u32 2147483647, %v2779
        %vm2790 = vcmp.eq.f32.partialorder %v2789, 8.507059e+37
        %v2791 = vand.u32 %v2779, 2147483648
        %v2792 = vor.u32 1.1754944e-38, %v2791
        %v2793 = vsel %vm2790, %v2792, %v2788
        %v2794 = vmul.f32 %v2776, %v2793
        %2795 = vrot.lane.b32.xlu0 %v2742, 96
        %v2796 = vpop.permute.xlu0 %2795
        %v2799 = vsel %vm1096, %v2794, 0
        %2801 = vmatpush.msra.mxu0 0.0
        %2802 = vmatpush.msra.mxu0 0.0
        %2803 = vmatpush.msra.mxu0 0.0
        %2804 = vmatpush.msra.mxu0 0.0
        %2805 = vmatpush.msra.mxu0 0.0
        %2806 = vmatpush.msra.mxu0 0.0
        %2807 = vmatpush.msra.mxu0 0.0
        %2808 = vmatpush.msra.mxu0 0.0
        %2809 = vmatpush.msra.mxu0 0.0
        %2810 = vmatpush.msra.mxu0 0.0
        %2811 = vmatpush.msra.mxu0 0.0
        %2812 = vmatpush.msra.mxu0 0.0
        %2813 = vmatpush.msra.mxu0 0.0
        %2814 = vmatpush.msra.mxu0 0.0
        %2815 = vmatpush.msra.mxu0 0.0
        %2816 = vmatpush.msra.mxu0 %v2796
        %2817 = vmatmul.f32.gmra.mxu0 %v2799
        %v2818 = vpop.f32.mrf.mxu0
        %v2819 = vadd.f32 0.0, %v2818
        %2820 = vdwg.mxu0
        %2821 = vrot.lane.b32.xlu0 %v2716, 120
        %v2822 = vpop.permute.xlu0 %2821
        %2823 = vrot.lane.b32.xlu0 %v2742, 120
        %v2824 = vpop.permute.xlu0 %2823
        %v2825 = vsel %vm1096, %v2822, 0
        %v2827 = vsel %vm1096, %v2824, 0
        %2829 = vmatpush.xpose.msra.mxu0 0.0
        %2830 = vmatpush.xpose.msra.mxu0 0.0
        %2831 = vmatpush.xpose.msra.mxu0 0.0
        %2832 = vmatpush.xpose.msra.mxu0 0.0
        %2833 = vmatpush.xpose.msra.mxu0 0.0
        %2834 = vmatpush.xpose.msra.mxu0 0.0
        %2835 = vmatpush.xpose.msra.mxu0 0.0
        %2836 = vmatpush.xpose.msra.mxu0 0.0
        %2837 = vmatpush.xpose.msra.mxu0 0.0
        %2838 = vmatpush.xpose.msra.mxu0 0.0
        %2839 = vmatpush.xpose.msra.mxu0 0.0
        %2840 = vmatpush.xpose.msra.mxu0 0.0
        %2841 = vmatpush.xpose.msra.mxu0 0.0
        %2842 = vmatpush.xpose.msra.mxu0 0.0
        %2843 = vmatpush.xpose.msra.mxu0 0.0
        %2844 = vmatpush.xpose.msra.mxu0 %v2827
        %2845 = vmatmul.f32.gmra.mxu0 %v2825
        %v2846 = vpop.f32.mrf.mxu0
        %v2847 = vadd.f32 %v973, %v2846
        %2848 = vdwg.mxu0
        %v2849 = vsel %vm1096, %v2847, -inf
        %2850 = vmax.xlane.f32.xlu0 %v2849
        %v2851 = vpop.xlane.xlu0 %2850
        %v2852 = vsub.f32 %v2847, %v2851
        %v2853 = vmul.f32 %v2852, 1.442695
        %v2854 = vpow.pop %v2853
        %v2855 = vsel %vm1096, %v2854, 0.0
        %2856 = vadd.xlane.f32.xlu0 %v2855
        %v2857 = vpop.xlane.xlu0 %2856
        %v2858 = vrcp.pop %v2857
        %v2859 = vmul.f32 %v2857, %v2858
        %v2860 = vsub.f32 1.0, %v2859
        %v2861 = vmul.f32 %v2858, %v2860
        %v2862 = vadd.f32 %v2858, %v2861
        %vm2863 = vweird.f32 %v2857
        %vm2864 = vweird.f32 %v2858
        %vm2865 = vmor %vm2863, %vm2864
        %v2866 = vsel %vm2865, %v2858, %v2862
        %v2867 = vand.u32 2147483647, %v2857
        %vm2868 = vcmp.eq.f32.partialorder %v2867, 8.507059e+37
        %v2869 = vand.u32 %v2857, 2147483648
        %v2870 = vor.u32 1.1754944e-38, %v2869
        %v2871 = vsel %vm2868, %v2870, %v2866
        %v2872 = vmul.f32 %v2854, %v2871
        %2873 = vrot.lane.b32.xlu0 %v2742, 88
        %v2874 = vpop.permute.xlu0 %2873
        %v2877 = vsel %vm1096, %v2872, 0
        %2879 = vmatpush.msra.mxu0 0.0
        %2880 = vmatpush.msra.mxu0 0.0
        %2881 = vmatpush.msra.mxu0 0.0
        %2882 = vmatpush.msra.mxu0 0.0
        %2883 = vmatpush.msra.mxu0 0.0
        %2884 = vmatpush.msra.mxu0 0.0
        %2885 = vmatpush.msra.mxu0 0.0
        %2886 = vmatpush.msra.mxu0 0.0
        %2887 = vmatpush.msra.mxu0 0.0
        %2888 = vmatpush.msra.mxu0 0.0
        %2889 = vmatpush.msra.mxu0 0.0
        %2890 = vmatpush.msra.mxu0 0.0
        %2891 = vmatpush.msra.mxu0 0.0
        %2892 = vmatpush.msra.mxu0 0.0
        %2893 = vmatpush.msra.mxu0 0.0
        %2894 = vmatpush.msra.mxu0 %v2874
        %2895 = vmatmul.f32.gmra.mxu0 %v2877
        %v2896 = vpop.f32.mrf.mxu0
        %v2897 = vadd.f32 0.0, %v2896
        %2898 = vdwg.mxu0
        %2899 = vrot.lane.b32.xlu0 %v2716, 112
        %v2900 = vpop.permute.xlu0 %2899
        %2901 = vrot.lane.b32.xlu0 %v2742, 112
        %v2902 = vpop.permute.xlu0 %2901
        %v2903 = vsel %vm1096, %v2900, 0
        %v2905 = vsel %vm1096, %v2902, 0
        %2907 = vmatpush.xpose.msra.mxu0 0.0
        %2908 = vmatpush.xpose.msra.mxu0 0.0
        %2909 = vmatpush.xpose.msra.mxu0 0.0
        %2910 = vmatpush.xpose.msra.mxu0 0.0
        %2911 = vmatpush.xpose.msra.mxu0 0.0
        %2912 = vmatpush.xpose.msra.mxu0 0.0
        %2913 = vmatpush.xpose.msra.mxu0 0.0
        %2914 = vmatpush.xpose.msra.mxu0 0.0
        %2915 = vmatpush.xpose.msra.mxu0 0.0
        %2916 = vmatpush.xpose.msra.mxu0 0.0
        %2917 = vmatpush.xpose.msra.mxu0 0.0
        %2918 = vmatpush.xpose.msra.mxu0 0.0
        %2919 = vmatpush.xpose.msra.mxu0 0.0
        %2920 = vmatpush.xpose.msra.mxu0 0.0
        %2921 = vmatpush.xpose.msra.mxu0 0.0
        %2922 = vmatpush.xpose.msra.mxu0 %v2905
        %2923 = vmatmul.f32.gmra.mxu0 %v2903
        %v2924 = vpop.f32.mrf.mxu0
        %v2925 = vadd.f32 %v973, %v2924
        %2926 = vdwg.mxu0
        %v2927 = vsel %vm1096, %v2925, -inf
        %2928 = vmax.xlane.f32.xlu0 %v2927
        %v2929 = vpop.xlane.xlu0 %2928
        %v2930 = vsub.f32 %v2925, %v2929
        %v2931 = vmul.f32 %v2930, 1.442695
        %v2932 = vpow.pop %v2931
        %v2933 = vsel %vm1096, %v2932, 0.0
        %2934 = vadd.xlane.f32.xlu0 %v2933
        %v2935 = vpop.xlane.xlu0 %2934
        %v2936 = vrcp.pop %v2935
        %v2937 = vmul.f32 %v2935, %v2936
        %v2938 = vsub.f32 1.0, %v2937
        %v2939 = vmul.f32 %v2936, %v2938
        %v2940 = vadd.f32 %v2936, %v2939
        %vm2941 = vweird.f32 %v2935
        %vm2942 = vweird.f32 %v2936
        %vm2943 = vmor %vm2941, %vm2942
        %v2944 = vsel %vm2943, %v2936, %v2940
        %v2945 = vand.u32 2147483647, %v2935
        %vm2946 = vcmp.eq.f32.partialorder %v2945, 8.507059e+37
        %v2947 = vand.u32 %v2935, 2147483648
        %v2948 = vor.u32 1.1754944e-38, %v2947
        %v2949 = vsel %vm2946, %v2948, %v2944
        %v2950 = vmul.f32 %v2932, %v2949
        %2951 = vrot.lane.b32.xlu0 %v2742, 80
        %v2952 = vpop.permute.xlu0 %2951
        %v2955 = vsel %vm1096, %v2950, 0
        %2957 = vmatpush.msra.mxu0 0.0
        %2958 = vmatpush.msra.mxu0 0.0
        %2959 = vmatpush.msra.mxu0 0.0
        %2960 = vmatpush.msra.mxu0 0.0
        %2961 = vmatpush.msra.mxu0 0.0
        %2962 = vmatpush.msra.mxu0 0.0
        %2963 = vmatpush.msra.mxu0 0.0
        %2964 = vmatpush.msra.mxu0 0.0
        %2965 = vmatpush.msra.mxu0 0.0
        %2966 = vmatpush.msra.mxu0 0.0
        %2967 = vmatpush.msra.mxu0 0.0
        %2968 = vmatpush.msra.mxu0 0.0
        %2969 = vmatpush.msra.mxu0 0.0
        %2970 = vmatpush.msra.mxu0 0.0
        %2971 = vmatpush.msra.mxu0 0.0
        %2972 = vmatpush.msra.mxu0 %v2952
        %2973 = vmatmul.f32.gmra.mxu0 %v2955
        %v2974 = vpop.f32.mrf.mxu0
        %v2975 = vadd.f32 0.0, %v2974
        %2976 = vdwg.mxu0
        %2977 = vrot.lane.b32.xlu0 %v2716, 104
        %v2978 = vpop.permute.xlu0 %2977
        %2979 = vrot.lane.b32.xlu0 %v2742, 104
        %v2980 = vpop.permute.xlu0 %2979
        %v2981 = vsel %vm1096, %v2978, 0
        %v2983 = vsel %vm1096, %v2980, 0
        %2985 = vmatpush.xpose.msra.mxu0 0.0
        %2986 = vmatpush.xpose.msra.mxu0 0.0
        %2987 = vmatpush.xpose.msra.mxu0 0.0
        %2988 = vmatpush.xpose.msra.mxu0 0.0
        %2989 = vmatpush.xpose.msra.mxu0 0.0
        %2990 = vmatpush.xpose.msra.mxu0 0.0
        %2991 = vmatpush.xpose.msra.mxu0 0.0
        %2992 = vmatpush.xpose.msra.mxu0 0.0
        %2993 = vmatpush.xpose.msra.mxu0 0.0
        %2994 = vmatpush.xpose.msra.mxu0 0.0
        %2995 = vmatpush.xpose.msra.mxu0 0.0
        %2996 = vmatpush.xpose.msra.mxu0 0.0
        %2997 = vmatpush.xpose.msra.mxu0 0.0
        %2998 = vmatpush.xpose.msra.mxu0 0.0
        %2999 = vmatpush.xpose.msra.mxu0 0.0
        %3000 = vmatpush.xpose.msra.mxu0 %v2983
        %3001 = vmatmul.f32.gmra.mxu0 %v2981
        %v3002 = vpop.f32.mrf.mxu0
        %v3003 = vadd.f32 %v973, %v3002
        %3004 = vdwg.mxu0
        %v3005 = vsel %vm1096, %v3003, -inf
        %3006 = vmax.xlane.f32.xlu0 %v3005
        %v3007 = vpop.xlane.xlu0 %3006
        %v3008 = vsub.f32 %v3003, %v3007
        %v3009 = vmul.f32 %v3008, 1.442695
        %v3010 = vpow.pop %v3009
        %v3011 = vsel %vm1096, %v3010, 0.0
        %3012 = vadd.xlane.f32.xlu0 %v3011
        %v3013 = vpop.xlane.xlu0 %3012
        %v3014 = vrcp.pop %v3013
        %v3015 = vmul.f32 %v3013, %v3014
        %v3016 = vsub.f32 1.0, %v3015
        %v3017 = vmul.f32 %v3014, %v3016
        %v3018 = vadd.f32 %v3014, %v3017
        %vm3019 = vweird.f32 %v3013
        %vm3020 = vweird.f32 %v3014
        %vm3021 = vmor %vm3019, %vm3020
        %v3022 = vsel %vm3021, %v3014, %v3018
        %v3023 = vand.u32 2147483647, %v3013
        %vm3024 = vcmp.eq.f32.partialorder %v3023, 8.507059e+37
        %v3025 = vand.u32 %v3013, 2147483648
        %v3026 = vor.u32 1.1754944e-38, %v3025
        %v3027 = vsel %vm3024, %v3026, %v3022
        %v3028 = vmul.f32 %v3010, %v3027
        %3029 = vrot.lane.b32.xlu0 %v2742, 72
        %v3030 = vpop.permute.xlu0 %3029
        %v3033 = vsel %vm1096, %v3028, 0
        %3035 = vmatpush.msra.mxu0 0.0
        %3036 = vmatpush.msra.mxu0 0.0
        %3037 = vmatpush.msra.mxu0 0.0
        %3038 = vmatpush.msra.mxu0 0.0
        %3039 = vmatpush.msra.mxu0 0.0
        %3040 = vmatpush.msra.mxu0 0.0
        %3041 = vmatpush.msra.mxu0 0.0
        %3042 = vmatpush.msra.mxu0 0.0
        %3043 = vmatpush.msra.mxu0 0.0
        %3044 = vmatpush.msra.mxu0 0.0
        %3045 = vmatpush.msra.mxu0 0.0
        %3046 = vmatpush.msra.mxu0 0.0
        %3047 = vmatpush.msra.mxu0 0.0
        %3048 = vmatpush.msra.mxu0 0.0
        %3049 = vmatpush.msra.mxu0 0.0
        %3050 = vmatpush.msra.mxu0 %v3030
        %3051 = vmatmul.f32.gmra.mxu0 %v3033
        %v3052 = vpop.f32.mrf.mxu0
        %v3053 = vadd.f32 0.0, %v3052
        %3054 = vdwg.mxu0
        %3056 = vrot.lane.b32.xlu0 %v2897, 8
        %v3057 = vpop.permute.xlu0 %3056
        %3060 = vrot.lane.b32.xlu0 %v2975, 16
        %v3061 = vpop.permute.xlu0 %3060
        %3064 = vrot.lane.b32.xlu0 %v3053, 24
        %v3065 = vpop.permute.xlu0 %3064
        %v3067 = vsel %vm1096, %v2819, %v3057
        %v3068 = vsel %vm1420, %v3067, %v3061
        %v3069 = vsel %vm1422, %v3068, %v3065
        %v3070 = vpack.c.bf16 %v3069, %v3069
        %v3072 = vperm.slane %v2680, 0
        %v3078 = vunpack.c.l.b16 %v2675
        %v3079 = vunpack.c.l.b16 %v2676
        %v3080 = vunpack.c.l.b16 %v2677
        %v3081 = vunpack.c.l.b16 %v2678
        %v3082 = vpack.c.b16 %v3079, %v3078
        %v3083 = vpack.c.b16 %v3081, %v3080
        %v3087 = vsel %vm982, %v3070, 0
        %3089 = vmatpush.bf16.msra.mxu0 0
        %3090 = vmatpush.bf16.msra.mxu0 0
        %3091 = vmatpush.bf16.msra.mxu0 0
        %3092 = vmatpush.bf16.msra.mxu0 0
        %3093 = vmatpush.bf16.msra.mxu0 0
        %3094 = vmatpush.bf16.msra.mxu0 0
        %3095 = vmatpush.bf16.msra.mxu0 %v3083
        %3096 = vmatpush.bf16.msra.mxu0 %v3082
        %3097 = vmatmul.bf16.gmra.mxu0 %v3087
        %v3098 = vpop.f32.mrf.mxu0
        %v3099 = vadd.f32 %v3072, %v3098
        %v3100 = vpop.f32.mrf.mxu0
        %3101 = vdwg.mxu0
        %s3102 = scalar_lea.vmem %s12, 48
        %v3103 = vld [vmem:[%s3102] sm:$0xf]
        %v3104 = vld [vmem:[%s3102 + $0x4] sm:$0xf]
        %v3105 = vld [vmem:[%s3102 + $0x8] sm:$0xf]
        %v3106 = vld [vmem:[%s3102 + $0xc] sm:$0xf]
        %s3107 = scalar_lea.vmem %s13, 48
        %v3108 = vld [vmem:[%s3107] sm:$0xf]
        %v3109 = vld [vmem:[%s3107 + $0x4] sm:$0xf]
        %v3110 = vld [vmem:[%s3107 + $0x8] sm:$0xf]
        %v3111 = vld [vmem:[%s3107 + $0xc] sm:$0xf]
        %s3112 = scalar_lea.vmem %s14, 48
        %v3113 = vld [vmem:[%s3112] sm:$0xf]
        %v3114 = vld [vmem:[%s3112 + $0x4] sm:$0xf]
        %v3115 = vld [vmem:[%s3112 + $0x8] sm:$0xf]
        %v3116 = vld [vmem:[%s3112 + $0xc] sm:$0xf]
        %s3117 = scalar_lea.vmem [#allocation14], 3
        %v3118 = vld [vmem:[%s3117] sm:$0x1]
        %v3119 = vpack.c.bf16 %v3099, %v3099
        %v3124 = vunpack.c.l.b16 %v3103
        %v3125 = vunpack.c.l.b16 %v3104
        %v3126 = vunpack.c.l.b16 %v3105
        %v3127 = vunpack.c.l.b16 %v3106
        %v3128 = vpack.c.b16 %v3125, %v3124
        %v3129 = vpack.c.b16 %v3127, %v3126
        %v3133 = vsel %vm982, %v3119, 0
        %3135 = vmatpush.bf16.msra.mxu0 0
        %3136 = vmatpush.bf16.msra.mxu0 0
        %3137 = vmatpush.bf16.msra.mxu0 0
        %3138 = vmatpush.bf16.msra.mxu0 0
        %3139 = vmatpush.bf16.msra.mxu0 0
        %3140 = vmatpush.bf16.msra.mxu0 0
        %3141 = vmatpush.bf16.msra.mxu0 %v3129
        %3142 = vmatpush.bf16.msra.mxu0 %v3128
        %3143 = vmatmul.bf16.gmra.mxu0 %v3133
        %v3144 = vpop.f32.mrf.mxu0
        %v3145 = vadd.f32 0.0, %v3144
        %v3146 = vpop.f32.mrf.mxu0
        %3147 = vdwg.mxu0
        %v3152 = vunpack.c.l.b16 %v3108
        %v3153 = vunpack.c.l.b16 %v3109
        %v3154 = vunpack.c.l.b16 %v3110
        %v3155 = vunpack.c.l.b16 %v3111
        %v3156 = vpack.c.b16 %v3153, %v3152
        %v3157 = vpack.c.b16 %v3155, %v3154
        %3160 = vmatpush.bf16.msra.mxu0 0
        %3161 = vmatpush.bf16.msra.mxu0 0
        %3162 = vmatpush.bf16.msra.mxu0 0
        %3163 = vmatpush.bf16.msra.mxu0 0
        %3164 = vmatpush.bf16.msra.mxu0 0
        %3165 = vmatpush.bf16.msra.mxu0 0
        %3166 = vmatpush.bf16.msra.mxu0 %v3157
        %3167 = vmatpush.bf16.msra.mxu0 %v3156
        %3168 = vmatmul.bf16.gmra.mxu0 %v2701
        %v3169 = vpop.f32.mrf.mxu0
        %v3170 = vadd.f32 0.0, %v3169
        %v3171 = vpop.f32.mrf.mxu0
        %3172 = vdwg.mxu0
        %v3173 = vadd.f32 %v3145, %v3170
        %v3174 = vxor.u32 %v3173, 2147483648
        %v3175 = vmul.f32 %v3174, 1.442695
        %v3176 = vpow.pop %v3175
        %v3177 = vadd.f32 %v3176, 1.0
        %v3178 = vrcp.pop %v3177
        %v3179 = vmul.f32 %v3177, %v3178
        %v3180 = vsub.f32 1.0, %v3179
        %v3181 = vmul.f32 %v3178, %v3180
        %v3182 = vadd.f32 %v3178, %v3181
        %vm3183 = vweird.f32 %v3177
        %vm3184 = vweird.f32 %v3178
        %vm3185 = vmor %vm3183, %vm3184
        %v3186 = vsel %vm3185, %v3178, %v3182
        %v3187 = vand.u32 2147483647, %v3177
        %vm3188 = vcmp.eq.f32.partialorder %v3187, 8.507059e+37
        %v3189 = vand.u32 %v3177, 2147483648
        %v3190 = vor.u32 1.1754944e-38, %v3189
        %v3191 = vsel %vm3188, %v3190, %v3186
        %v3192 = vmul.f32 1.0, %v3191
        %v3194 = vperm.slane %v3118, 0
        %3195 = vrot.lane.b32.xlu0 %v3194, 32
        %v3196 = vpop.permute.xlu0 %3195
        %v3198 = vsub.f32 %v3173, %v3196
        %v3199 = vxor.u32 %v3198, 2147483648
        %v3200 = vmul.f32 %v3199, 1.442695
        %v3201 = vpow.pop %v3200
        %v3202 = vadd.f32 %v3201, 1.0
        %v3203 = vrcp.pop %v3202
        %v3204 = vmul.f32 %v3202, %v3203
        %v3205 = vsub.f32 1.0, %v3204
        %v3206 = vmul.f32 %v3203, %v3205
        %v3207 = vadd.f32 %v3203, %v3206
        %vm3208 = vweird.f32 %v3202
        %vm3209 = vweird.f32 %v3203
        %vm3210 = vmor %vm3208, %vm3209
        %v3211 = vsel %vm3210, %v3203, %v3207
        %v3212 = vand.u32 2147483647, %v3202
        %vm3213 = vcmp.eq.f32.partialorder %v3212, 8.507059e+37
        %v3214 = vand.u32 %v3202, 2147483648
        %v3215 = vor.u32 1.1754944e-38, %v3214
        %v3216 = vsel %vm3213, %v3215, %v3211
        %v3217 = vmul.f32 1.0, %v3216
        %3219 = vrot.lane.b32.xlu0 %v2659, 96
        %v3220 = vpop.permute.xlu0 %3219
        %v3222 = vmul.f32 %v3192, %v3220
        %v3223 = vpack.c.bf16 %v3222, %v3222
        %v3228 = vunpack.c.l.b16 %v3113
        %v3229 = vunpack.c.l.b16 %v3114
        %v3230 = vunpack.c.l.b16 %v3115
        %v3231 = vunpack.c.l.b16 %v3116
        %v3232 = vpack.c.b16 %v3229, %v3228
        %v3233 = vpack.c.b16 %v3231, %v3230
        %v3237 = vsel %vm982, %v3223, 0
        %3239 = vmatpush.bf16.msra.mxu0 0
        %3240 = vmatpush.bf16.msra.mxu0 0
        %3241 = vmatpush.bf16.msra.mxu0 0
        %3242 = vmatpush.bf16.msra.mxu0 0
        %3243 = vmatpush.bf16.msra.mxu0 0
        %3244 = vmatpush.bf16.msra.mxu0 0
        %3245 = vmatpush.bf16.msra.mxu0 %v3233
        %3246 = vmatpush.bf16.msra.mxu0 %v3232
        %3247 = vmatmul.bf16.gmra.mxu0 %v3237
        %v3248 = vpop.f32.mrf.mxu0
        %v3249 = vadd.f32 0.0, %v3248
        %v3250 = vpop.f32.mrf.mxu0
        %3251 = vdwg.mxu0
        %3253 = vrot.lane.b32.xlu0 %v3249, 64
        %v3254 = vpop.permute.xlu0 %3253
        %v3256 = vadd.f32 %v3145, %v3254
        %v3257 = vtanh.pop %v3256
        %v3258 = vsub.f32 1.0, %v3217
        %v3259 = vmul.f32 %v3258, %v2659
        %3261 = vrot.lane.b32.xlu0 %v3257, 96
        %v3262 = vpop.permute.xlu0 %3261
        %v3264 = vmul.f32 %v3217, %v3262
        %v3265 = vadd.f32 %v3259, %v3264
        %s3266 = scalar_lea.vmem [#allocation5], 4
        %v3267 = vld [vmem:[%s3266] sm:$0x1]
        %s3268 = scalar_lea.vmem [#allocation7], 4
        %v3269 = vld [vmem:[%s3268] sm:$0x1]
        %3271 = vrot.lane.b32.xlu0 %v3265, 96
        %v3272 = vpop.permute.xlu0 %3271
        %v3274 = vsel %vm982, %v3272, 0.0
        %3275 = vadd.xlane.f32.xlu0 %v3274
        %v3276 = vpop.xlane.xlu0 %3275
        %v3277 = vmul.f32 %v3276, %v992
        %v3278 = vsub.f32 %v3265, %v3277
        %v3279 = vmul.f32 %v3278, %v3278
        %3281 = vrot.lane.b32.xlu0 %v3279, 96
        %v3282 = vpop.permute.xlu0 %3281
        %v3284 = vsel %vm982, %v3282, 0.0
        %3285 = vadd.xlane.f32.xlu0 %v3284
        %v3286 = vpop.xlane.xlu0 %3285
        %v3287 = vmul.f32 %v3286, %v992
        %v3288 = vadd.f32 %v3287, 1e-05
        %v3289 = vrsqrt.pop %v3288
        %v3290 = vmul.f32 %v3289, %v3288
        %v3291 = vmul.f32 %v3290, %v3289
        %v3292 = vmul.f32 0.5, %v3291
        %v3293 = vsub.f32 1.5, %v3292
        %v3294 = vmul.f32 %v3289, %v3293
        %vm3295 = vweird.f32 %v3288
        %vm3296 = vweird.f32 %v3289
        %vm3297 = vmor %vm3295, %vm3296
        %v3298 = vsel %vm3297, %v3289, %v3294
        %v3299 = vmul.f32 %v3278, %v3298
        %v3301 = vperm.slane %v3267, 0
        %3302 = vrot.lane.b32.xlu0 %v3301, 32
        %v3303 = vpop.permute.xlu0 %3302
        %v3305 = vmul.f32 %v3299, %v3303
        %v3307 = vperm.slane %v3269, 0
        %3308 = vrot.lane.b32.xlu0 %v3307, 32
        %v3309 = vpop.permute.xlu0 %3308
        %v3311 = vadd.f32 %v3305, %v3309
        %s3312 = scalar_lea.vmem %s6, 48
        %v3313 = vld [vmem:[%s3312] sm:$0xf]
        %v3314 = vld [vmem:[%s3312 + $0x4] sm:$0xf]
        %v3315 = vld [vmem:[%s3312 + $0x8] sm:$0xf]
        %v3316 = vld [vmem:[%s3312 + $0xc] sm:$0xf]
        %s3317 = scalar_lea.vmem [#allocation8], 3
        %v3318 = vld [vmem:[%s3317] sm:$0x1]
        %s3319 = scalar_lea.vmem %s8, 48
        %v3320 = vld [vmem:[%s3319] sm:$0xf]
        %v3321 = vld [vmem:[%s3319 + $0x4] sm:$0xf]
        %v3322 = vld [vmem:[%s3319 + $0x8] sm:$0xf]
        %v3323 = vld [vmem:[%s3319 + $0xc] sm:$0xf]
        %s3324 = scalar_lea.vmem [#allocation10], 3
        %v3325 = vld [vmem:[%s3324] sm:$0x1]
        %s3326 = scalar_lea.vmem [#allocation11], 48
        %v3327 = vld [vmem:[%s3326] sm:$0xf]
        %v3328 = vld [vmem:[%s3326 + $0x4] sm:$0xf]
        %v3329 = vld [vmem:[%s3326 + $0x8] sm:$0xf]
        %v3330 = vld [vmem:[%s3326 + $0xc] sm:$0xf]
        %s3331 = scalar_lea.vmem [#allocation13], 3
        %v3332 = vld [vmem:[%s3331] sm:$0x1]
        %v3333 = vpack.c.bf16 %v3311, %v3311
        %v3335 = vperm.slane %v3318, 0
        %3338 = vrot.lane.b32.xlu0 %v3333, 96
        %v3339 = vpop.permute.xlu0 %3338
        %v3344 = vunpack.c.l.b16 %v3313
        %v3345 = vunpack.c.l.b16 %v3314
        %v3346 = vunpack.c.l.b16 %v3315
        %v3347 = vunpack.c.l.b16 %v3316
        %v3348 = vpack.c.b16 %v3345, %v3344
        %v3349 = vpack.c.b16 %v3347, %v3346
        %v3353 = vsel %vm982, %v3339, 0
        %3355 = vmatpush.bf16.msra.mxu0 0
        %3356 = vmatpush.bf16.msra.mxu0 0
        %3357 = vmatpush.bf16.msra.mxu0 0
        %3358 = vmatpush.bf16.msra.mxu0 0
        %3359 = vmatpush.bf16.msra.mxu0 0
        %3360 = vmatpush.bf16.msra.mxu0 0
        %3361 = vmatpush.bf16.msra.mxu0 %v3349
        %3362 = vmatpush.bf16.msra.mxu0 %v3348
        %3363 = vmatmul.bf16.gmra.mxu0 %v3353
        %v3364 = vpop.f32.mrf.mxu0
        %v3365 = vadd.f32 %v3335, %v3364
        %v3366 = vpop.f32.mrf.mxu0
        %3367 = vdwg.mxu0
        %v3368 = vmul.f32 %v3365, 0.35355338
        %v3370 = vperm.slane %v3325, 0
        %v3376 = vunpack.c.l.b16 %v3320
        %v3377 = vunpack.c.l.b16 %v3321
        %v3378 = vunpack.c.l.b16 %v3322
        %v3379 = vunpack.c.l.b16 %v3323
        %v3380 = vpack.c.b16 %v3377, %v3376
        %v3381 = vpack.c.b16 %v3379, %v3378
        %3384 = vmatpush.bf16.msra.mxu0 0
        %3385 = vmatpush.bf16.msra.mxu0 0
        %3386 = vmatpush.bf16.msra.mxu0 0
        %3387 = vmatpush.bf16.msra.mxu0 0
        %3388 = vmatpush.bf16.msra.mxu0 0
        %3389 = vmatpush.bf16.msra.mxu0 0
        %3390 = vmatpush.bf16.msra.mxu0 %v3381
        %3391 = vmatpush.bf16.msra.mxu0 %v3380
        %3392 = vmatmul.bf16.gmra.mxu0 %v1736
        %v3393 = vpop.f32.mrf.mxu0
        %v3394 = vadd.f32 %v3370, %v3393
        %v3395 = vpop.f32.mrf.mxu0
        %v3396 = vadd.f32 %v3370, %v3395
        %3397 = vdwg.mxu0
        %v3399 = vsel %vm1096, %v3368, 0
        %v3402 = vsel %vm1096, %v3394, 0
        %v3405 = vsel %vm1096, %v3396, 0
        %3407 = vmatpush.xpose.msra.mxu0 0.0
        %3408 = vmatpush.xpose.msra.mxu0 0.0
        %3409 = vmatpush.xpose.msra.mxu0 0.0
        %3410 = vmatpush.xpose.msra.mxu0 0.0
        %3411 = vmatpush.xpose.msra.mxu0 0.0
        %3412 = vmatpush.xpose.msra.mxu0 0.0
        %3413 = vmatpush.xpose.msra.mxu0 0.0
        %3414 = vmatpush.xpose.msra.mxu0 0.0
        %3415 = vmatpush.xpose.msra.mxu0 0.0
        %3416 = vmatpush.xpose.msra.mxu0 0.0
        %3417 = vmatpush.xpose.msra.mxu0 0.0
        %3418 = vmatpush.xpose.msra.mxu0 0.0
        %3419 = vmatpush.xpose.msra.mxu0 0.0
        %3420 = vmatpush.xpose.msra.mxu0 0.0
        %3421 = vmatpush.xpose.msra.mxu0 %v3405
        %3422 = vmatpush.xpose.msra.mxu0 %v3402
        %3423 = vmatmul.f32.gmra.mxu0 %v3399
        %v3424 = vpop.f32.mrf.mxu0
        %v3425 = vadd.f32 %v1753, %v3424
        %3426 = vdwg.mxu0
        %v3427 = vsel %vm1784, %v3425, -inf
        %3428 = vmax.xlane.f32.xlu0 %v3427
        %v3429 = vpop.xlane.xlu0 %3428
        %v3430 = vsub.f32 %v3425, %v3429
        %v3431 = vmul.f32 %v3430, 1.442695
        %v3432 = vpow.pop %v3431
        %v3433 = vsel %vm1784, %v3432, 0.0
        %3434 = vadd.xlane.f32.xlu0 %v3433
        %v3435 = vpop.xlane.xlu0 %3434
        %v3436 = vrcp.pop %v3435
        %v3437 = vmul.f32 %v3435, %v3436
        %v3438 = vsub.f32 1.0, %v3437
        %v3439 = vmul.f32 %v3436, %v3438
        %v3440 = vadd.f32 %v3436, %v3439
        %vm3441 = vweird.f32 %v3435
        %vm3442 = vweird.f32 %v3436
        %vm3443 = vmor %vm3441, %vm3442
        %v3444 = vsel %vm3443, %v3436, %v3440
        %v3445 = vand.u32 2147483647, %v3435
        %vm3446 = vcmp.eq.f32.partialorder %v3445, 8.507059e+37
        %v3447 = vand.u32 %v3435, 2147483648
        %v3448 = vor.u32 1.1754944e-38, %v3447
        %v3449 = vsel %vm3446, %v3448, %v3444
        %v3450 = vmul.f32 %v3432, %v3449
        %3451 = vrot.lane.b32.xlu0 %v3394, 96
        %v3452 = vpop.permute.xlu0 %3451
        %3453 = vrot.lane.b32.xlu0 %v3396, 96
        %v3454 = vpop.permute.xlu0 %3453
        %v3457 = vsel %vm1784, %v3450, 0
        %v3459 = vsel %vm1817, %v3454, 0
        %3461 = vmatpush.msra.mxu0 0.0
        %3462 = vmatpush.msra.mxu0 0.0
        %3463 = vmatpush.msra.mxu0 0.0
        %3464 = vmatpush.msra.mxu0 0.0
        %3465 = vmatpush.msra.mxu0 0.0
        %3466 = vmatpush.msra.mxu0 0.0
        %3467 = vmatpush.msra.mxu0 0.0
        %3468 = vmatpush.msra.mxu0 0.0
        %3469 = vmatpush.msra.mxu0 0.0
        %3470 = vmatpush.msra.mxu0 0.0
        %3471 = vmatpush.msra.mxu0 0.0
        %3472 = vmatpush.msra.mxu0 0.0
        %3473 = vmatpush.msra.mxu0 0.0
        %3474 = vmatpush.msra.mxu0 0.0
        %3475 = vmatpush.msra.mxu0 %v3459
        %3476 = vmatpush.msra.mxu0 %v3452
        %3477 = vmatmul.f32.gmra.mxu0 %v3457
        %v3478 = vpop.f32.mrf.mxu0
        %v3479 = vadd.f32 0.0, %v3478
        %3480 = vdwg.mxu0
        %3481 = vrot.lane.b32.xlu0 %v3368, 120
        %v3482 = vpop.permute.xlu0 %3481
        %3483 = vrot.lane.b32.xlu0 %v3394, 120
        %v3484 = vpop.permute.xlu0 %3483
        %3485 = vrot.lane.b32.xlu0 %v3396, 120
        %v3486 = vpop.permute.xlu0 %3485
        %v3487 = vsel %vm1096, %v3482, 0
        %v3489 = vsel %vm1096, %v3484, 0
        %v3491 = vsel %vm1096, %v3486, 0
        %3493 = vmatpush.xpose.msra.mxu0 0.0
        %3494 = vmatpush.xpose.msra.mxu0 0.0
        %3495 = vmatpush.xpose.msra.mxu0 0.0
        %3496 = vmatpush.xpose.msra.mxu0 0.0
        %3497 = vmatpush.xpose.msra.mxu0 0.0
        %3498 = vmatpush.xpose.msra.mxu0 0.0
        %3499 = vmatpush.xpose.msra.mxu0 0.0
        %3500 = vmatpush.xpose.msra.mxu0 0.0
        %3501 = vmatpush.xpose.msra.mxu0 0.0
        %3502 = vmatpush.xpose.msra.mxu0 0.0
        %3503 = vmatpush.xpose.msra.mxu0 0.0
        %3504 = vmatpush.xpose.msra.mxu0 0.0
        %3505 = vmatpush.xpose.msra.mxu0 0.0
        %3506 = vmatpush.xpose.msra.mxu0 0.0
        %3507 = vmatpush.xpose.msra.mxu0 %v3491
        %3508 = vmatpush.xpose.msra.mxu0 %v3489
        %3509 = vmatmul.f32.gmra.mxu0 %v3487
        %v3510 = vpop.f32.mrf.mxu0
        %v3511 = vadd.f32 %v1753, %v3510
        %3512 = vdwg.mxu0
        %v3513 = vsel %vm1784, %v3511, -inf
        %3514 = vmax.xlane.f32.xlu0 %v3513
        %v3515 = vpop.xlane.xlu0 %3514
        %v3516 = vsub.f32 %v3511, %v3515
        %v3517 = vmul.f32 %v3516, 1.442695
        %v3518 = vpow.pop %v3517
        %v3519 = vsel %vm1784, %v3518, 0.0
        %3520 = vadd.xlane.f32.xlu0 %v3519
        %v3521 = vpop.xlane.xlu0 %3520
        %v3522 = vrcp.pop %v3521
        %v3523 = vmul.f32 %v3521, %v3522
        %v3524 = vsub.f32 1.0, %v3523
        %v3525 = vmul.f32 %v3522, %v3524
        %v3526 = vadd.f32 %v3522, %v3525
        %vm3527 = vweird.f32 %v3521
        %vm3528 = vweird.f32 %v3522
        %vm3529 = vmor %vm3527, %vm3528
        %v3530 = vsel %vm3529, %v3522, %v3526
        %v3531 = vand.u32 2147483647, %v3521
        %vm3532 = vcmp.eq.f32.partialorder %v3531, 8.507059e+37
        %v3533 = vand.u32 %v3521, 2147483648
        %v3534 = vor.u32 1.1754944e-38, %v3533
        %v3535 = vsel %vm3532, %v3534, %v3530
        %v3536 = vmul.f32 %v3518, %v3535
        %3537 = vrot.lane.b32.xlu0 %v3394, 88
        %v3538 = vpop.permute.xlu0 %3537
        %3539 = vrot.lane.b32.xlu0 %v3396, 88
        %v3540 = vpop.permute.xlu0 %3539
        %v3543 = vsel %vm1784, %v3536, 0
        %v3545 = vsel %vm1817, %v3540, 0
        %3547 = vmatpush.msra.mxu0 0.0
        %3548 = vmatpush.msra.mxu0 0.0
        %3549 = vmatpush.msra.mxu0 0.0
        %3550 = vmatpush.msra.mxu0 0.0
        %3551 = vmatpush.msra.mxu0 0.0
        %3552 = vmatpush.msra.mxu0 0.0
        %3553 = vmatpush.msra.mxu0 0.0
        %3554 = vmatpush.msra.mxu0 0.0
        %3555 = vmatpush.msra.mxu0 0.0
        %3556 = vmatpush.msra.mxu0 0.0
        %3557 = vmatpush.msra.mxu0 0.0
        %3558 = vmatpush.msra.mxu0 0.0
        %3559 = vmatpush.msra.mxu0 0.0
        %3560 = vmatpush.msra.mxu0 0.0
        %3561 = vmatpush.msra.mxu0 %v3545
        %3562 = vmatpush.msra.mxu0 %v3538
        %3563 = vmatmul.f32.gmra.mxu0 %v3543
        %v3564 = vpop.f32.mrf.mxu0
        %v3565 = vadd.f32 0.0, %v3564
        %3566 = vdwg.mxu0
        %3567 = vrot.lane.b32.xlu0 %v3368, 112
        %v3568 = vpop.permute.xlu0 %3567
        %3569 = vrot.lane.b32.xlu0 %v3394, 112
        %v3570 = vpop.permute.xlu0 %3569
        %3571 = vrot.lane.b32.xlu0 %v3396, 112
        %v3572 = vpop.permute.xlu0 %3571
        %v3573 = vsel %vm1096, %v3568, 0
        %v3575 = vsel %vm1096, %v3570, 0
        %v3577 = vsel %vm1096, %v3572, 0
        %3579 = vmatpush.xpose.msra.mxu0 0.0
        %3580 = vmatpush.xpose.msra.mxu0 0.0
        %3581 = vmatpush.xpose.msra.mxu0 0.0
        %3582 = vmatpush.xpose.msra.mxu0 0.0
        %3583 = vmatpush.xpose.msra.mxu0 0.0
        %3584 = vmatpush.xpose.msra.mxu0 0.0
        %3585 = vmatpush.xpose.msra.mxu0 0.0
        %3586 = vmatpush.xpose.msra.mxu0 0.0
        %3587 = vmatpush.xpose.msra.mxu0 0.0
        %3588 = vmatpush.xpose.msra.mxu0 0.0
        %3589 = vmatpush.xpose.msra.mxu0 0.0
        %3590 = vmatpush.xpose.msra.mxu0 0.0
        %3591 = vmatpush.xpose.msra.mxu0 0.0
        %3592 = vmatpush.xpose.msra.mxu0 0.0
        %3593 = vmatpush.xpose.msra.mxu0 %v3577
        %3594 = vmatpush.xpose.msra.mxu0 %v3575
        %3595 = vmatmul.f32.gmra.mxu0 %v3573
        %v3596 = vpop.f32.mrf.mxu0
        %v3597 = vadd.f32 %v1753, %v3596
        %3598 = vdwg.mxu0
        %v3599 = vsel %vm1784, %v3597, -inf
        %3600 = vmax.xlane.f32.xlu0 %v3599
        %v3601 = vpop.xlane.xlu0 %3600
        %v3602 = vsub.f32 %v3597, %v3601
        %v3603 = vmul.f32 %v3602, 1.442695
        %v3604 = vpow.pop %v3603
        %v3605 = vsel %vm1784, %v3604, 0.0
        %3606 = vadd.xlane.f32.xlu0 %v3605
        %v3607 = vpop.xlane.xlu0 %3606
        %v3608 = vrcp.pop %v3607
        %v3609 = vmul.f32 %v3607, %v3608
        %v3610 = vsub.f32 1.0, %v3609
        %v3611 = vmul.f32 %v3608, %v3610
        %v3612 = vadd.f32 %v3608, %v3611
        %vm3613 = vweird.f32 %v3607
        %vm3614 = vweird.f32 %v3608
        %vm3615 = vmor %vm3613, %vm3614
        %v3616 = vsel %vm3615, %v3608, %v3612
        %v3617 = vand.u32 2147483647, %v3607
        %vm3618 = vcmp.eq.f32.partialorder %v3617, 8.507059e+37
        %v3619 = vand.u32 %v3607, 2147483648
        %v3620 = vor.u32 1.1754944e-38, %v3619
        %v3621 = vsel %vm3618, %v3620, %v3616
        %v3622 = vmul.f32 %v3604, %v3621
        %3623 = vrot.lane.b32.xlu0 %v3394, 80
        %v3624 = vpop.permute.xlu0 %3623
        %3625 = vrot.lane.b32.xlu0 %v3396, 80
        %v3626 = vpop.permute.xlu0 %3625
        %v3629 = vsel %vm1784, %v3622, 0
        %v3631 = vsel %vm1817, %v3626, 0
        %3633 = vmatpush.msra.mxu0 0.0
        %3634 = vmatpush.msra.mxu0 0.0
        %3635 = vmatpush.msra.mxu0 0.0
        %3636 = vmatpush.msra.mxu0 0.0
        %3637 = vmatpush.msra.mxu0 0.0
        %3638 = vmatpush.msra.mxu0 0.0
        %3639 = vmatpush.msra.mxu0 0.0
        %3640 = vmatpush.msra.mxu0 0.0
        %3641 = vmatpush.msra.mxu0 0.0
        %3642 = vmatpush.msra.mxu0 0.0
        %3643 = vmatpush.msra.mxu0 0.0
        %3644 = vmatpush.msra.mxu0 0.0
        %3645 = vmatpush.msra.mxu0 0.0
        %3646 = vmatpush.msra.mxu0 0.0
        %3647 = vmatpush.msra.mxu0 %v3631
        %3648 = vmatpush.msra.mxu0 %v3624
        %3649 = vmatmul.f32.gmra.mxu0 %v3629
        %v3650 = vpop.f32.mrf.mxu0
        %v3651 = vadd.f32 0.0, %v3650
        %3652 = vdwg.mxu0
        %3653 = vrot.lane.b32.xlu0 %v3368, 104
        %v3654 = vpop.permute.xlu0 %3653
        %3655 = vrot.lane.b32.xlu0 %v3394, 104
        %v3656 = vpop.permute.xlu0 %3655
        %3657 = vrot.lane.b32.xlu0 %v3396, 104
        %v3658 = vpop.permute.xlu0 %3657
        %v3659 = vsel %vm1096, %v3654, 0
        %v3661 = vsel %vm1096, %v3656, 0
        %v3663 = vsel %vm1096, %v3658, 0
        %3665 = vmatpush.xpose.msra.mxu0 0.0
        %3666 = vmatpush.xpose.msra.mxu0 0.0
        %3667 = vmatpush.xpose.msra.mxu0 0.0
        %3668 = vmatpush.xpose.msra.mxu0 0.0
        %3669 = vmatpush.xpose.msra.mxu0 0.0
        %3670 = vmatpush.xpose.msra.mxu0 0.0
        %3671 = vmatpush.xpose.msra.mxu0 0.0
        %3672 = vmatpush.xpose.msra.mxu0 0.0
        %3673 = vmatpush.xpose.msra.mxu0 0.0
        %3674 = vmatpush.xpose.msra.mxu0 0.0
        %3675 = vmatpush.xpose.msra.mxu0 0.0
        %3676 = vmatpush.xpose.msra.mxu0 0.0
        %3677 = vmatpush.xpose.msra.mxu0 0.0
        %3678 = vmatpush.xpose.msra.mxu0 0.0
        %3679 = vmatpush.xpose.msra.mxu0 %v3663
        %3680 = vmatpush.xpose.msra.mxu0 %v3661
        %3681 = vmatmul.f32.gmra.mxu0 %v3659
        %v3682 = vpop.f32.mrf.mxu0
        %v3683 = vadd.f32 %v1753, %v3682
        %3684 = vdwg.mxu0
        %v3685 = vsel %vm1784, %v3683, -inf
        %3686 = vmax.xlane.f32.xlu0 %v3685
        %v3687 = vpop.xlane.xlu0 %3686
        %v3688 = vsub.f32 %v3683, %v3687
        %v3689 = vmul.f32 %v3688, 1.442695
        %v3690 = vpow.pop %v3689
        %v3691 = vsel %vm1784, %v3690, 0.0
        %3692 = vadd.xlane.f32.xlu0 %v3691
        %v3693 = vpop.xlane.xlu0 %3692
        %v3694 = vrcp.pop %v3693
        %v3695 = vmul.f32 %v3693, %v3694
        %v3696 = vsub.f32 1.0, %v3695
        %v3697 = vmul.f32 %v3694, %v3696
        %v3698 = vadd.f32 %v3694, %v3697
        %vm3699 = vweird.f32 %v3693
        %vm3700 = vweird.f32 %v3694
        %vm3701 = vmor %vm3699, %vm3700
        %v3702 = vsel %vm3701, %v3694, %v3698
        %v3703 = vand.u32 2147483647, %v3693
        %vm3704 = vcmp.eq.f32.partialorder %v3703, 8.507059e+37
        %v3705 = vand.u32 %v3693, 2147483648
        %v3706 = vor.u32 1.1754944e-38, %v3705
        %v3707 = vsel %vm3704, %v3706, %v3702
        %v3708 = vmul.f32 %v3690, %v3707
        %3709 = vrot.lane.b32.xlu0 %v3394, 72
        %v3710 = vpop.permute.xlu0 %3709
        %3711 = vrot.lane.b32.xlu0 %v3396, 72
        %v3712 = vpop.permute.xlu0 %3711
        %v3715 = vsel %vm1784, %v3708, 0
        %v3717 = vsel %vm1817, %v3712, 0
        %3719 = vmatpush.msra.mxu0 0.0
        %3720 = vmatpush.msra.mxu0 0.0
        %3721 = vmatpush.msra.mxu0 0.0
        %3722 = vmatpush.msra.mxu0 0.0
        %3723 = vmatpush.msra.mxu0 0.0
        %3724 = vmatpush.msra.mxu0 0.0
        %3725 = vmatpush.msra.mxu0 0.0
        %3726 = vmatpush.msra.mxu0 0.0
        %3727 = vmatpush.msra.mxu0 0.0
        %3728 = vmatpush.msra.mxu0 0.0
        %3729 = vmatpush.msra.mxu0 0.0
        %3730 = vmatpush.msra.mxu0 0.0
        %3731 = vmatpush.msra.mxu0 0.0
        %3732 = vmatpush.msra.mxu0 0.0
        %3733 = vmatpush.msra.mxu0 %v3717
        %3734 = vmatpush.msra.mxu0 %v3710
        %3735 = vmatmul.f32.gmra.mxu0 %v3715
        %v3736 = vpop.f32.mrf.mxu0
        %v3737 = vadd.f32 0.0, %v3736
        %3738 = vdwg.mxu0
        %3740 = vrot.lane.b32.xlu0 %v3565, 8
        %v3741 = vpop.permute.xlu0 %3740
        %3744 = vrot.lane.b32.xlu0 %v3651, 16
        %v3745 = vpop.permute.xlu0 %3744
        %3748 = vrot.lane.b32.xlu0 %v3737, 24
        %v3749 = vpop.permute.xlu0 %3748
        %v3751 = vsel %vm1096, %v3479, %v3741
        %v3752 = vsel %vm1420, %v3751, %v3745
        %v3753 = vsel %vm1422, %v3752, %v3749
        %v3754 = vpack.c.bf16 %v3753, %v3753
        %v3756 = vperm.slane %v3332, 0
        %v3762 = vunpack.c.l.b16 %v3327
        %v3763 = vunpack.c.l.b16 %v3328
        %v3764 = vunpack.c.l.b16 %v3329
        %v3765 = vunpack.c.l.b16 %v3330
        %v3766 = vpack.c.b16 %v3763, %v3762
        %v3767 = vpack.c.b16 %v3765, %v3764
        %v3771 = vsel %vm982, %v3754, 0
        %3773 = vmatpush.bf16.msra.mxu0 0
        %3774 = vmatpush.bf16.msra.mxu0 0
        %3775 = vmatpush.bf16.msra.mxu0 0
        %3776 = vmatpush.bf16.msra.mxu0 0
        %3777 = vmatpush.bf16.msra.mxu0 0
        %3778 = vmatpush.bf16.msra.mxu0 0
        %3779 = vmatpush.bf16.msra.mxu0 %v3767
        %3780 = vmatpush.bf16.msra.mxu0 %v3766
        %3781 = vmatmul.bf16.gmra.mxu0 %v3771
        %v3782 = vpop.f32.mrf.mxu0
        %v3783 = vadd.f32 %v3756, %v3782
        %v3784 = vpop.f32.mrf.mxu0
        %3785 = vdwg.mxu0
        %3786 = vst.msk [vmem:[%s957] sm:$0xff] %vm1784, %v3450
        %3787 = vst.msk [vmem:[%s957 + $0x8] sm:$0xff] %vm1784, %v3536
        %3788 = vst.msk [vmem:[%s957 + $0x10] sm:$0xff] %vm1784, %v3622
        %3789 = vst.msk [vmem:[%s957 + $0x18] sm:$0xff] %vm1784, %v3708
        %s3790 = scalar_lea.vmem %s12, 64
        %v3791 = vld [vmem:[%s3790] sm:$0xf]
        %v3792 = vld [vmem:[%s3790 + $0x4] sm:$0xf]
        %v3793 = vld [vmem:[%s3790 + $0x8] sm:$0xf]
        %v3794 = vld [vmem:[%s3790 + $0xc] sm:$0xf]
        %s3795 = scalar_lea.vmem %s13, 64
        %v3796 = vld [vmem:[%s3795] sm:$0xf]
        %v3797 = vld [vmem:[%s3795 + $0x4] sm:$0xf]
        %v3798 = vld [vmem:[%s3795 + $0x8] sm:$0xf]
        %v3799 = vld [vmem:[%s3795 + $0xc] sm:$0xf]
        %s3800 = scalar_lea.vmem %s14, 64
        %v3801 = vld [vmem:[%s3800] sm:$0xf]
        %v3802 = vld [vmem:[%s3800 + $0x4] sm:$0xf]
        %v3803 = vld [vmem:[%s3800 + $0x8] sm:$0xf]
        %v3804 = vld [vmem:[%s3800 + $0xc] sm:$0xf]
        %s3805 = scalar_lea.vmem [#allocation14], 4
        %v3806 = vld [vmem:[%s3805] sm:$0x1]
        %v3807 = vpack.c.bf16 %v3783, %v3783
        %v3812 = vunpack.c.l.b16 %v3791
        %v3813 = vunpack.c.l.b16 %v3792
        %v3814 = vunpack.c.l.b16 %v3793
        %v3815 = vunpack.c.l.b16 %v3794
        %v3816 = vpack.c.b16 %v3813, %v3812
        %v3817 = vpack.c.b16 %v3815, %v3814
        %v3821 = vsel %vm982, %v3807, 0
        %3823 = vmatpush.bf16.msra.mxu0 0
        %3824 = vmatpush.bf16.msra.mxu0 0
        %3825 = vmatpush.bf16.msra.mxu0 0
        %3826 = vmatpush.bf16.msra.mxu0 0
        %3827 = vmatpush.bf16.msra.mxu0 0
        %3828 = vmatpush.bf16.msra.mxu0 0
        %3829 = vmatpush.bf16.msra.mxu0 %v3817
        %3830 = vmatpush.bf16.msra.mxu0 %v3816
        %3831 = vmatmul.bf16.gmra.mxu0 %v3821
        %v3832 = vpop.f32.mrf.mxu0
        %v3833 = vadd.f32 0.0, %v3832
        %v3834 = vpop.f32.mrf.mxu0
        %3835 = vdwg.mxu0
        %v3840 = vunpack.c.l.b16 %v3796
        %v3841 = vunpack.c.l.b16 %v3797
        %v3842 = vunpack.c.l.b16 %v3798
        %v3843 = vunpack.c.l.b16 %v3799
        %v3844 = vpack.c.b16 %v3841, %v3840
        %v3845 = vpack.c.b16 %v3843, %v3842
        %3848 = vmatpush.bf16.msra.mxu0 0
        %3849 = vmatpush.bf16.msra.mxu0 0
        %3850 = vmatpush.bf16.msra.mxu0 0
        %3851 = vmatpush.bf16.msra.mxu0 0
        %3852 = vmatpush.bf16.msra.mxu0 0
        %3853 = vmatpush.bf16.msra.mxu0 0
        %3854 = vmatpush.bf16.msra.mxu0 %v3845
        %3855 = vmatpush.bf16.msra.mxu0 %v3844
        %3856 = vmatmul.bf16.gmra.mxu0 %v3353
        %v3857 = vpop.f32.mrf.mxu0
        %v3858 = vadd.f32 0.0, %v3857
        %v3859 = vpop.f32.mrf.mxu0
        %3860 = vdwg.mxu0
        %v3861 = vadd.f32 %v3833, %v3858
        %v3862 = vxor.u32 %v3861, 2147483648
        %v3863 = vmul.f32 %v3862, 1.442695
        %v3864 = vpow.pop %v3863
        %v3865 = vadd.f32 %v3864, 1.0
        %v3866 = vrcp.pop %v3865
        %v3867 = vmul.f32 %v3865, %v3866
        %v3868 = vsub.f32 1.0, %v3867
        %v3869 = vmul.f32 %v3866, %v3868
        %v3870 = vadd.f32 %v3866, %v3869
        %vm3871 = vweird.f32 %v3865
        %vm3872 = vweird.f32 %v3866
        %vm3873 = vmor %vm3871, %vm3872
        %v3874 = vsel %vm3873, %v3866, %v3870
        %v3875 = vand.u32 2147483647, %v3865
        %vm3876 = vcmp.eq.f32.partialorder %v3875, 8.507059e+37
        %v3877 = vand.u32 %v3865, 2147483648
        %v3878 = vor.u32 1.1754944e-38, %v3877
        %v3879 = vsel %vm3876, %v3878, %v3874
        %v3880 = vmul.f32 1.0, %v3879
        %v3882 = vperm.slane %v3806, 0
        %3883 = vrot.lane.b32.xlu0 %v3882, 32
        %v3884 = vpop.permute.xlu0 %3883
        %v3886 = vsub.f32 %v3861, %v3884
        %v3887 = vxor.u32 %v3886, 2147483648
        %v3888 = vmul.f32 %v3887, 1.442695
        %v3889 = vpow.pop %v3888
        %v3890 = vadd.f32 %v3889, 1.0
        %v3891 = vrcp.pop %v3890
        %v3892 = vmul.f32 %v3890, %v3891
        %v3893 = vsub.f32 1.0, %v3892
        %v3894 = vmul.f32 %v3891, %v3893
        %v3895 = vadd.f32 %v3891, %v3894
        %vm3896 = vweird.f32 %v3890
        %vm3897 = vweird.f32 %v3891
        %vm3898 = vmor %vm3896, %vm3897
        %v3899 = vsel %vm3898, %v3891, %v3895
        %v3900 = vand.u32 2147483647, %v3890
        %vm3901 = vcmp.eq.f32.partialorder %v3900, 8.507059e+37
        %v3902 = vand.u32 %v3890, 2147483648
        %v3903 = vor.u32 1.1754944e-38, %v3902
        %v3904 = vsel %vm3901, %v3903, %v3899
        %v3905 = vmul.f32 1.0, %v3904
        %3907 = vrot.lane.b32.xlu0 %v3311, 96
        %v3908 = vpop.permute.xlu0 %3907
        %v3910 = vmul.f32 %v3880, %v3908
        %v3911 = vpack.c.bf16 %v3910, %v3910
        %v3916 = vunpack.c.l.b16 %v3801
        %v3917 = vunpack.c.l.b16 %v3802
        %v3918 = vunpack.c.l.b16 %v3803
        %v3919 = vunpack.c.l.b16 %v3804
        %v3920 = vpack.c.b16 %v3917, %v3916
        %v3921 = vpack.c.b16 %v3919, %v3918
        %v3925 = vsel %vm982, %v3911, 0
        %3927 = vmatpush.bf16.msra.mxu0 0
        %3928 = vmatpush.bf16.msra.mxu0 0
        %3929 = vmatpush.bf16.msra.mxu0 0
        %3930 = vmatpush.bf16.msra.mxu0 0
        %3931 = vmatpush.bf16.msra.mxu0 0
        %3932 = vmatpush.bf16.msra.mxu0 0
        %3933 = vmatpush.bf16.msra.mxu0 %v3921
        %3934 = vmatpush.bf16.msra.mxu0 %v3920
        %3935 = vmatmul.bf16.gmra.mxu0 %v3925
        %v3936 = vpop.f32.mrf.mxu0
        %v3937 = vadd.f32 0.0, %v3936
        %v3938 = vpop.f32.mrf.mxu0
        %3939 = vdwg.mxu0
        %3941 = vrot.lane.b32.xlu0 %v3937, 64
        %v3942 = vpop.permute.xlu0 %3941
        %v3944 = vadd.f32 %v3833, %v3942
        %v3945 = vtanh.pop %v3944
        %v3946 = vsub.f32 1.0, %v3905
        %v3947 = vmul.f32 %v3946, %v3311
        %3949 = vrot.lane.b32.xlu0 %v3945, 96
        %v3950 = vpop.permute.xlu0 %3949
        %v3952 = vmul.f32 %v3905, %v3950
        %v3953 = vadd.f32 %v3947, %v3952
        %s3954 = scalar_lea.vmem [#allocation5], 5
        %v3955 = vld [vmem:[%s3954] sm:$0x1]
        %s3956 = scalar_lea.vmem [#allocation7], 5
        %v3957 = vld [vmem:[%s3956] sm:$0x1]
        %3959 = vrot.lane.b32.xlu0 %v3953, 96
        %v3960 = vpop.permute.xlu0 %3959
        %v3962 = vsel %vm982, %v3960, 0.0
        %3963 = vadd.xlane.f32.xlu0 %v3962
        %v3964 = vpop.xlane.xlu0 %3963
        %v3965 = vmul.f32 %v3964, %v992
        %v3966 = vsub.f32 %v3953, %v3965
        %v3967 = vmul.f32 %v3966, %v3966
        %3969 = vrot.lane.b32.xlu0 %v3967, 96
        %v3970 = vpop.permute.xlu0 %3969
        %v3972 = vsel %vm982, %v3970, 0.0
        %3973 = vadd.xlane.f32.xlu0 %v3972
        %v3974 = vpop.xlane.xlu0 %3973
        %v3975 = vmul.f32 %v3974, %v992
        %v3976 = vadd.f32 %v3975, 1e-05
        %v3977 = vrsqrt.pop %v3976
        %v3978 = vmul.f32 %v3977, %v3976
        %v3979 = vmul.f32 %v3978, %v3977
        %v3980 = vmul.f32 0.5, %v3979
        %v3981 = vsub.f32 1.5, %v3980
        %v3982 = vmul.f32 %v3977, %v3981
        %vm3983 = vweird.f32 %v3976
        %vm3984 = vweird.f32 %v3977
        %vm3985 = vmor %vm3983, %vm3984
        %v3986 = vsel %vm3985, %v3977, %v3982
        %v3987 = vmul.f32 %v3966, %v3986
        %v3989 = vperm.slane %v3955, 0
        %3990 = vrot.lane.b32.xlu0 %v3989, 32
        %v3991 = vpop.permute.xlu0 %3990
        %v3993 = vmul.f32 %v3987, %v3991
        %v3995 = vperm.slane %v3957, 0
        %3996 = vrot.lane.b32.xlu0 %v3995, 32
        %v3997 = vpop.permute.xlu0 %3996
        %v3999 = vadd.f32 %v3993, %v3997
        %s4000 = scalar_lea.vmem [#allocation16], 16
        %v4001 = vld [vmem:[%s4000] sm:$0xf]
        %v4002 = vld [vmem:[%s4000 + $0x4] sm:$0xf]
        %v4003 = vld [vmem:[%s4000 + $0x8] sm:$0xf]
        %v4004 = vld [vmem:[%s4000 + $0xc] sm:$0xf]
        %v4005 = vpack.c.bf16 %v3999, %v3999
        %s4006 = scalar_lea.vmem [#allocation17], 1
        %v4007 = vld [vmem:[%s4006] sm:$0x1]
        %v4009 = vperm.slane %v4007, 0
        %4012 = vrot.lane.b32.xlu0 %v4005, 96
        %v4013 = vpop.permute.xlu0 %4012
        %v4018 = vunpack.c.l.b16 %v4001
        %v4019 = vunpack.c.l.b16 %v4002
        %v4020 = vunpack.c.l.b16 %v4003
        %v4021 = vunpack.c.l.b16 %v4004
        %v4022 = vpack.c.b16 %v4019, %v4018
        %v4023 = vpack.c.b16 %v4021, %v4020
        %v4027 = vsel %vm982, %v4013, 0
        %4029 = vmatpush.bf16.msra.mxu0 0
        %4030 = vmatpush.bf16.msra.mxu0 0
        %4031 = vmatpush.bf16.msra.mxu0 0
        %4032 = vmatpush.bf16.msra.mxu0 0
        %4033 = vmatpush.bf16.msra.mxu0 0
        %4034 = vmatpush.bf16.msra.mxu0 0
        %4035 = vmatpush.bf16.msra.mxu0 %v4023
        %4036 = vmatpush.bf16.msra.mxu0 %v4022
        %4037 = vmatmul.bf16.gmra.mxu0 %v4027
        %v4038 = vpop.f32.mrf.mxu0
        %v4039 = vadd.f32 %v4009, %v4038
        %v4040 = vpop.f32.mrf.mxu0
        %4041 = vdwg.mxu0
        %v4042 = vmax.f32 %v4039, 0.0
        %s4043 = scalar_lea.vmem %s18, 32
        %v4044 = vld [vmem:[%s4043] sm:$0xf]
        %v4045 = vld [vmem:[%s4043 + $0x4] sm:$0xf]
        %v4046 = vld [vmem:[%s4043 + $0x8] sm:$0xf]
        %v4047 = vld [vmem:[%s4043 + $0xc] sm:$0xf]
        %v4048 = vld [vmem:[%s4043 + $0x10] sm:$0xf]
        %v4049 = vld [vmem:[%s4043 + $0x14] sm:$0xf]
        %v4050 = vld [vmem:[%s4043 + $0x18] sm:$0xf]
        %v4051 = vld [vmem:[%s4043 + $0x1c] sm:$0xf]
        %v4052 = vpack.c.bf16 %v4042, %v4042
        %s4053 = scalar_lea.vmem [#allocation19], 1
        %v4054 = vld [vmem:[%s4053] sm:$0x1]
        %v4056 = vperm.slane %v4054, 0
        %v4066 = vunpack.c.l.b16 %v4044
        %v4067 = vunpack.c.l.b16 %v4045
        %v4068 = vunpack.c.l.b16 %v4046
        %v4069 = vunpack.c.l.b16 %v4047
        %v4070 = vunpack.c.l.b16 %v4048
        %v4071 = vunpack.c.l.b16 %v4049
        %v4072 = vunpack.c.l.b16 %v4050
        %v4073 = vunpack.c.l.b16 %v4051
        %v4074 = vpack.c.b16 %v4067, %v4066
        %v4075 = vpack.c.b16 %v4069, %v4068
        %v4076 = vpack.c.b16 %v4071, %v4070
        %v4077 = vpack.c.b16 %v4073, %v4072
        %v4083 = vsel %vm2433, %v4052, 0
        %4085 = vmatpush.bf16.msra.mxu0 0
        %4086 = vmatpush.bf16.msra.mxu0 0
        %4087 = vmatpush.bf16.msra.mxu0 0
        %4088 = vmatpush.bf16.msra.mxu0 0
        %4089 = vmatpush.bf16.msra.mxu0 %v4077
        %4090 = vmatpush.bf16.msra.mxu0 %v4076
        %4091 = vmatpush.bf16.msra.mxu0 %v4075
        %4092 = vmatpush.bf16.msra.mxu0 %v4074
        %4093 = vmatmul.bf16.gmra.mxu0 %v4083
        %v4094 = vpop.f32.mrf.mxu0
        %v4095 = vadd.f32 %v4056, %v4094
        %v4096 = vpop.f32.mrf.mxu0
        %4097 = vdwg.mxu0
        %s4098 = scalar_lea.vmem %s12, 80
        %v4099 = vld [vmem:[%s4098] sm:$0xf]
        %v4100 = vld [vmem:[%s4098 + $0x4] sm:$0xf]
        %v4101 = vld [vmem:[%s4098 + $0x8] sm:$0xf]
        %v4102 = vld [vmem:[%s4098 + $0xc] sm:$0xf]
        %s4103 = scalar_lea.vmem %s13, 80
        %v4104 = vld [vmem:[%s4103] sm:$0xf]
        %v4105 = vld [vmem:[%s4103 + $0x4] sm:$0xf]
        %v4106 = vld [vmem:[%s4103 + $0x8] sm:$0xf]
        %v4107 = vld [vmem:[%s4103 + $0xc] sm:$0xf]
        %s4108 = scalar_lea.vmem %s14, 80
        %v4109 = vld [vmem:[%s4108] sm:$0xf]
        %v4110 = vld [vmem:[%s4108 + $0x4] sm:$0xf]
        %v4111 = vld [vmem:[%s4108 + $0x8] sm:$0xf]
        %v4112 = vld [vmem:[%s4108 + $0xc] sm:$0xf]
        %s4113 = scalar_lea.vmem [#allocation14], 5
        %v4114 = vld [vmem:[%s4113] sm:$0x1]
        %v4115 = vpack.c.bf16 %v4095, %v4095
        %v4120 = vunpack.c.l.b16 %v4099
        %v4121 = vunpack.c.l.b16 %v4100
        %v4122 = vunpack.c.l.b16 %v4101
        %v4123 = vunpack.c.l.b16 %v4102
        %v4124 = vpack.c.b16 %v4121, %v4120
        %v4125 = vpack.c.b16 %v4123, %v4122
        %v4129 = vsel %vm982, %v4115, 0
        %4131 = vmatpush.bf16.msra.mxu0 0
        %4132 = vmatpush.bf16.msra.mxu0 0
        %4133 = vmatpush.bf16.msra.mxu0 0
        %4134 = vmatpush.bf16.msra.mxu0 0
        %4135 = vmatpush.bf16.msra.mxu0 0
        %4136 = vmatpush.bf16.msra.mxu0 0
        %4137 = vmatpush.bf16.msra.mxu0 %v4125
        %4138 = vmatpush.bf16.msra.mxu0 %v4124
        %4139 = vmatmul.bf16.gmra.mxu0 %v4129
        %v4140 = vpop.f32.mrf.mxu0
        %v4141 = vadd.f32 0.0, %v4140
        %v4142 = vpop.f32.mrf.mxu0
        %4143 = vdwg.mxu0
        %v4148 = vunpack.c.l.b16 %v4104
        %v4149 = vunpack.c.l.b16 %v4105
        %v4150 = vunpack.c.l.b16 %v4106
        %v4151 = vunpack.c.l.b16 %v4107
        %v4152 = vpack.c.b16 %v4149, %v4148
        %v4153 = vpack.c.b16 %v4151, %v4150
        %4156 = vmatpush.bf16.msra.mxu0 0
        %4157 = vmatpush.bf16.msra.mxu0 0
        %4158 = vmatpush.bf16.msra.mxu0 0
        %4159 = vmatpush.bf16.msra.mxu0 0
        %4160 = vmatpush.bf16.msra.mxu0 0
        %4161 = vmatpush.bf16.msra.mxu0 0
        %4162 = vmatpush.bf16.msra.mxu0 %v4153
        %4163 = vmatpush.bf16.msra.mxu0 %v4152
        %4164 = vmatmul.bf16.gmra.mxu0 %v4027
        %v4165 = vpop.f32.mrf.mxu0
        %v4166 = vadd.f32 0.0, %v4165
        %v4167 = vpop.f32.mrf.mxu0
        %4168 = vdwg.mxu0
        %v4169 = vadd.f32 %v4141, %v4166
        %v4170 = vxor.u32 %v4169, 2147483648
        %v4171 = vmul.f32 %v4170, 1.442695
        %v4172 = vpow.pop %v4171
        %v4173 = vadd.f32 %v4172, 1.0
        %v4174 = vrcp.pop %v4173
        %v4175 = vmul.f32 %v4173, %v4174
        %v4176 = vsub.f32 1.0, %v4175
        %v4177 = vmul.f32 %v4174, %v4176
        %v4178 = vadd.f32 %v4174, %v4177
        %vm4179 = vweird.f32 %v4173
        %vm4180 = vweird.f32 %v4174
        %vm4181 = vmor %vm4179, %vm4180
        %v4182 = vsel %vm4181, %v4174, %v4178
        %v4183 = vand.u32 2147483647, %v4173
        %vm4184 = vcmp.eq.f32.partialorder %v4183, 8.507059e+37
        %v4185 = vand.u32 %v4173, 2147483648
        %v4186 = vor.u32 1.1754944e-38, %v4185
        %v4187 = vsel %vm4184, %v4186, %v4182
        %v4188 = vmul.f32 1.0, %v4187
        %v4190 = vperm.slane %v4114, 0
        %4191 = vrot.lane.b32.xlu0 %v4190, 32
        %v4192 = vpop.permute.xlu0 %4191
        %v4194 = vsub.f32 %v4169, %v4192
        %v4195 = vxor.u32 %v4194, 2147483648
        %v4196 = vmul.f32 %v4195, 1.442695
        %v4197 = vpow.pop %v4196
        %v4198 = vadd.f32 %v4197, 1.0
        %v4199 = vrcp.pop %v4198
        %v4200 = vmul.f32 %v4198, %v4199
        %v4201 = vsub.f32 1.0, %v4200
        %v4202 = vmul.f32 %v4199, %v4201
        %v4203 = vadd.f32 %v4199, %v4202
        %vm4204 = vweird.f32 %v4198
        %vm4205 = vweird.f32 %v4199
        %vm4206 = vmor %vm4204, %vm4205
        %v4207 = vsel %vm4206, %v4199, %v4203
        %v4208 = vand.u32 2147483647, %v4198
        %vm4209 = vcmp.eq.f32.partialorder %v4208, 8.507059e+37
        %v4210 = vand.u32 %v4198, 2147483648
        %v4211 = vor.u32 1.1754944e-38, %v4210
        %v4212 = vsel %vm4209, %v4211, %v4207
        %v4213 = vmul.f32 1.0, %v4212
        %4215 = vrot.lane.b32.xlu0 %v3999, 96
        %v4216 = vpop.permute.xlu0 %4215
        %v4218 = vmul.f32 %v4188, %v4216
        %v4219 = vpack.c.bf16 %v4218, %v4218
        %v4224 = vunpack.c.l.b16 %v4109
        %v4225 = vunpack.c.l.b16 %v4110
        %v4226 = vunpack.c.l.b16 %v4111
        %v4227 = vunpack.c.l.b16 %v4112
        %v4228 = vpack.c.b16 %v4225, %v4224
        %v4229 = vpack.c.b16 %v4227, %v4226
        %v4233 = vsel %vm982, %v4219, 0
        %4235 = vmatpush.bf16.msra.mxu0 0
        %4236 = vmatpush.bf16.msra.mxu0 0
        %4237 = vmatpush.bf16.msra.mxu0 0
        %4238 = vmatpush.bf16.msra.mxu0 0
        %4239 = vmatpush.bf16.msra.mxu0 0
        %4240 = vmatpush.bf16.msra.mxu0 0
        %4241 = vmatpush.bf16.msra.mxu0 %v4229
        %4242 = vmatpush.bf16.msra.mxu0 %v4228
        %4243 = vmatmul.bf16.gmra.mxu0 %v4233
        %v4244 = vpop.f32.mrf.mxu0
        %v4245 = vadd.f32 0.0, %v4244
        %v4246 = vpop.f32.mrf.mxu0
        %4247 = vdwg.mxu0
        %4249 = vrot.lane.b32.xlu0 %v4245, 64
        %v4250 = vpop.permute.xlu0 %4249
        %v4252 = vadd.f32 %v4141, %v4250
        %v4253 = vtanh.pop %v4252
        %v4254 = vsub.f32 1.0, %v4213
        %v4255 = vmul.f32 %v4254, %v3999
        %4257 = vrot.lane.b32.xlu0 %v4253, 96
        %v4258 = vpop.permute.xlu0 %4257
        %v4260 = vmul.f32 %v4213, %v4258
        %v4261 = vadd.f32 %v4255, %v4260
        %v4262 = vld [vmem:[%s20] sm:$0xf]
        %v4263 = vld [vmem:[%s20 + $0x4] sm:$0xf]
        %v4264 = vld [vmem:[%s20 + $0x8] sm:$0xf]
        %v4265 = vld [vmem:[%s20 + $0xc] sm:$0xf]
        %v4266 = vpack.c.bf16 %v4261, %v4261
        %v4267 = vld [vmem:[#allocation20] sm:$0x1]
        %v4269 = vperm.slane %v4267, 0
        %4272 = vrot.lane.b32.xlu0 %v4266, 96
        %v4273 = vpop.permute.xlu0 %4272
        %v4278 = vunpack.c.l.b16 %v4262
        %v4279 = vunpack.c.l.b16 %v4263
        %v4280 = vunpack.c.l.b16 %v4264
        %v4281 = vunpack.c.l.b16 %v4265
        %v4282 = vpack.c.b16 %v4279, %v4278
        %v4283 = vpack.c.b16 %v4281, %v4280
        %v4287 = vsel %vm982, %v4273, 0
        %4289 = vmatpush.bf16.msra.mxu0 0
        %4290 = vmatpush.bf16.msra.mxu0 0
        %4291 = vmatpush.bf16.msra.mxu0 0
        %4292 = vmatpush.bf16.msra.mxu0 0
        %4293 = vmatpush.bf16.msra.mxu0 0
        %4294 = vmatpush.bf16.msra.mxu0 0
        %4295 = vmatpush.bf16.msra.mxu0 %v4283
        %4296 = vmatpush.bf16.msra.mxu0 %v4282
        %4297 = vmatmul.bf16.gmra.mxu0 %v4287
        %v4298 = vpop.f32.mrf.mxu0
        %v4299 = vadd.f32 %v4269, %v4298
        %v4300 = vpop.f32.mrf.mxu0
        %4301 = vdwg.mxu0
        %vm4302 = vcmask 162816
        %4303 = vst.msk [vmem:[%s950] sm:$0xff] %vm4302, %v4299
        %s4304 = sand.u32 %s540, 1
        %s4305 = scalar_lea.sflag [#allocation4], %s4304
        %s4306 = sand.u32 %s540, 1
        %s4307 = smul.addr %s4306, 8
        %s4308 = scalar_lea.vmem [#allocation22], %s4307
        %s4309 = sand.u32 %s566, 1
        %s4310 = scalar_lea.sflag [#allocation24], %s4309
        %s4311 = sand.u32 %s566, 1
        %s4312 = smul.addr %s4311, 32
        %s4313 = scalar_lea.vmem [#allocation23], %s4312
        // Predicated region
        $region157: #{decoder_forward.1} parent=107 // pred_check
          %p4314 = pneg %p550
        $region158: #{decoder_forward.1} parent=107 // pred_check_branch
          %4316 = sbr.rel (%p4314) target = $region160
        $region159: #{decoder_forward.1} parent=107 // pred_region
          %4318 = vsyncadd %s4305, 0
          %s4319 = smul.addr %s50, 8
          %s4320 = scalar_lea.hbm %s22, %s4319
          %s4322 = sshll.u32 %s4308, 4
          %s4323 = int_to_ptr.vmem [resolvable:$true] %s4322
          %s4324 = sshll.u32 %s4320, 4
          %s4325 = int_to_ptr.hbm [resolvable:$true] %s4324
          %4327 = dma.vmem_to_hbm [thread:$0]  %s4323, 128, %s4325, %s4305
        $region160: #{decoder_forward.1} parent=107 // pred_fallthru
          _
        // Predicated region
        $region161: #{decoder_forward.1} parent=107 // pred_check
          %p4328 = pneg %p576
        $region162: #{decoder_forward.1} parent=107 // pred_check_branch
          %4330 = sbr.rel (%p4328) target = $region164
        $region163: #{decoder_forward.1} parent=107 // pred_region
          %4332 = vsyncadd %s4310, 0
          %s4333 = smul.addr %s50, 4
          %s4334 = smul.addr %s4333, 8
          %s4335 = scalar_lea.hbm %s23, %s4334
          %s4336 = sshll.u32 %s4313, 4
          %s4337 = int_to_ptr.vmem [resolvable:$true] %s4336
          %s4338 = sshll.u32 %s4335, 4
          %s4339 = int_to_ptr.hbm [resolvable:$true] %s4338
          %4344 = dma.vmem_to_hbm [thread:$0]  %s4337, 512, %s4339, %s4310, 128, 128, 8
        $region164: #{decoder_forward.1} parent=107 // pred_fallthru
          _
      $region108: #{decoder_forward.1} parent=5 // pred_fallthru
        _
      %p4345 = scmp.le.s32.totalorder 2, %s45
      // Predicated region
      $region165: #{decoder_forward.1} parent=5 // pred_check
        %p4346 = pneg %p4345
      $region166: #{decoder_forward.1} parent=5 // pred_check_branch
        %4348 = sbr.rel (%p4346) target = $region168
      $region167: #{decoder_forward.1} parent=5 // pred_region
        %s4349 = ssub.s32 %s45, 2
        // Predicated region
        $region169: #{decoder_forward.1} parent=167 // pred_check
          %p4350 = pneg %p556
        $region170: #{decoder_forward.1} parent=167 // pred_check_branch
          %4352 = sbr.rel (%p4350) target = $region172
        $region171: #{decoder_forward.1} parent=167 // pred_region
          %s4353 = sand.u32 %s541, 1
          %s4354 = scalar_lea.sflag [#allocation4], %s4353
          %s4355 = sand.u32 %s541, 1
          %s4356 = smul.addr %s4355, 8
          %s4357 = scalar_lea.vmem [#allocation22], %s4356
          %4359 = dma.done %s4354, 128
        $region172: #{decoder_forward.1} parent=167 // pred_fallthru
          _
        // Predicated region
        $region173: #{decoder_forward.1} parent=167 // pred_check
          %p4360 = pneg %p582
        $region174: #{decoder_forward.1} parent=167 // pred_check_branch
          %4362 = sbr.rel (%p4360) target = $region176
        $region175: #{decoder_forward.1} parent=167 // pred_region
          %s4363 = sand.u32 %s567, 1
          %s4364 = scalar_lea.sflag [#allocation24], %s4363
          %s4365 = sand.u32 %s567, 1
          %s4366 = smul.addr %s4365, 32
          %s4367 = scalar_lea.vmem [#allocation23], %s4366
          %4369 = dma.done %s4364, 512
        $region176: #{decoder_forward.1} parent=167 // pred_fallthru
          _
      $region168: #{decoder_forward.1} parent=5 // pred_fallthru
        _
    $region6: #{decoder_forward.1} parent=1 // loop_footer
      %s49 = sadd.s32 1, %s45
    $region7: #{decoder_forward.1} parent=1 // loop_footer_branch
      %44 = sbr.rel target = $region3
    $region8: #{decoder_forward.1} parent=1 // loop_exit
      _
    %4370 = vsyncpa [#allocation3], 1
    %s4371 = scalar_lea.sflag [#allocation3], 1
    %4372 = vsyncpa %s4371, 1
    %4373 = vsyncpa [#allocation6], 1
    %4374 = vsyncpa [#allocation9], 1
    %4375 = vsyncpa [#allocation12], 1
    %4376 = vsyncpa [#allocation15], 1
    %4377 = vsyncpa [#allocation18], 1
    %4378 = vsyncpa [#allocation21], 1
    %4379 = vsyncpa [#allocation4], 1
    %s4380 = scalar_lea.sflag [#allocation4], 1
    %4381 = vsyncpa %s4380, 1
    %4382 = vsyncpa [#allocation24], 1
    %s4383 = scalar_lea.sflag [#allocation24], 1
    %4384 = vsyncpa %s4383, 1

</llo_original>
